<compile_context>
chip_gen: v7x
topology: tpu7x:2x2x1
jax: 0.10.0
libtpu: 0.0.40
codegen_flags: <defaults>
</compile_context>

<pallas_src>
import functools

import jax
import jax.numpy as jnp
from jax.experimental import pallas as pl
from jax.experimental.pallas import tpu as pltpu

TM = 1024                       # pixel-axis tile (sweep 512..2048)
BN_EPS = 1e-5
LANE = 128                      # channel padding target (128 lanes; 256 also fills v6e/v7x MXU)
VMEM_LIMIT = 48 * 1024 * 1024   # safe on v5e/v6e (128 MiB) and v7x (64 MiB physical)
USE_CORE_PARALLEL = False       # set True on v7x to shard the pixel grid over its 2 TensorCores


def _compiler_params():
    sem = pltpu.CORE_PARALLEL if USE_CORE_PARALLEL else pltpu.PARALLEL
    return pltpu.CompilerParams(
        dimension_semantics=(sem,),
        vmem_limit_bytes=VMEM_LIMIT,
    )


def _round_up(x, k):
    return (x + k - 1) // k * k


def _choose_tm(m, tm_max=TM):
    """Largest tile <= tm_max that never exceeds the array (multiple of 8 rows)."""
    if m >= tm_max:
        return tm_max
    return max(8, (m // 8) * 8)


def _pad2d(w, rows, cols):
    r, c = w.shape
    if r == rows and c == cols:
        return w
    return jnp.pad(w, ((0, rows - r), (0, cols - c)))


def _pad1d(v, n, value=0.0):
    if v.shape[0] == n:
        return v
    return jnp.pad(v, (0, n - v.shape[0]), constant_values=value)


# ----------------------------- Pallas kernels ------------------------------ #

def _stats_block(acc):
    # per-channel (sum, sum of squares) for BatchNorm batch statistics
    s0 = jnp.sum(acc, axis=0)
    s1 = jnp.sum(acc * acc, axis=0)
    return jnp.stack([s0, s1], axis=0)[None]          # (1, 2, N)


def _write_stats(m_total, ragged, acc, stats_ref):
    if not ragged:                                     # trace-time specialization
        stats_ref[...] = _stats_block(acc)
    else:
        last = pl.program_id(0) == pl.num_programs(0) - 1

        @pl.when(jnp.logical_not(last))
        def _():
            stats_ref[...] = _stats_block(acc)

        @pl.when(last)                                 # mask ragged rows only here
        def _():
            tm = acc.shape[0]
            rows = pl.program_id(0) * tm + jax.lax.broadcasted_iota(
                jnp.int32, (tm, 1), 0)
            stats_ref[...] = _stats_block(jnp.where(rows < m_total, acc, 0.0))


def _mm_stats_kernel(m_total, ragged, x_ref, w_ref, y_ref, stats_ref):
    # (tm, K) @ (K, N) on the MXU (bf16 operands, f32 accum) + BN partial stats.
    acc = jnp.dot(x_ref[...], w_ref[...], preferred_element_type=jnp.float32)
    y_ref[...] = acc.astype(y_ref.dtype)
    _write_stats(m_total, ragged, acc, stats_ref)


def _bn_relu_kernel(y_ref, scale_ref, shift_ref, o_ref):
    # folded BatchNorm (per-channel affine) + ReLU; f32 math (v5e VPU has no bf16)
    y = y_ref[...].astype(jnp.float32)
    o_ref[...] = jnp.maximum(y * scale_ref[...] + shift_ref[...], 0.0).astype(o_ref.dtype)


def _add_mm_kernel(a_ref, b_ref, w_ref, o_ref):
    # fused residual add then 1x1 conv: (a + b) @ w  -- used for conv2(x + fu(x))
    # add in f32 (bf16 is storage-only), bf16 into the MXU.
    s = (a_ref[...].astype(jnp.float32) + b_ref[...].astype(jnp.float32)).astype(jnp.bfloat16)
    o_ref[...] = jnp.dot(s, w_ref[...],
                         preferred_element_type=jnp.float32).astype(o_ref.dtype)


# ----------------------------- Pallas wrappers ----------------------------- #

def matmul_bn_stats(x_bf16, w_bf16, tm=TM):
    """x: (M, K) bf16, w: (K, N) bf16. Returns (y bf16 (M,N), stats f32 (T,2,N))."""
    m, k = x_bf16.shape
    n = w_bf16.shape[1]
    tm = _choose_tm(m, tm)
    nt = pl.cdiv(m, tm)
    ragged = (m % tm) != 0
    cost = pl.CostEstimate(
        flops=2 * m * k * n, transcendentals=0,
        bytes_accessed=m * k * 2 + k * n * 2 + m * n * 2 + nt * 2 * n * 4)
    return pl.pallas_call(
        functools.partial(_mm_stats_kernel, m, ragged),
        out_shape=(jax.ShapeDtypeStruct((m, n), jnp.bfloat16),
                   jax.ShapeDtypeStruct((nt, 2, n), jnp.float32)),
        grid=(nt,),
        in_specs=[pl.BlockSpec((tm, k), lambda i: (i, 0)),
                  pl.BlockSpec((k, n), lambda i: (0, 0))],
        out_specs=(pl.BlockSpec((tm, n), lambda i: (i, 0)),
                   pl.BlockSpec((1, 2, n), lambda i: (i, 0, 0))),
        compiler_params=_compiler_params(),
        cost_estimate=cost,
    )(x_bf16, w_bf16)


def bn_relu(y, scale, shift, out_dtype, tm=TM):
    """y: (M, C) bf16; scale/shift: (C,). Returns relu(y*scale+shift) as out_dtype."""
    m, c = y.shape
    tm = _choose_tm(m, tm)
    nt = pl.cdiv(m, tm)
    scale2 = scale.reshape(1, c).astype(jnp.float32)
    shift2 = shift.reshape(1, c).astype(jnp.float32)
    return pl.pallas_call(
        _bn_relu_kernel,
        out_shape=jax.ShapeDtypeStruct((m, c), out_dtype),
        grid=(nt,),
        in_specs=[pl.BlockSpec((tm, c), lambda i: (i, 0)),
                  pl.BlockSpec((1, c), lambda i: (0, 0)),
                  pl.BlockSpec((1, c), lambda i: (0, 0))],
        out_specs=pl.BlockSpec((tm, c), lambda i: (i, 0)),
        compiler_params=_compiler_params(),
    )(y, scale2, shift2)


def add_matmul(a_bf16, b_bf16, w_bf16, tm=TM):
    """(a + b) @ w with a, b: (M, K) bf16, w: (K, N) bf16. Returns (M, N) f32."""
    m, k = a_bf16.shape
    n = w_bf16.shape[1]
    tm = _choose_tm(m, tm)
    nt = pl.cdiv(m, tm)
    cost = pl.CostEstimate(
        flops=2 * m * k * n + m * k, transcendentals=0,
        bytes_accessed=2 * m * k * 2 + k * n * 2 + m * n * 4)
    return pl.pallas_call(
        _add_mm_kernel,
        out_shape=jax.ShapeDtypeStruct((m, n), jnp.float32),
        grid=(nt,),
        in_specs=[pl.BlockSpec((tm, k), lambda i: (i, 0)),
                  pl.BlockSpec((tm, k), lambda i: (i, 0)),
                  pl.BlockSpec((k, n), lambda i: (0, 0))],
        out_specs=pl.BlockSpec((tm, n), lambda i: (i, 0)),
        compiler_params=_compiler_params(),
        cost_estimate=cost,
    )(a_bf16, b_bf16, w_bf16)


# -------------------------- SpectralTransform glue ------------------------- #

def _finish_bn(stats, m, gamma, beta):
    """Reduce per-tile (sum, sumsq) partials -> folded BN scale/shift (training-mode)."""
    s = jnp.sum(stats, axis=0)                        # (2, C)
    mean = s[0] / m
    var = jnp.maximum(s[1] / m - mean * mean, 0.0)    # biased batch variance (torch BN train)
    scale = gamma * jax.lax.rsqrt(var + BN_EPS)
    shift = beta - mean * scale
    return scale, shift


def init_params(key, in_channels, out_channels):
    cmid = out_channels // 2
    k1, k2, k3 = jax.random.split(key, 3)
    # 1x1 conv weights stored as (C_in, C_out) matrices (== torch weight[:, :, 0, 0].T);
    # w_fu keeps torch's interleaved [re0, im0, re1, im1, ...] ordering on both axes.
    return {
        "w1": jax.random.normal(k1, (in_channels, cmid), jnp.float32) * 0.1,
        "bn1_gamma": jnp.ones((cmid,), jnp.float32),
        "bn1_beta": jnp.zeros((cmid,), jnp.float32),
        "w_fu": jax.random.normal(k2, (2 * cmid, 2 * cmid), jnp.float32) * 0.1,
        "bnf_gamma": jnp.ones((2 * cmid,), jnp.float32),
        "bnf_beta": jnp.zeros((2 * cmid,), jnp.float32),
        "w2": jax.random.normal(k3, (cmid, out_channels), jnp.float32) * 0.1,
    }


def fourier_unit(a_nhwc, params, tm=TM):
    """FourierUnit.forward on channels-last a (B, H, W, Cp); groups=1, ffc3d=False.

    Cp is the lane-padded channel count; pad channels are exactly zero.
    """
    B, H, W, Cp = a_nhwc.shape
    # TODO(synk): rfftn/irfftn have no Pallas TPU primitive; XLA FFT between kernels.
    ff = jnp.fft.rfftn(a_nhwc.astype(jnp.float32), axes=(1, 2), norm="ortho")
    Wf = ff.shape[2]
    m2 = B * H * Wf

    # torch's interleaved [re0, im0, re1, im1, ...] channel layout is produced by a
    # single minor-axis stack (one fused complex->bf16 pass); the conv then becomes
    # ONE (M, 2Cp) @ (2Cp, 2Cp) matmul with the unpermuted weight.
    f_il = jnp.stack([jnp.real(ff), jnp.imag(ff)], axis=-1).reshape(m2, 2 * Cp)
    f_il = f_il.astype(jnp.bfloat16)

    two_cp = 2 * Cp
    w_fu = _pad2d(params["w_fu"], two_cp, two_cp).astype(jnp.bfloat16)
    gamma = _pad1d(params["bnf_gamma"], two_cp, 1.0)
    beta = _pad1d(params["bnf_beta"], two_cp, 0.0)

    z, st = matmul_bn_stats(f_il, w_fu, tm)                      # (m2, 2Cp) bf16 + stats
    scale, shift = _finish_bn(st, m2, gamma, beta)
    # f32 output: the interleaved pairs reassemble into complex64 without an
    # extra up-cast pass (bf16 storage would need one before the inverse FFT).
    z = bn_relu(z, scale, shift, jnp.float32, tm)                # (m2, 2Cp) f32

    z = z.reshape(B, H, Wf, Cp, 2)
    zc = jax.lax.complex(z[..., 0], z[..., 1])
    return jnp.fft.irfftn(zc, s=(H, W), axes=(1, 2), norm="ortho")   # (B,H,W,Cp) f32


def spectral_transform_forward(x_nchw, params, tm=TM):
    """SpectralTransform.forward, stride=1 (downsample=Identity), groups=1. NCHW in/out."""
    B, Cin, H, W = x_nchw.shape
    Cmid = params["w1"].shape[1]
    Cout = params["w2"].shape[1]
    Cmid_p = _round_up(Cmid, LANE)                    # lane-dense conv1 / FU width
    Cout_p = _round_up(Cout, LANE)                    # lane-dense conv2 width
    m = B * H * W

    # single NCHW -> channels-last boundary transpose; bf16 cast fuses into it
    x = jnp.transpose(x_nchw, (0, 2, 3, 1)).reshape(m, Cin).astype(jnp.bfloat16)

    # conv1: 1x1 conv + BN(batch stats) + ReLU; stats emitted by the matmul kernel.
    # Output channels zero-padded to Cmid_p (zero weight columns -> pad lanes stay 0).
    w1 = _pad2d(params["w1"], Cin, Cmid_p).astype(jnp.bfloat16)
    g1 = _pad1d(params["bn1_gamma"], Cmid_p, 1.0)
    b1 = _pad1d(params["bn1_beta"], Cmid_p, 0.0)
    y, st = matmul_bn_stats(x, w1, tm)
    scale, shift = _finish_bn(st, m, g1, b1)
    a1 = bn_relu(y, scale, shift, jnp.bfloat16, tm)              # (m, Cmid_p) bf16

    # Fourier unit (operates on the padded width; pad channels remain zero)
    fu_out = fourier_unit(a1.reshape(B, H, W, Cmid_p), params, tm)

    # conv2 on (a1 + fu_out): residual add fused into the matmul kernel
    w2 = _pad2d(params["w2"], Cmid_p, Cout_p).astype(jnp.bfloat16)
    out = add_matmul(a1, fu_out.reshape(m, Cmid_p).astype(jnp.bfloat16),
                     w2, tm)                                     # (m, Cout_p) f32
    out = out[:, :Cout]                                          # drop pad channels
    return jnp.transpose(out.reshape(B, H, W, Cout), (0, 3, 1, 2))


if __name__ == "__main__":
    key = jax.random.PRNGKey(0)
    kx, kp = jax.random.split(key)

    B, Cin, H, W = 2, 4, 16, 16
    Cout = 8
    x = jax.random.normal(kx, (B, Cin, H, W), jnp.float32)
    params = init_params(kp, Cin, Cout)

    fwd = jax.jit(spectral_transform_forward)
    out = jax.block_until_ready(fwd(x, params))
    assert out.shape == (B, Cout, H, W), out.shape
    assert out.dtype == jnp.float32
    print("KERNEL_OK")
</pallas_src>

<mosaic_0001>
module attributes {stable_mosaic.version = 11 : i64} {
  func.func @_bn_relu_kernel(%arg0: i32, %arg1: memref<512x128xbf16, #tpu.memory_space<vmem>>, %arg2: memref<1x128xf32, #tpu.memory_space<vmem>>, %arg3: memref<1x128xf32, #tpu.memory_space<vmem>>, %arg4: memref<512x128xbf16, #tpu.memory_space<vmem>>) attributes {dimension_semantics = [#tpu.dimension_semantics<parallel>], iteration_bounds = array<i64: 1>, scalar_prefetch = 0 : i64, scratch_operands = 0 : i64, tpu.core_type = #tpu.core_type<tc>, window_params = [{transform_indices = @transform_0, window_bounds = array<i64: 512, 128>}, {pipeline_mode = #tpu.pipeline_mode<synchronous>, transform_indices = @transform_1, window_bounds = array<i64: 1, 128>}, {pipeline_mode = #tpu.pipeline_mode<synchronous>, transform_indices = @transform_2, window_bounds = array<i64: 1, 128>}, {transform_indices = @transform_3, window_bounds = array<i64: 512, 128>}]} {
    %c0 = arith.constant 0 : index
    %c0_0 = arith.constant 0 : index
    %0 = vector.load %arg1[%c0, %c0_0] : memref<512x128xbf16, #tpu.memory_space<vmem>>, vector<512x128xbf16>
    %1 = arith.extf %0 : vector<512x128xbf16> to vector<512x128xf32>
    %c0_1 = arith.constant 0 : index
    %c0_2 = arith.constant 0 : index
    %2 = vector.load %arg2[%c0_1, %c0_2] : memref<1x128xf32, #tpu.memory_space<vmem>>, vector<1x128xf32>
    %3 = vector.broadcast %2 : vector<1x128xf32> to vector<512x128xf32>
    %4 = arith.mulf %1, %3 : vector<512x128xf32>
    %c0_3 = arith.constant 0 : index
    %c0_4 = arith.constant 0 : index
    %5 = vector.load %arg3[%c0_3, %c0_4] : memref<1x128xf32, #tpu.memory_space<vmem>>, vector<1x128xf32>
    %6 = vector.broadcast %5 : vector<1x128xf32> to vector<512x128xf32>
    %7 = arith.addf %4, %6 : vector<512x128xf32>
    %cst = arith.constant 0.000000e+00 : f32
    %8 = vector.broadcast %cst : f32 to vector<512x128xf32>
    %9 = arith.maximumf %7, %8 : vector<512x128xf32>
    %10 = arith.truncf %9 : vector<512x128xf32> to vector<512x128xbf16>
    %c0_5 = arith.constant 0 : index
    %c0_6 = arith.constant 0 : index
    %11 = vector.load %arg4[%c0_5, %c0_6] : memref<512x128xbf16, #tpu.memory_space<vmem>>, vector<512x128xbf16>
    tpu.vector_store %arg4[%c0_5, %c0_6], %10 {strides = array<i32>} : memref<512x128xbf16, #tpu.memory_space<vmem>>, vector<512x128xbf16>,
    return
  }
  func.func @transform_0(%arg0: i32) -> (i32, i32) {
    %c0_i32 = arith.constant 0 : i32
    %c0_i32_0 = arith.constant 0 : i32
    return %arg0, %c0_i32 : i32, i32
  }
  func.func @transform_1(%arg0: i32) -> (i32, i32) {
    %c0_i32 = arith.constant 0 : i32
    %c0_i32_0 = arith.constant 0 : i32
    %c0_i32_1 = arith.constant 0 : i32
    return %c0_i32, %c0_i32_0 : i32, i32
  }
  func.func @transform_2(%arg0: i32) -> (i32, i32) {
    %c0_i32 = arith.constant 0 : i32
    %c0_i32_0 = arith.constant 0 : i32
    %c0_i32_1 = arith.constant 0 : i32
    return %c0_i32, %c0_i32_0 : i32, i32
  }
  func.func @transform_3(%arg0: i32) -> (i32, i32) {
    %c0_i32 = arith.constant 0 : i32
    %c0_i32_0 = arith.constant 0 : i32
    return %arg0, %c0_i32 : i32, i32
  }
}

module attributes {stable_mosaic.version = 11 : i64} {
  func.func @_mm_stats_kernel(%arg0: i32, %arg1: memref<512x4xbf16, #tpu.memory_space<vmem>>, %arg2: memref<4x128xbf16, #tpu.memory_space<vmem>>, %arg3: memref<512x128xbf16, #tpu.memory_space<vmem>>, %arg4: memref<1x2x128xf32, #tpu.memory_space<vmem>>) attributes {dimension_semantics = [#tpu.dimension_semantics<parallel>], iteration_bounds = array<i64: 1>, scalar_prefetch = 0 : i64, scratch_operands = 0 : i64, tpu.core_type = #tpu.core_type<tc>, window_params = [{transform_indices = @transform_0, window_bounds = array<i64: 512, 4>}, {pipeline_mode = #tpu.pipeline_mode<synchronous>, transform_indices = @transform_1, window_bounds = array<i64: 4, 128>}, {transform_indices = @transform_2, window_bounds = array<i64: 512, 128>}, {transform_indices = @transform_3, window_bounds = array<i64: 1, 2, 128>}]} {
    %c0 = arith.constant 0 : index
    %c0_0 = arith.constant 0 : index
    %0 = vector.load %arg1[%c0, %c0_0] : memref<512x4xbf16, #tpu.memory_space<vmem>>, vector<512x4xbf16>
    %c0_1 = arith.constant 0 : index
    %c0_2 = arith.constant 0 : index
    %1 = vector.load %arg2[%c0_1, %c0_2] : memref<4x128xbf16, #tpu.memory_space<vmem>>, vector<4x128xbf16>
    %cst = arith.constant dense<0.000000e+00> : vector<512x128xf32>
    %2 = tpu.matmul %0, %1, %cst {dimension_numbers = #tpu.dot_dimension_numbers<[1], [0], [0], [1], [0, 0, 1, 1], [], []>} : vector<512x4xbf16>, vector<4x128xbf16>, vector<512x128xf32> -> vector<512x128xf32>
    %3 = arith.truncf %2 : vector<512x128xf32> to vector<512x128xbf16>
    %c0_3 = arith.constant 0 : index
    %c0_4 = arith.constant 0 : index
    %4 = vector.load %arg3[%c0_3, %c0_4] : memref<512x128xbf16, #tpu.memory_space<vmem>>, vector<512x128xbf16>
    tpu.vector_store %arg3[%c0_3, %c0_4], %3 {strides = array<i32>} : memref<512x128xbf16, #tpu.memory_space<vmem>>, vector<512x128xbf16>,
    %cst_5 = arith.constant dense<0.000000e+00> : vector<128xf32>
    %5 = vector.multi_reduction <add>, %2, %cst_5 [0] : vector<512x128xf32> to vector<128xf32>
    %6 = arith.mulf %2, %2 : vector<512x128xf32>
    %cst_6 = arith.constant dense<0.000000e+00> : vector<128xf32>
    %7 = vector.multi_reduction <add>, %6, %cst_6 [0] : vector<512x128xf32> to vector<128xf32>
    %8 = vector.shape_cast %5 : vector<128xf32> to vector<1x128xf32>
    %9 = vector.shape_cast %7 : vector<128xf32> to vector<1x128xf32>
    %10 = tpu.concatenate %8, %9 in 0 : vector<1x128xf32>, vector<1x128xf32> -> vector<2x128xf32>
    %11 = vector.shape_cast %10 : vector<2x128xf32> to vector<1x2x128xf32>
    %c0_7 = arith.constant 0 : index
    %c0_8 = arith.constant 0 : index
    %c0_9 = arith.constant 0 : index
    %12 = vector.load %arg4[%c0_7, %c0_8, %c0_9] : memref<1x2x128xf32, #tpu.memory_space<vmem>>, vector<1x2x128xf32>
    tpu.vector_store %arg4[%c0_7, %c0_8, %c0_9], %11 {strides = array<i32>} : memref<1x2x128xf32, #tpu.memory_space<vmem>>, vector<1x2x128xf32>,
    return
  }
  func.func @transform_0(%arg0: i32) -> (i32, i32) {
    %c0_i32 = arith.constant 0 : i32
    %c0_i32_0 = arith.constant 0 : i32
    return %arg0, %c0_i32 : i32, i32
  }
  func.func @transform_1(%arg0: i32) -> (i32, i32) {
    %c0_i32 = arith.constant 0 : i32
    %c0_i32_0 = arith.constant 0 : i32
    %c0_i32_1 = arith.constant 0 : i32
    return %c0_i32, %c0_i32_0 : i32, i32
  }
  func.func @transform_2(%arg0: i32) -> (i32, i32) {
    %c0_i32 = arith.constant 0 : i32
    %c0_i32_0 = arith.constant 0 : i32
    return %arg0, %c0_i32 : i32, i32
  }
  func.func @transform_3(%arg0: i32) -> (i32, i32, i32) {
    %c0_i32 = arith.constant 0 : i32
    %c0_i32_0 = arith.constant 0 : i32
    %c0_i32_1 = arith.constant 0 : i32
    return %arg0, %c0_i32, %c0_i32_0 : i32, i32, i32
  }
}

module attributes {stable_mosaic.version = 11 : i64} {
  func.func @_mm_stats_kernel(%arg0: i32, %arg1: memref<288x256xbf16, #tpu.memory_space<vmem>>, %arg2: memref<256x256xbf16, #tpu.memory_space<vmem>>, %arg3: memref<288x256xbf16, #tpu.memory_space<vmem>>, %arg4: memref<1x2x256xf32, #tpu.memory_space<vmem>>) attributes {dimension_semantics = [#tpu.dimension_semantics<parallel>], iteration_bounds = array<i64: 1>, scalar_prefetch = 0 : i64, scratch_operands = 0 : i64, tpu.core_type = #tpu.core_type<tc>, window_params = [{transform_indices = @transform_0, window_bounds = array<i64: 288, 256>}, {pipeline_mode = #tpu.pipeline_mode<synchronous>, transform_indices = @transform_1, window_bounds = array<i64: 256, 256>}, {transform_indices = @transform_2, window_bounds = array<i64: 288, 256>}, {transform_indices = @transform_3, window_bounds = array<i64: 1, 2, 256>}]} {
    %c0 = arith.constant 0 : index
    %c0_0 = arith.constant 0 : index
    %0 = vector.load %arg1[%c0, %c0_0] : memref<288x256xbf16, #tpu.memory_space<vmem>>, vector<288x256xbf16>
    %c0_1 = arith.constant 0 : index
    %c0_2 = arith.constant 0 : index
    %1 = vector.load %arg2[%c0_1, %c0_2] : memref<256x256xbf16, #tpu.memory_space<vmem>>, vector<256x256xbf16>
    %cst = arith.constant dense<0.000000e+00> : vector<288x256xf32>
    %2 = tpu.matmul %0, %1, %cst {dimension_numbers = #tpu.dot_dimension_numbers<[1], [0], [0], [1], [0, 0, 1, 1], [], []>} : vector<288x256xbf16>, vector<256x256xbf16>, vector<288x256xf32> -> vector<288x256xf32>
    %3 = arith.truncf %2 : vector<288x256xf32> to vector<288x256xbf16>
    %c0_3 = arith.constant 0 : index
    %c0_4 = arith.constant 0 : index
    %4 = vector.load %arg3[%c0_3, %c0_4] : memref<288x256xbf16, #tpu.memory_space<vmem>>, vector<288x256xbf16>
    tpu.vector_store %arg3[%c0_3, %c0_4], %3 {strides = array<i32>} : memref<288x256xbf16, #tpu.memory_space<vmem>>, vector<288x256xbf16>,
    %cst_5 = arith.constant dense<0.000000e+00> : vector<256xf32>
    %5 = vector.multi_reduction <add>, %2, %cst_5 [0] : vector<288x256xf32> to vector<256xf32>
    %6 = arith.mulf %2, %2 : vector<288x256xf32>
    %cst_6 = arith.constant dense<0.000000e+00> : vector<256xf32>
    %7 = vector.multi_reduction <add>, %6, %cst_6 [0] : vector<288x256xf32> to vector<256xf32>
    %8 = vector.shape_cast %5 : vector<256xf32> to vector<1x256xf32>
    %9 = vector.shape_cast %7 : vector<256xf32> to vector<1x256xf32>
    %10 = tpu.concatenate %8, %9 in 0 : vector<1x256xf32>, vector<1x256xf32> -> vector<2x256xf32>
    %11 = vector.shape_cast %10 : vector<2x256xf32> to vector<1x2x256xf32>
    %c0_7 = arith.constant 0 : index
    %c0_8 = arith.constant 0 : index
    %c0_9 = arith.constant 0 : index
    %12 = vector.load %arg4[%c0_7, %c0_8, %c0_9] : memref<1x2x256xf32, #tpu.memory_space<vmem>>, vector<1x2x256xf32>
    tpu.vector_store %arg4[%c0_7, %c0_8, %c0_9], %11 {strides = array<i32>} : memref<1x2x256xf32, #tpu.memory_space<vmem>>, vector<1x2x256xf32>,
    return
  }
  func.func @transform_0(%arg0: i32) -> (i32, i32) {
    %c0_i32 = arith.constant 0 : i32
    %c0_i32_0 = arith.constant 0 : i32
    return %arg0, %c0_i32 : i32, i32
  }
  func.func @transform_1(%arg0: i32) -> (i32, i32) {
    %c0_i32 = arith.constant 0 : i32
    %c0_i32_0 = arith.constant 0 : i32
    %c0_i32_1 = arith.constant 0 : i32
    return %c0_i32, %c0_i32_0 : i32, i32
  }
  func.func @transform_2(%arg0: i32) -> (i32, i32) {
    %c0_i32 = arith.constant 0 : i32
    %c0_i32_0 = arith.constant 0 : i32
    return %arg0, %c0_i32 : i32, i32
  }
  func.func @transform_3(%arg0: i32) -> (i32, i32, i32) {
    %c0_i32 = arith.constant 0 : i32
    %c0_i32_0 = arith.constant 0 : i32
    %c0_i32_1 = arith.constant 0 : i32
    return %arg0, %c0_i32, %c0_i32_0 : i32, i32, i32
  }
}

module attributes {stable_mosaic.version = 11 : i64} {
  func.func @_bn_relu_kernel(%arg0: i32, %arg1: memref<288x256xbf16, #tpu.memory_space<vmem>>, %arg2: memref<1x256xf32, #tpu.memory_space<vmem>>, %arg3: memref<1x256xf32, #tpu.memory_space<vmem>>, %arg4: memref<288x256xf32, #tpu.memory_space<vmem>>) attributes {dimension_semantics = [#tpu.dimension_semantics<parallel>], iteration_bounds = array<i64: 1>, scalar_prefetch = 0 : i64, scratch_operands = 0 : i64, tpu.core_type = #tpu.core_type<tc>, window_params = [{transform_indices = @transform_0, window_bounds = array<i64: 288, 256>}, {pipeline_mode = #tpu.pipeline_mode<synchronous>, transform_indices = @transform_1, window_bounds = array<i64: 1, 256>}, {pipeline_mode = #tpu.pipeline_mode<synchronous>, transform_indices = @transform_2, window_bounds = array<i64: 1, 256>}, {transform_indices = @transform_3, window_bounds = array<i64: 288, 256>}]} {
    %c0 = arith.constant 0 : index
    %c0_0 = arith.constant 0 : index
    %0 = vector.load %arg1[%c0, %c0_0] : memref<288x256xbf16, #tpu.memory_space<vmem>>, vector<288x256xbf16>
    %1 = arith.extf %0 : vector<288x256xbf16> to vector<288x256xf32>
    %c0_1 = arith.constant 0 : index
    %c0_2 = arith.constant 0 : index
    %2 = vector.load %arg2[%c0_1, %c0_2] : memref<1x256xf32, #tpu.memory_space<vmem>>, vector<1x256xf32>
    %3 = vector.broadcast %2 : vector<1x256xf32> to vector<288x256xf32>
    %4 = arith.mulf %1, %3 : vector<288x256xf32>
    %c0_3 = arith.constant 0 : index
    %c0_4 = arith.constant 0 : index
    %5 = vector.load %arg3[%c0_3, %c0_4] : memref<1x256xf32, #tpu.memory_space<vmem>>, vector<1x256xf32>
    %6 = vector.broadcast %5 : vector<1x256xf32> to vector<288x256xf32>
    %7 = arith.addf %4, %6 : vector<288x256xf32>
    %cst = arith.constant 0.000000e+00 : f32
    %8 = vector.broadcast %cst : f32 to vector<288x256xf32>
    %9 = arith.maximumf %7, %8 : vector<288x256xf32>
    %c0_5 = arith.constant 0 : index
    %c0_6 = arith.constant 0 : index
    %10 = vector.load %arg4[%c0_5, %c0_6] : memref<288x256xf32, #tpu.memory_space<vmem>>, vector<288x256xf32>
    tpu.vector_store %arg4[%c0_5, %c0_6], %9 {strides = array<i32>} : memref<288x256xf32, #tpu.memory_space<vmem>>, vector<288x256xf32>,
    return
  }
  func.func @transform_0(%arg0: i32) -> (i32, i32) {
    %c0_i32 = arith.constant 0 : i32
    %c0_i32_0 = arith.constant 0 : i32
    return %arg0, %c0_i32 : i32, i32
  }
  func.func @transform_1(%arg0: i32) -> (i32, i32) {
    %c0_i32 = arith.constant 0 : i32
    %c0_i32_0 = arith.constant 0 : i32
    %c0_i32_1 = arith.constant 0 : i32
    return %c0_i32, %c0_i32_0 : i32, i32
  }
  func.func @transform_2(%arg0: i32) -> (i32, i32) {
    %c0_i32 = arith.constant 0 : i32
    %c0_i32_0 = arith.constant 0 : i32
    %c0_i32_1 = arith.constant 0 : i32
    return %c0_i32, %c0_i32_0 : i32, i32
  }
  func.func @transform_3(%arg0: i32) -> (i32, i32) {
    %c0_i32 = arith.constant 0 : i32
    %c0_i32_0 = arith.constant 0 : i32
    return %arg0, %c0_i32 : i32, i32
  }
}

module attributes {stable_mosaic.version = 11 : i64} {
  func.func @_add_mm_kernel(%arg0: i32, %arg1: memref<512x128xbf16, #tpu.memory_space<vmem>>, %arg2: memref<512x128xbf16, #tpu.memory_space<vmem>>, %arg3: memref<128x128xbf16, #tpu.memory_space<vmem>>, %arg4: memref<512x128xf32, #tpu.memory_space<vmem>>) attributes {dimension_semantics = [#tpu.dimension_semantics<parallel>], iteration_bounds = array<i64: 1>, scalar_prefetch = 0 : i64, scratch_operands = 0 : i64, tpu.core_type = #tpu.core_type<tc>, window_params = [{transform_indices = @transform_0, window_bounds = array<i64: 512, 128>}, {transform_indices = @transform_1, window_bounds = array<i64: 512, 128>}, {pipeline_mode = #tpu.pipeline_mode<synchronous>, transform_indices = @transform_2, window_bounds = array<i64: 128, 128>}, {transform_indices = @transform_3, window_bounds = array<i64: 512, 128>}]} {
    %c0 = arith.constant 0 : index
    %c0_0 = arith.constant 0 : index
    %0 = vector.load %arg1[%c0, %c0_0] : memref<512x128xbf16, #tpu.memory_space<vmem>>, vector<512x128xbf16>
    %1 = arith.extf %0 : vector<512x128xbf16> to vector<512x128xf32>
    %c0_1 = arith.constant 0 : index
    %c0_2 = arith.constant 0 : index
    %2 = vector.load %arg2[%c0_1, %c0_2] : memref<512x128xbf16, #tpu.memory_space<vmem>>, vector<512x128xbf16>
    %3 = arith.extf %2 : vector<512x128xbf16> to vector<512x128xf32>
    %4 = arith.addf %1, %3 : vector<512x128xf32>
    %5 = arith.truncf %4 : vector<512x128xf32> to vector<512x128xbf16>
    %c0_3 = arith.constant 0 : index
    %c0_4 = arith.constant 0 : index
    %6 = vector.load %arg3[%c0_3, %c0_4] : memref<128x128xbf16, #tpu.memory_space<vmem>>, vector<128x128xbf16>
    %cst = arith.constant dense<0.000000e+00> : vector<512x128xf32>
    %7 = tpu.matmul %5, %6, %cst {dimension_numbers = #tpu.dot_dimension_numbers<[1], [0], [0], [1], [0, 0, 1, 1], [], []>} : vector<512x128xbf16>, vector<128x128xbf16>, vector<512x128xf32> -> vector<512x128xf32>
    %c0_5 = arith.constant 0 : index
    %c0_6 = arith.constant 0 : index
    %8 = vector.load %arg4[%c0_5, %c0_6] : memref<512x128xf32, #tpu.memory_space<vmem>>, vector<512x128xf32>
    tpu.vector_store %arg4[%c0_5, %c0_6], %7 {strides = array<i32>} : memref<512x128xf32, #tpu.memory_space<vmem>>, vector<512x128xf32>,
    return
  }
  func.func @transform_0(%arg0: i32) -> (i32, i32) {
    %c0_i32 = arith.constant 0 : i32
    %c0_i32_0 = arith.constant 0 : i32
    return %arg0, %c0_i32 : i32, i32
  }
  func.func @transform_1(%arg0: i32) -> (i32, i32) {
    %c0_i32 = arith.constant 0 : i32
    %c0_i32_0 = arith.constant 0 : i32
    return %arg0, %c0_i32 : i32, i32
  }
  func.func @transform_2(%arg0: i32) -> (i32, i32) {
    %c0_i32 = arith.constant 0 : i32
    %c0_i32_0 = arith.constant 0 : i32
    %c0_i32_1 = arith.constant 0 : i32
    return %c0_i32, %c0_i32_0 : i32, i32
  }
  func.func @transform_3(%arg0: i32) -> (i32, i32) {
    %c0_i32 = arith.constant 0 : i32
    %c0_i32_0 = arith.constant 0 : i32
    return %arg0, %c0_i32 : i32, i32
  }
}

</mosaic_0001>

<llo_original>
// kernel: spectral_transform_forward.5
$region0: #{spectral_transform_forward.5}
  #allocation0 [shape = 'u32[]', space=smem, size = 0x4, offset = 0x4, fixed_abs, tag = 'smem constant byte address 0x4 - core index']
  #allocation1 [shape = 'u32[144,128]{1,0:T(1,128)}', space=vmem, size = 0x12000, scoped, tag = 'internal scratch']
  %s0 = inlined_call_operand.vmem [shape: bf16[512,4], index: 0, kind: input, shape index: {}]
  %s1 = inlined_call_operand.vmem [shape: bf16[4,128], index: 1, kind: input, shape index: {}]
  %s2 = inlined_call_operand.vmem [shape: bf16[512,128], index: 2, kind: output, shape index: {0}]
  %s3 = inlined_call_operand.vmem [shape: f32[1,2,128], index: 3, kind: output, shape index: {1}]
  %4 = xla_tuple %s2, %s3
  %s5 = sld [smem:[#allocation0]]
  $region26: #{spectral_transform_forward.5} parent=0
    _
  %s7 = ssub.s32 1, %s5
  %s8 = scalar_select 0, %s7, %s5
  // Predicated region
  $region2: #{spectral_transform_forward.5} parent=0 // pred_check
    _
  $region3: #{spectral_transform_forward.5} parent=0 // pred_check_branch
    %10 = sbr.rel (0) target = $region5
  $region4: #{spectral_transform_forward.5} parent=0 // pred_region
    _
  $region5: #{spectral_transform_forward.5} parent=0 // pred_fallthru
    _
  // Predicated region
  $region6: #{spectral_transform_forward.5} parent=0 // pred_check
    _
  $region7: #{spectral_transform_forward.5} parent=0 // pred_check_branch
    %12 = sbr.rel (0) target = $region9
  $region8: #{spectral_transform_forward.5} parent=0 // pred_region
    _
  $region9: #{spectral_transform_forward.5} parent=0 // pred_fallthru
    _
  %v14 = vld [vmem:[%s0] sm:$0xf]
  %v15 = vld [vmem:[%s0 + $0x4] sm:$0xf]
  %v16 = vld [vmem:[%s0 + $0x8] sm:$0xf]
  %v17 = vld [vmem:[%s0 + $0xc] sm:$0xf]
  %v18 = vld [vmem:[%s0 + $0x10] sm:$0xf]
  %v19 = vld [vmem:[%s0 + $0x14] sm:$0xf]
  %v20 = vld [vmem:[%s0 + $0x18] sm:$0xf]
  %v21 = vld [vmem:[%s0 + $0x1c] sm:$0xf]
  %v22 = vld [vmem:[%s0 + $0x20] sm:$0xf]
  %v23 = vld [vmem:[%s0 + $0x24] sm:$0xf]
  %v24 = vld [vmem:[%s0 + $0x28] sm:$0xf]
  %v25 = vld [vmem:[%s0 + $0x2c] sm:$0xf]
  %v26 = vld [vmem:[%s0 + $0x30] sm:$0xf]
  %v27 = vld [vmem:[%s0 + $0x34] sm:$0xf]
  %v28 = vld [vmem:[%s0 + $0x38] sm:$0xf]
  %v29 = vld [vmem:[%s0 + $0x3c] sm:$0xf]
  %v30 = vld [vmem:[%s0 + $0x40] sm:$0xf]
  %v31 = vld [vmem:[%s0 + $0x44] sm:$0xf]
  %v32 = vld [vmem:[%s0 + $0x48] sm:$0xf]
  %v33 = vld [vmem:[%s0 + $0x4c] sm:$0xf]
  %v34 = vld [vmem:[%s0 + $0x50] sm:$0xf]
  %v35 = vld [vmem:[%s0 + $0x54] sm:$0xf]
  %v36 = vld [vmem:[%s0 + $0x58] sm:$0xf]
  %v37 = vld [vmem:[%s0 + $0x5c] sm:$0xf]
  %v38 = vld [vmem:[%s0 + $0x60] sm:$0xf]
  %v39 = vld [vmem:[%s0 + $0x64] sm:$0xf]
  %v40 = vld [vmem:[%s0 + $0x68] sm:$0xf]
  %v41 = vld [vmem:[%s0 + $0x6c] sm:$0xf]
  %v42 = vld [vmem:[%s0 + $0x70] sm:$0xf]
  %v43 = vld [vmem:[%s0 + $0x74] sm:$0xf]
  %v44 = vld [vmem:[%s0 + $0x78] sm:$0xf]
  %v45 = vld [vmem:[%s0 + $0x7c] sm:$0xf]
  %v46 = vld [vmem:[%s0 + $0x80] sm:$0xf]
  %v47 = vld [vmem:[%s0 + $0x84] sm:$0xf]
  %v48 = vld [vmem:[%s0 + $0x88] sm:$0xf]
  %v49 = vld [vmem:[%s0 + $0x8c] sm:$0xf]
  %v50 = vld [vmem:[%s0 + $0x90] sm:$0xf]
  %v51 = vld [vmem:[%s0 + $0x94] sm:$0xf]
  %v52 = vld [vmem:[%s0 + $0x98] sm:$0xf]
  %v53 = vld [vmem:[%s0 + $0x9c] sm:$0xf]
  %v54 = vld [vmem:[%s0 + $0xa0] sm:$0xf]
  %v55 = vld [vmem:[%s0 + $0xa4] sm:$0xf]
  %v56 = vld [vmem:[%s0 + $0xa8] sm:$0xf]
  %v57 = vld [vmem:[%s0 + $0xac] sm:$0xf]
  %v58 = vld [vmem:[%s0 + $0xb0] sm:$0xf]
  %v59 = vld [vmem:[%s0 + $0xb4] sm:$0xf]
  %v60 = vld [vmem:[%s0 + $0xb8] sm:$0xf]
  %v61 = vld [vmem:[%s0 + $0xbc] sm:$0xf]
  %v62 = vld [vmem:[%s0 + $0xc0] sm:$0xf]
  %v63 = vld [vmem:[%s0 + $0xc4] sm:$0xf]
  %v64 = vld [vmem:[%s0 + $0xc8] sm:$0xf]
  %v65 = vld [vmem:[%s0 + $0xcc] sm:$0xf]
  %v66 = vld [vmem:[%s0 + $0xd0] sm:$0xf]
  %v67 = vld [vmem:[%s0 + $0xd4] sm:$0xf]
  %v68 = vld [vmem:[%s0 + $0xd8] sm:$0xf]
  %v69 = vld [vmem:[%s0 + $0xdc] sm:$0xf]
  %v70 = vld [vmem:[%s0 + $0xe0] sm:$0xf]
  %v71 = vld [vmem:[%s0 + $0xe4] sm:$0xf]
  %v72 = vld [vmem:[%s0 + $0xe8] sm:$0xf]
  %v73 = vld [vmem:[%s0 + $0xec] sm:$0xf]
  %v74 = vld [vmem:[%s0 + $0xf0] sm:$0xf]
  %v75 = vld [vmem:[%s0 + $0xf4] sm:$0xf]
  %v76 = vld [vmem:[%s0 + $0xf8] sm:$0xf]
  %v77 = vld [vmem:[%s0 + $0xfc] sm:$0xf]
  %v78 = vld [vmem:[%s1] sm:$0x3]
  %v143 = vunpack.c.l.b16 %v14
  %v144 = vunpack.c.l.b16 %v15
  %v145 = vunpack.c.l.b16 %v16
  %v146 = vunpack.c.l.b16 %v17
  %v147 = vunpack.c.l.b16 %v18
  %v148 = vunpack.c.l.b16 %v19
  %v149 = vunpack.c.l.b16 %v20
  %v150 = vunpack.c.l.b16 %v21
  %v151 = vunpack.c.l.b16 %v22
  %v152 = vunpack.c.l.b16 %v23
  %v153 = vunpack.c.l.b16 %v24
  %v154 = vunpack.c.l.b16 %v25
  %v155 = vunpack.c.l.b16 %v26
  %v156 = vunpack.c.l.b16 %v27
  %v157 = vunpack.c.l.b16 %v28
  %v158 = vunpack.c.l.b16 %v29
  %v159 = vunpack.c.l.b16 %v30
  %v160 = vunpack.c.l.b16 %v31
  %v161 = vunpack.c.l.b16 %v32
  %v162 = vunpack.c.l.b16 %v33
  %v163 = vunpack.c.l.b16 %v34
  %v164 = vunpack.c.l.b16 %v35
  %v165 = vunpack.c.l.b16 %v36
  %v166 = vunpack.c.l.b16 %v37
  %v167 = vunpack.c.l.b16 %v38
  %v168 = vunpack.c.l.b16 %v39
  %v169 = vunpack.c.l.b16 %v40
  %v170 = vunpack.c.l.b16 %v41
  %v171 = vunpack.c.l.b16 %v42
  %v172 = vunpack.c.l.b16 %v43
  %v173 = vunpack.c.l.b16 %v44
  %v174 = vunpack.c.l.b16 %v45
  %v175 = vunpack.c.l.b16 %v46
  %v176 = vunpack.c.l.b16 %v47
  %v177 = vunpack.c.l.b16 %v48
  %v178 = vunpack.c.l.b16 %v49
  %v179 = vunpack.c.l.b16 %v50
  %v180 = vunpack.c.l.b16 %v51
  %v181 = vunpack.c.l.b16 %v52
  %v182 = vunpack.c.l.b16 %v53
  %v183 = vunpack.c.l.b16 %v54
  %v184 = vunpack.c.l.b16 %v55
  %v185 = vunpack.c.l.b16 %v56
  %v186 = vunpack.c.l.b16 %v57
  %v187 = vunpack.c.l.b16 %v58
  %v188 = vunpack.c.l.b16 %v59
  %v189 = vunpack.c.l.b16 %v60
  %v190 = vunpack.c.l.b16 %v61
  %v191 = vunpack.c.l.b16 %v62
  %v192 = vunpack.c.l.b16 %v63
  %v193 = vunpack.c.l.b16 %v64
  %v194 = vunpack.c.l.b16 %v65
  %v195 = vunpack.c.l.b16 %v66
  %v196 = vunpack.c.l.b16 %v67
  %v197 = vunpack.c.l.b16 %v68
  %v198 = vunpack.c.l.b16 %v69
  %v199 = vunpack.c.l.b16 %v70
  %v200 = vunpack.c.l.b16 %v71
  %v201 = vunpack.c.l.b16 %v72
  %v202 = vunpack.c.l.b16 %v73
  %v203 = vunpack.c.l.b16 %v74
  %v204 = vunpack.c.l.b16 %v75
  %v205 = vunpack.c.l.b16 %v76
  %v206 = vunpack.c.l.b16 %v77
  %v207 = vpack.c.b16 %v144, %v143
  %v208 = vpack.c.b16 %v146, %v145
  %v209 = vpack.c.b16 %v148, %v147
  %v210 = vpack.c.b16 %v150, %v149
  %v211 = vpack.c.b16 %v152, %v151
  %v212 = vpack.c.b16 %v154, %v153
  %v213 = vpack.c.b16 %v156, %v155
  %v214 = vpack.c.b16 %v158, %v157
  %v215 = vpack.c.b16 %v160, %v159
  %v216 = vpack.c.b16 %v162, %v161
  %v217 = vpack.c.b16 %v164, %v163
  %v218 = vpack.c.b16 %v166, %v165
  %v219 = vpack.c.b16 %v168, %v167
  %v220 = vpack.c.b16 %v170, %v169
  %v221 = vpack.c.b16 %v172, %v171
  %v222 = vpack.c.b16 %v174, %v173
  %v223 = vpack.c.b16 %v176, %v175
  %v224 = vpack.c.b16 %v178, %v177
  %v225 = vpack.c.b16 %v180, %v179
  %v226 = vpack.c.b16 %v182, %v181
  %v227 = vpack.c.b16 %v184, %v183
  %v228 = vpack.c.b16 %v186, %v185
  %v229 = vpack.c.b16 %v188, %v187
  %v230 = vpack.c.b16 %v190, %v189
  %v231 = vpack.c.b16 %v192, %v191
  %v232 = vpack.c.b16 %v194, %v193
  %v233 = vpack.c.b16 %v196, %v195
  %v234 = vpack.c.b16 %v198, %v197
  %v235 = vpack.c.b16 %v200, %v199
  %v236 = vpack.c.b16 %v202, %v201
  %v237 = vpack.c.b16 %v204, %v203
  %v238 = vpack.c.b16 %v206, %v205
  %vm239 = vcmask 31744
  %v241 = vsel %vm239, %v207, 0
  %v244 = vsel %vm239, %v208, 0
  %v247 = vsel %vm239, %v209, 0
  %v250 = vsel %vm239, %v210, 0
  %v253 = vsel %vm239, %v211, 0
  %v256 = vsel %vm239, %v212, 0
  %v259 = vsel %vm239, %v213, 0
  %v262 = vsel %vm239, %v214, 0
  %v265 = vsel %vm239, %v215, 0
  %v268 = vsel %vm239, %v216, 0
  %v271 = vsel %vm239, %v217, 0
  %v274 = vsel %vm239, %v218, 0
  %v277 = vsel %vm239, %v219, 0
  %v280 = vsel %vm239, %v220, 0
  %v283 = vsel %vm239, %v221, 0
  %v286 = vsel %vm239, %v222, 0
  %v289 = vsel %vm239, %v223, 0
  %v292 = vsel %vm239, %v224, 0
  %v295 = vsel %vm239, %v225, 0
  %v298 = vsel %vm239, %v226, 0
  %v301 = vsel %vm239, %v227, 0
  %v304 = vsel %vm239, %v228, 0
  %v307 = vsel %vm239, %v229, 0
  %v310 = vsel %vm239, %v230, 0
  %v313 = vsel %vm239, %v231, 0
  %v316 = vsel %vm239, %v232, 0
  %v319 = vsel %vm239, %v233, 0
  %v322 = vsel %vm239, %v234, 0
  %v325 = vsel %vm239, %v235, 0
  %v328 = vsel %vm239, %v236, 0
  %v331 = vsel %vm239, %v237, 0
  %v334 = vsel %vm239, %v238, 0
  %vm336 = vcmask 1041408
  %v338 = vsel %vm336, %v78, 0
  %340 = vmatprep.subr.bf16.mxu0 0
  %341 = vmatpush1.bf16.msra.mxu0 %v338
  %342 = vmatprep.subr.bf16.mxu0 0
  %343 = vmatpush1.bf16.msra.mxu0 0
  %344 = vmatprep.subr.bf16.mxu0 0
  %345 = vmatpush1.bf16.msra.mxu0 0
  %346 = vmatprep.subr.bf16.mxu0 0
  %347 = vmatpush1.bf16.msra.mxu0 0
  %348 = vmatprep.subr.bf16.mxu0 0
  %349 = vmatpush1.bf16.msra.mxu0 0
  %350 = vmatprep.subr.bf16.mxu0 0
  %351 = vmatpush1.bf16.msra.mxu0 0
  %352 = vmatprep.subr.bf16.mxu0 0
  %353 = vmatpush1.bf16.msra.mxu0 0
  %354 = vmatprep.subr.bf16.mxu0 0
  %355 = vmatpush1.bf16.msra.mxu0 0
  %356 = vmatprep.subr.bf16.mxu0 0
  %357 = vmatpush1.bf16.msra.mxu0 0
  %358 = vmatprep.subr.bf16.mxu0 0
  %359 = vmatpush1.bf16.msra.mxu0 0
  %360 = vmatprep.subr.bf16.mxu0 0
  %361 = vmatpush1.bf16.msra.mxu0 0
  %362 = vmatprep.subr.bf16.mxu0 0
  %363 = vmatpush1.bf16.msra.mxu0 0
  %364 = vmatprep.subr.bf16.mxu0 0
  %365 = vmatpush1.bf16.msra.mxu0 0
  %366 = vmatprep.subr.bf16.mxu0 0
  %367 = vmatpush1.bf16.msra.mxu0 0
  %368 = vmatprep.subr.bf16.mxu0 0
  %369 = vmatpush1.bf16.msra.mxu0 0
  %370 = vmatprep.subr.bf16.mxu0 0
  %371 = vmatpush1.bf16.msra.mxu0 0
  %372 = vmatprep.mubr.bf16.mxu0 0
  %373 = vmatmul.mubr.bf16.gmra.mrb[0].mxu0 %v241
  %v374 = vpop.f32.mrb[0].mxu0
  %v375 = vadd.f32 0.0, %v374
  %v376 = vpop.f32.mrb[0].mxu0
  %v377 = vpop.f32.mrb[0].mxu0
  %v378 = vadd.f32 0.0, %v377
  %v379 = vpop.f32.mrb[0].mxu0
  %380 = vmatprep.mubr.bf16.mxu0 0
  %381 = vmatmul.mubr.bf16.gmra.mrb[0].mxu0 %v244
  %v382 = vpop.f32.mrb[0].mxu0
  %v383 = vadd.f32 0.0, %v382
  %v384 = vpop.f32.mrb[0].mxu0
  %v385 = vpop.f32.mrb[0].mxu0
  %v386 = vadd.f32 0.0, %v385
  %v387 = vpop.f32.mrb[0].mxu0
  %388 = vmatprep.mubr.bf16.mxu0 0
  %389 = vmatmul.mubr.bf16.gmra.mrb[0].mxu0 %v247
  %v390 = vpop.f32.mrb[0].mxu0
  %v391 = vadd.f32 0.0, %v390
  %v392 = vpop.f32.mrb[0].mxu0
  %v393 = vpop.f32.mrb[0].mxu0
  %v394 = vadd.f32 0.0, %v393
  %v395 = vpop.f32.mrb[0].mxu0
  %396 = vmatprep.mubr.bf16.mxu0 0
  %397 = vmatmul.mubr.bf16.gmra.mrb[0].mxu0 %v250
  %v398 = vpop.f32.mrb[0].mxu0
  %v399 = vadd.f32 0.0, %v398
  %v400 = vpop.f32.mrb[0].mxu0
  %v401 = vpop.f32.mrb[0].mxu0
  %v402 = vadd.f32 0.0, %v401
  %v403 = vpop.f32.mrb[0].mxu0
  %404 = vmatprep.mubr.bf16.mxu0 0
  %405 = vmatmul.mubr.bf16.gmra.mrb[0].mxu0 %v253
  %v406 = vpop.f32.mrb[0].mxu0
  %v407 = vadd.f32 0.0, %v406
  %v408 = vpop.f32.mrb[0].mxu0
  %v409 = vpop.f32.mrb[0].mxu0
  %v410 = vadd.f32 0.0, %v409
  %v411 = vpop.f32.mrb[0].mxu0
  %412 = vmatprep.mubr.bf16.mxu0 0
  %413 = vmatmul.mubr.bf16.gmra.mrb[0].mxu0 %v256
  %v414 = vpop.f32.mrb[0].mxu0
  %v415 = vadd.f32 0.0, %v414
  %v416 = vpop.f32.mrb[0].mxu0
  %v417 = vpop.f32.mrb[0].mxu0
  %v418 = vadd.f32 0.0, %v417
  %v419 = vpop.f32.mrb[0].mxu0
  %420 = vmatprep.mubr.bf16.mxu0 0
  %421 = vmatmul.mubr.bf16.gmra.mrb[0].mxu0 %v259
  %v422 = vpop.f32.mrb[0].mxu0
  %v423 = vadd.f32 0.0, %v422
  %v424 = vpop.f32.mrb[0].mxu0
  %v425 = vpop.f32.mrb[0].mxu0
  %v426 = vadd.f32 0.0, %v425
  %v427 = vpop.f32.mrb[0].mxu0
  %428 = vmatprep.mubr.bf16.mxu0 0
  %429 = vmatmul.mubr.bf16.gmra.mrb[0].mxu0 %v262
  %v430 = vpop.f32.mrb[0].mxu0
  %v431 = vadd.f32 0.0, %v430
  %v432 = vpop.f32.mrb[0].mxu0
  %v433 = vpop.f32.mrb[0].mxu0
  %v434 = vadd.f32 0.0, %v433
  %v435 = vpop.f32.mrb[0].mxu0
  %436 = vmatprep.mubr.bf16.mxu0 0
  %437 = vmatmul.mubr.bf16.gmra.mrb[0].mxu0 %v265
  %v438 = vpop.f32.mrb[0].mxu0
  %v439 = vadd.f32 0.0, %v438
  %v440 = vpop.f32.mrb[0].mxu0
  %v441 = vpop.f32.mrb[0].mxu0
  %v442 = vadd.f32 0.0, %v441
  %v443 = vpop.f32.mrb[0].mxu0
  %444 = vmatprep.mubr.bf16.mxu0 0
  %445 = vmatmul.mubr.bf16.gmra.mrb[0].mxu0 %v268
  %v446 = vpop.f32.mrb[0].mxu0
  %v447 = vadd.f32 0.0, %v446
  %v448 = vpop.f32.mrb[0].mxu0
  %v449 = vpop.f32.mrb[0].mxu0
  %v450 = vadd.f32 0.0, %v449
  %v451 = vpop.f32.mrb[0].mxu0
  %452 = vmatprep.mubr.bf16.mxu0 0
  %453 = vmatmul.mubr.bf16.gmra.mrb[0].mxu0 %v271
  %v454 = vpop.f32.mrb[0].mxu0
  %v455 = vadd.f32 0.0, %v454
  %v456 = vpop.f32.mrb[0].mxu0
  %v457 = vpop.f32.mrb[0].mxu0
  %v458 = vadd.f32 0.0, %v457
  %v459 = vpop.f32.mrb[0].mxu0
  %460 = vmatprep.mubr.bf16.mxu0 0
  %461 = vmatmul.mubr.bf16.gmra.mrb[0].mxu0 %v274
  %v462 = vpop.f32.mrb[0].mxu0
  %v463 = vadd.f32 0.0, %v462
  %v464 = vpop.f32.mrb[0].mxu0
  %v465 = vpop.f32.mrb[0].mxu0
  %v466 = vadd.f32 0.0, %v465
  %v467 = vpop.f32.mrb[0].mxu0
  %468 = vmatprep.mubr.bf16.mxu0 0
  %469 = vmatmul.mubr.bf16.gmra.mrb[0].mxu0 %v277
  %v470 = vpop.f32.mrb[0].mxu0
  %v471 = vadd.f32 0.0, %v470
  %v472 = vpop.f32.mrb[0].mxu0
  %v473 = vpop.f32.mrb[0].mxu0
  %v474 = vadd.f32 0.0, %v473
  %v475 = vpop.f32.mrb[0].mxu0
  %476 = vmatprep.mubr.bf16.mxu0 0
  %477 = vmatmul.mubr.bf16.gmra.mrb[0].mxu0 %v280
  %v478 = vpop.f32.mrb[0].mxu0
  %v479 = vadd.f32 0.0, %v478
  %v480 = vpop.f32.mrb[0].mxu0
  %v481 = vpop.f32.mrb[0].mxu0
  %v482 = vadd.f32 0.0, %v481
  %v483 = vpop.f32.mrb[0].mxu0
  %484 = vmatprep.mubr.bf16.mxu0 0
  %485 = vmatmul.mubr.bf16.gmra.mrb[0].mxu0 %v283
  %v486 = vpop.f32.mrb[0].mxu0
  %v487 = vadd.f32 0.0, %v486
  %v488 = vpop.f32.mrb[0].mxu0
  %v489 = vpop.f32.mrb[0].mxu0
  %v490 = vadd.f32 0.0, %v489
  %v491 = vpop.f32.mrb[0].mxu0
  %492 = vmatprep.mubr.bf16.mxu0 0
  %493 = vmatmul.mubr.bf16.gmra.mrb[0].mxu0 %v286
  %v494 = vpop.f32.mrb[0].mxu0
  %v495 = vadd.f32 0.0, %v494
  %v496 = vpop.f32.mrb[0].mxu0
  %v497 = vpop.f32.mrb[0].mxu0
  %v498 = vadd.f32 0.0, %v497
  %v499 = vpop.f32.mrb[0].mxu0
  %500 = vmatprep.mubr.bf16.mxu0 0
  %501 = vmatmul.mubr.bf16.gmra.mrb[0].mxu0 %v289
  %v502 = vpop.f32.mrb[0].mxu0
  %v503 = vadd.f32 0.0, %v502
  %v504 = vpop.f32.mrb[0].mxu0
  %v505 = vpop.f32.mrb[0].mxu0
  %v506 = vadd.f32 0.0, %v505
  %v507 = vpop.f32.mrb[0].mxu0
  %508 = vmatprep.mubr.bf16.mxu0 0
  %509 = vmatmul.mubr.bf16.gmra.mrb[0].mxu0 %v292
  %v510 = vpop.f32.mrb[0].mxu0
  %v511 = vadd.f32 0.0, %v510
  %v512 = vpop.f32.mrb[0].mxu0
  %v513 = vpop.f32.mrb[0].mxu0
  %v514 = vadd.f32 0.0, %v513
  %v515 = vpop.f32.mrb[0].mxu0
  %516 = vmatprep.mubr.bf16.mxu0 0
  %517 = vmatmul.mubr.bf16.gmra.mrb[0].mxu0 %v295
  %v518 = vpop.f32.mrb[0].mxu0
  %v519 = vadd.f32 0.0, %v518
  %v520 = vpop.f32.mrb[0].mxu0
  %v521 = vpop.f32.mrb[0].mxu0
  %v522 = vadd.f32 0.0, %v521
  %v523 = vpop.f32.mrb[0].mxu0
  %524 = vmatprep.mubr.bf16.mxu0 0
  %525 = vmatmul.mubr.bf16.gmra.mrb[0].mxu0 %v298
  %v526 = vpop.f32.mrb[0].mxu0
  %v527 = vadd.f32 0.0, %v526
  %v528 = vpop.f32.mrb[0].mxu0
  %v529 = vpop.f32.mrb[0].mxu0
  %v530 = vadd.f32 0.0, %v529
  %v531 = vpop.f32.mrb[0].mxu0
  %532 = vmatprep.mubr.bf16.mxu0 0
  %533 = vmatmul.mubr.bf16.gmra.mrb[0].mxu0 %v301
  %v534 = vpop.f32.mrb[0].mxu0
  %v535 = vadd.f32 0.0, %v534
  %v536 = vpop.f32.mrb[0].mxu0
  %v537 = vpop.f32.mrb[0].mxu0
  %v538 = vadd.f32 0.0, %v537
  %v539 = vpop.f32.mrb[0].mxu0
  %540 = vmatprep.mubr.bf16.mxu0 0
  %541 = vmatmul.mubr.bf16.gmra.mrb[0].mxu0 %v304
  %v542 = vpop.f32.mrb[0].mxu0
  %v543 = vadd.f32 0.0, %v542
  %v544 = vpop.f32.mrb[0].mxu0
  %v545 = vpop.f32.mrb[0].mxu0
  %v546 = vadd.f32 0.0, %v545
  %v547 = vpop.f32.mrb[0].mxu0
  %548 = vmatprep.mubr.bf16.mxu0 0
  %549 = vmatmul.mubr.bf16.gmra.mrb[0].mxu0 %v307
  %v550 = vpop.f32.mrb[0].mxu0
  %v551 = vadd.f32 0.0, %v550
  %v552 = vpop.f32.mrb[0].mxu0
  %v553 = vpop.f32.mrb[0].mxu0
  %v554 = vadd.f32 0.0, %v553
  %v555 = vpop.f32.mrb[0].mxu0
  %556 = vmatprep.mubr.bf16.mxu0 0
  %557 = vmatmul.mubr.bf16.gmra.mrb[0].mxu0 %v310
  %v558 = vpop.f32.mrb[0].mxu0
  %v559 = vadd.f32 0.0, %v558
  %v560 = vpop.f32.mrb[0].mxu0
  %v561 = vpop.f32.mrb[0].mxu0
  %v562 = vadd.f32 0.0, %v561
  %v563 = vpop.f32.mrb[0].mxu0
  %564 = vmatprep.mubr.bf16.mxu0 0
  %565 = vmatmul.mubr.bf16.gmra.mrb[0].mxu0 %v313
  %v566 = vpop.f32.mrb[0].mxu0
  %v567 = vadd.f32 0.0, %v566
  %v568 = vpop.f32.mrb[0].mxu0
  %v569 = vpop.f32.mrb[0].mxu0
  %v570 = vadd.f32 0.0, %v569
  %v571 = vpop.f32.mrb[0].mxu0
  %572 = vmatprep.mubr.bf16.mxu0 0
  %573 = vmatmul.mubr.bf16.gmra.mrb[0].mxu0 %v316
  %v574 = vpop.f32.mrb[0].mxu0
  %v575 = vadd.f32 0.0, %v574
  %v576 = vpop.f32.mrb[0].mxu0
  %v577 = vpop.f32.mrb[0].mxu0
  %v578 = vadd.f32 0.0, %v577
  %v579 = vpop.f32.mrb[0].mxu0
  %580 = vmatprep.mubr.bf16.mxu0 0
  %581 = vmatmul.mubr.bf16.gmra.mrb[0].mxu0 %v319
  %v582 = vpop.f32.mrb[0].mxu0
  %v583 = vadd.f32 0.0, %v582
  %v584 = vpop.f32.mrb[0].mxu0
  %v585 = vpop.f32.mrb[0].mxu0
  %v586 = vadd.f32 0.0, %v585
  %v587 = vpop.f32.mrb[0].mxu0
  %588 = vmatprep.mubr.bf16.mxu0 0
  %589 = vmatmul.mubr.bf16.gmra.mrb[0].mxu0 %v322
  %v590 = vpop.f32.mrb[0].mxu0
  %v591 = vadd.f32 0.0, %v590
  %v592 = vpop.f32.mrb[0].mxu0
  %v593 = vpop.f32.mrb[0].mxu0
  %v594 = vadd.f32 0.0, %v593
  %v595 = vpop.f32.mrb[0].mxu0
  %596 = vmatprep.mubr.bf16.mxu0 0
  %597 = vmatmul.mubr.bf16.gmra.mrb[0].mxu0 %v325
  %v598 = vpop.f32.mrb[0].mxu0
  %v599 = vadd.f32 0.0, %v598
  %v600 = vpop.f32.mrb[0].mxu0
  %v601 = vpop.f32.mrb[0].mxu0
  %v602 = vadd.f32 0.0, %v601
  %v603 = vpop.f32.mrb[0].mxu0
  %604 = vmatprep.mubr.bf16.mxu0 0
  %605 = vmatmul.mubr.bf16.gmra.mrb[0].mxu0 %v328
  %v606 = vpop.f32.mrb[0].mxu0
  %v607 = vadd.f32 0.0, %v606
  %v608 = vpop.f32.mrb[0].mxu0
  %v609 = vpop.f32.mrb[0].mxu0
  %v610 = vadd.f32 0.0, %v609
  %v611 = vpop.f32.mrb[0].mxu0
  %612 = vmatprep.mubr.bf16.mxu0 0
  %613 = vmatmul.mubr.bf16.gmra.mrb[0].mxu0 %v331
  %v614 = vpop.f32.mrb[0].mxu0
  %v615 = vadd.f32 0.0, %v614
  %v616 = vpop.f32.mrb[0].mxu0
  %v617 = vpop.f32.mrb[0].mxu0
  %v618 = vadd.f32 0.0, %v617
  %v619 = vpop.f32.mrb[0].mxu0
  %620 = vmatprep.mubr.bf16.mxu0 0
  %621 = vmatmul.mubr.bf16.gmra.mrb[0].mxu0 %v334
  %v622 = vpop.f32.mrb[0].mxu0
  %v623 = vadd.f32 0.0, %v622
  %v624 = vpop.f32.mrb[0].mxu0
  %v625 = vpop.f32.mrb[0].mxu0
  %v626 = vadd.f32 0.0, %v625
  %v627 = vpop.f32.mrb[0].mxu0
  %628 = vdwg.mxu0
  %v629 = vpack.c.bf16 %v378, %v375
  %v630 = vpack.c.bf16 %v386, %v383
  %v631 = vpack.c.bf16 %v394, %v391
  %v632 = vpack.c.bf16 %v402, %v399
  %v633 = vpack.c.bf16 %v410, %v407
  %v634 = vpack.c.bf16 %v418, %v415
  %v635 = vpack.c.bf16 %v426, %v423
  %v636 = vpack.c.bf16 %v434, %v431
  %v637 = vpack.c.bf16 %v442, %v439
  %v638 = vpack.c.bf16 %v450, %v447
  %v639 = vpack.c.bf16 %v458, %v455
  %v640 = vpack.c.bf16 %v466, %v463
  %v641 = vpack.c.bf16 %v474, %v471
  %v642 = vpack.c.bf16 %v482, %v479
  %v643 = vpack.c.bf16 %v490, %v487
  %v644 = vpack.c.bf16 %v498, %v495
  %v645 = vpack.c.bf16 %v506, %v503
  %v646 = vpack.c.bf16 %v514, %v511
  %v647 = vpack.c.bf16 %v522, %v519
  %v648 = vpack.c.bf16 %v530, %v527
  %v649 = vpack.c.bf16 %v538, %v535
  %v650 = vpack.c.bf16 %v546, %v543
  %v651 = vpack.c.bf16 %v554, %v551
  %v652 = vpack.c.bf16 %v562, %v559
  %v653 = vpack.c.bf16 %v570, %v567
  %v654 = vpack.c.bf16 %v578, %v575
  %v655 = vpack.c.bf16 %v586, %v583
  %v656 = vpack.c.bf16 %v594, %v591
  %v657 = vpack.c.bf16 %v602, %v599
  %v658 = vpack.c.bf16 %v610, %v607
  %v659 = vpack.c.bf16 %v618, %v615
  %v660 = vpack.c.bf16 %v626, %v623
  %v693 = vunpack.c.l.b16 %v629
  %v694 = vunpack.c.h.b16 %v629
  %v695 = vunpack.c.l.b16 %v630
  %v696 = vunpack.c.h.b16 %v630
  %v697 = vunpack.c.l.b16 %v631
  %v698 = vunpack.c.h.b16 %v631
  %v699 = vunpack.c.l.b16 %v632
  %v700 = vunpack.c.h.b16 %v632
  %v701 = vunpack.c.l.b16 %v633
  %v702 = vunpack.c.h.b16 %v633
  %v703 = vunpack.c.l.b16 %v634
  %v704 = vunpack.c.h.b16 %v634
  %v705 = vunpack.c.l.b16 %v635
  %v706 = vunpack.c.h.b16 %v635
  %v707 = vunpack.c.l.b16 %v636
  %v708 = vunpack.c.h.b16 %v636
  %v709 = vunpack.c.l.b16 %v637
  %v710 = vunpack.c.h.b16 %v637
  %v711 = vunpack.c.l.b16 %v638
  %v712 = vunpack.c.h.b16 %v638
  %v713 = vunpack.c.l.b16 %v639
  %v714 = vunpack.c.h.b16 %v639
  %v715 = vunpack.c.l.b16 %v640
  %v716 = vunpack.c.h.b16 %v640
  %v717 = vunpack.c.l.b16 %v641
  %v718 = vunpack.c.h.b16 %v641
  %v719 = vunpack.c.l.b16 %v642
  %v720 = vunpack.c.h.b16 %v642
  %v721 = vunpack.c.l.b16 %v643
  %v722 = vunpack.c.h.b16 %v643
  %v723 = vunpack.c.l.b16 %v644
  %v724 = vunpack.c.h.b16 %v644
  %v725 = vunpack.c.l.b16 %v645
  %v726 = vunpack.c.h.b16 %v645
  %v727 = vunpack.c.l.b16 %v646
  %v728 = vunpack.c.h.b16 %v646
  %v729 = vunpack.c.l.b16 %v647
  %v730 = vunpack.c.h.b16 %v647
  %v731 = vunpack.c.l.b16 %v648
  %v732 = vunpack.c.h.b16 %v648
  %v733 = vunpack.c.l.b16 %v649
  %v734 = vunpack.c.h.b16 %v649
  %v735 = vunpack.c.l.b16 %v650
  %v736 = vunpack.c.h.b16 %v650
  %v737 = vunpack.c.l.b16 %v651
  %v738 = vunpack.c.h.b16 %v651
  %v739 = vunpack.c.l.b16 %v652
  %v740 = vunpack.c.h.b16 %v652
  %v741 = vunpack.c.l.b16 %v653
  %v742 = vunpack.c.h.b16 %v653
  %v743 = vunpack.c.l.b16 %v654
  %v744 = vunpack.c.h.b16 %v654
  %v745 = vunpack.c.l.b16 %v655
  %v746 = vunpack.c.h.b16 %v655
  %v747 = vunpack.c.l.b16 %v656
  %v748 = vunpack.c.h.b16 %v656
  %v749 = vunpack.c.l.b16 %v657
  %v750 = vunpack.c.h.b16 %v657
  %v751 = vunpack.c.l.b16 %v658
  %v752 = vunpack.c.h.b16 %v658
  %v753 = vunpack.c.l.b16 %v659
  %v754 = vunpack.c.h.b16 %v659
  %v755 = vunpack.c.l.b16 %v660
  %v756 = vunpack.c.h.b16 %v660
  %v757 = vpack.c.b16 %v693, %v693
  %v758 = vpack.c.b16 %v694, %v694
  %v759 = vpack.c.b16 %v695, %v695
  %v760 = vpack.c.b16 %v696, %v696
  %v761 = vpack.c.b16 %v697, %v697
  %v762 = vpack.c.b16 %v698, %v698
  %v763 = vpack.c.b16 %v699, %v699
  %v764 = vpack.c.b16 %v700, %v700
  %v765 = vpack.c.b16 %v701, %v701
  %v766 = vpack.c.b16 %v702, %v702
  %v767 = vpack.c.b16 %v703, %v703
  %v768 = vpack.c.b16 %v704, %v704
  %v769 = vpack.c.b16 %v705, %v705
  %v770 = vpack.c.b16 %v706, %v706
  %v771 = vpack.c.b16 %v707, %v707
  %v772 = vpack.c.b16 %v708, %v708
  %v773 = vpack.c.b16 %v709, %v709
  %v774 = vpack.c.b16 %v710, %v710
  %v775 = vpack.c.b16 %v711, %v711
  %v776 = vpack.c.b16 %v712, %v712
  %v777 = vpack.c.b16 %v713, %v713
  %v778 = vpack.c.b16 %v714, %v714
  %v779 = vpack.c.b16 %v715, %v715
  %v780 = vpack.c.b16 %v716, %v716
  %v781 = vpack.c.b16 %v717, %v717
  %v782 = vpack.c.b16 %v718, %v718
  %v783 = vpack.c.b16 %v719, %v719
  %v784 = vpack.c.b16 %v720, %v720
  %v785 = vpack.c.b16 %v721, %v721
  %v786 = vpack.c.b16 %v722, %v722
  %v787 = vpack.c.b16 %v723, %v723
  %v788 = vpack.c.b16 %v724, %v724
  %v789 = vpack.c.b16 %v725, %v725
  %v790 = vpack.c.b16 %v726, %v726
  %v791 = vpack.c.b16 %v727, %v727
  %v792 = vpack.c.b16 %v728, %v728
  %v793 = vpack.c.b16 %v729, %v729
  %v794 = vpack.c.b16 %v730, %v730
  %v795 = vpack.c.b16 %v731, %v731
  %v796 = vpack.c.b16 %v732, %v732
  %v797 = vpack.c.b16 %v733, %v733
  %v798 = vpack.c.b16 %v734, %v734
  %v799 = vpack.c.b16 %v735, %v735
  %v800 = vpack.c.b16 %v736, %v736
  %v801 = vpack.c.b16 %v737, %v737
  %v802 = vpack.c.b16 %v738, %v738
  %v803 = vpack.c.b16 %v739, %v739
  %v804 = vpack.c.b16 %v740, %v740
  %v805 = vpack.c.b16 %v741, %v741
  %v806 = vpack.c.b16 %v742, %v742
  %v807 = vpack.c.b16 %v743, %v743
  %v808 = vpack.c.b16 %v744, %v744
  %v809 = vpack.c.b16 %v745, %v745
  %v810 = vpack.c.b16 %v746, %v746
  %v811 = vpack.c.b16 %v747, %v747
  %v812 = vpack.c.b16 %v748, %v748
  %v813 = vpack.c.b16 %v749, %v749
  %v814 = vpack.c.b16 %v750, %v750
  %v815 = vpack.c.b16 %v751, %v751
  %v816 = vpack.c.b16 %v752, %v752
  %v817 = vpack.c.b16 %v753, %v753
  %v818 = vpack.c.b16 %v754, %v754
  %v819 = vpack.c.b16 %v755, %v755
  %v820 = vpack.c.b16 %v756, %v756
  %885 = vst [vmem:[%s2] sm:$0xf] %v757
  %886 = vst [vmem:[%s2 + $0x4] sm:$0xf] %v758
  %887 = vst [vmem:[%s2 + $0x8] sm:$0xf] %v759
  %888 = vst [vmem:[%s2 + $0xc] sm:$0xf] %v760
  %889 = vst [vmem:[%s2 + $0x10] sm:$0xf] %v761
  %890 = vst [vmem:[%s2 + $0x14] sm:$0xf] %v762
  %891 = vst [vmem:[%s2 + $0x18] sm:$0xf] %v763
  %892 = vst [vmem:[%s2 + $0x1c] sm:$0xf] %v764
  %893 = vst [vmem:[%s2 + $0x20] sm:$0xf] %v765
  %894 = vst [vmem:[%s2 + $0x24] sm:$0xf] %v766
  %895 = vst [vmem:[%s2 + $0x28] sm:$0xf] %v767
  %896 = vst [vmem:[%s2 + $0x2c] sm:$0xf] %v768
  %897 = vst [vmem:[%s2 + $0x30] sm:$0xf] %v769
  %898 = vst [vmem:[%s2 + $0x34] sm:$0xf] %v770
  %899 = vst [vmem:[%s2 + $0x38] sm:$0xf] %v771
  %900 = vst [vmem:[%s2 + $0x3c] sm:$0xf] %v772
  %901 = vst [vmem:[%s2 + $0x40] sm:$0xf] %v773
  %902 = vst [vmem:[%s2 + $0x44] sm:$0xf] %v774
  %903 = vst [vmem:[%s2 + $0x48] sm:$0xf] %v775
  %904 = vst [vmem:[%s2 + $0x4c] sm:$0xf] %v776
  %905 = vst [vmem:[%s2 + $0x50] sm:$0xf] %v777
  %906 = vst [vmem:[%s2 + $0x54] sm:$0xf] %v778
  %907 = vst [vmem:[%s2 + $0x58] sm:$0xf] %v779
  %908 = vst [vmem:[%s2 + $0x5c] sm:$0xf] %v780
  %909 = vst [vmem:[%s2 + $0x60] sm:$0xf] %v781
  %910 = vst [vmem:[%s2 + $0x64] sm:$0xf] %v782
  %911 = vst [vmem:[%s2 + $0x68] sm:$0xf] %v783
  %912 = vst [vmem:[%s2 + $0x6c] sm:$0xf] %v784
  %913 = vst [vmem:[%s2 + $0x70] sm:$0xf] %v785
  %914 = vst [vmem:[%s2 + $0x74] sm:$0xf] %v786
  %915 = vst [vmem:[%s2 + $0x78] sm:$0xf] %v787
  %916 = vst [vmem:[%s2 + $0x7c] sm:$0xf] %v788
  %917 = vst [vmem:[%s2 + $0x80] sm:$0xf] %v789
  %918 = vst [vmem:[%s2 + $0x84] sm:$0xf] %v790
  %919 = vst [vmem:[%s2 + $0x88] sm:$0xf] %v791
  %920 = vst [vmem:[%s2 + $0x8c] sm:$0xf] %v792
  %921 = vst [vmem:[%s2 + $0x90] sm:$0xf] %v793
  %922 = vst [vmem:[%s2 + $0x94] sm:$0xf] %v794
  %923 = vst [vmem:[%s2 + $0x98] sm:$0xf] %v795
  %924 = vst [vmem:[%s2 + $0x9c] sm:$0xf] %v796
  %925 = vst [vmem:[%s2 + $0xa0] sm:$0xf] %v797
  %926 = vst [vmem:[%s2 + $0xa4] sm:$0xf] %v798
  %927 = vst [vmem:[%s2 + $0xa8] sm:$0xf] %v799
  %928 = vst [vmem:[%s2 + $0xac] sm:$0xf] %v800
  %929 = vst [vmem:[%s2 + $0xb0] sm:$0xf] %v801
  %930 = vst [vmem:[%s2 + $0xb4] sm:$0xf] %v802
  %931 = vst [vmem:[%s2 + $0xb8] sm:$0xf] %v803
  %932 = vst [vmem:[%s2 + $0xbc] sm:$0xf] %v804
  %933 = vst [vmem:[%s2 + $0xc0] sm:$0xf] %v805
  %934 = vst [vmem:[%s2 + $0xc4] sm:$0xf] %v806
  %935 = vst [vmem:[%s2 + $0xc8] sm:$0xf] %v807
  %936 = vst [vmem:[%s2 + $0xcc] sm:$0xf] %v808
  %937 = vst [vmem:[%s2 + $0xd0] sm:$0xf] %v809
  %938 = vst [vmem:[%s2 + $0xd4] sm:$0xf] %v810
  %939 = vst [vmem:[%s2 + $0xd8] sm:$0xf] %v811
  %940 = vst [vmem:[%s2 + $0xdc] sm:$0xf] %v812
  %941 = vst [vmem:[%s2 + $0xe0] sm:$0xf] %v813
  %942 = vst [vmem:[%s2 + $0xe4] sm:$0xf] %v814
  %943 = vst [vmem:[%s2 + $0xe8] sm:$0xf] %v815
  %944 = vst [vmem:[%s2 + $0xec] sm:$0xf] %v816
  %945 = vst [vmem:[%s2 + $0xf0] sm:$0xf] %v817
  %946 = vst [vmem:[%s2 + $0xf4] sm:$0xf] %v818
  %947 = vst [vmem:[%s2 + $0xf8] sm:$0xf] %v819
  %948 = vst [vmem:[%s2 + $0xfc] sm:$0xf] %v820
  %v949 = vadd.f32 %v375, %v378
  %v950 = vadd.f32 %v949, %v383
  %v951 = vadd.f32 %v950, %v386
  %v952 = vadd.f32 %v951, %v391
  %v953 = vadd.f32 %v952, %v394
  %v954 = vadd.f32 %v953, %v399
  %v955 = vadd.f32 %v954, %v402
  %v956 = vadd.f32 %v955, %v407
  %v957 = vadd.f32 %v956, %v410
  %v958 = vadd.f32 %v957, %v415
  %v959 = vadd.f32 %v958, %v418
  %v960 = vadd.f32 %v959, %v423
  %v961 = vadd.f32 %v960, %v426
  %v962 = vadd.f32 %v961, %v431
  %v963 = vadd.f32 %v962, %v434
  %v964 = vadd.f32 %v963, %v439
  %v965 = vadd.f32 %v964, %v442
  %v966 = vadd.f32 %v965, %v447
  %v967 = vadd.f32 %v966, %v450
  %v968 = vadd.f32 %v967, %v455
  %v969 = vadd.f32 %v968, %v458
  %v970 = vadd.f32 %v969, %v463
  %v971 = vadd.f32 %v970, %v466
  %v972 = vadd.f32 %v971, %v471
  %v973 = vadd.f32 %v972, %v474
  %v974 = vadd.f32 %v973, %v479
  %v975 = vadd.f32 %v974, %v482
  %v976 = vadd.f32 %v975, %v487
  %v977 = vadd.f32 %v976, %v490
  %v978 = vadd.f32 %v977, %v495
  %v979 = vadd.f32 %v978, %v498
  %v980 = vadd.f32 %v979, %v503
  %v981 = vadd.f32 %v980, %v506
  %v982 = vadd.f32 %v981, %v511
  %v983 = vadd.f32 %v982, %v514
  %v984 = vadd.f32 %v983, %v519
  %v985 = vadd.f32 %v984, %v522
  %v986 = vadd.f32 %v985, %v527
  %v987 = vadd.f32 %v986, %v530
  %v988 = vadd.f32 %v987, %v535
  %v989 = vadd.f32 %v988, %v538
  %v990 = vadd.f32 %v989, %v543
  %v991 = vadd.f32 %v990, %v546
  %v992 = vadd.f32 %v991, %v551
  %v993 = vadd.f32 %v992, %v554
  %v994 = vadd.f32 %v993, %v559
  %v995 = vadd.f32 %v994, %v562
  %v996 = vadd.f32 %v995, %v567
  %v997 = vadd.f32 %v996, %v570
  %v998 = vadd.f32 %v997, %v575
  %v999 = vadd.f32 %v998, %v578
  %v1000 = vadd.f32 %v999, %v583
  %v1001 = vadd.f32 %v1000, %v586
  %v1002 = vadd.f32 %v1001, %v591
  %v1003 = vadd.f32 %v1002, %v594
  %v1004 = vadd.f32 %v1003, %v599
  %v1005 = vadd.f32 %v1004, %v602
  %v1006 = vadd.f32 %v1005, %v607
  %v1007 = vadd.f32 %v1006, %v610
  %v1008 = vadd.f32 %v1007, %v615
  %v1009 = vadd.f32 %v1008, %v618
  %v1010 = vadd.f32 %v1009, %v623
  %v1011 = vadd.f32 %v1010, %v626
  %v1012 = vrot.slane %v1011, 4
  %v1013 = vadd.f32 %v1011, %v1012
  %v1014 = vrot.slane %v1013, 2
  %v1015 = vadd.f32 %v1013, %v1014
  %v1016 = vrot.slane %v1015, 1
  %v1017 = vadd.f32 %v1015, %v1016
  %v1018 = vmul.f32 %v375, %v375
  %v1019 = vmul.f32 %v378, %v378
  %v1020 = vmul.f32 %v383, %v383
  %v1021 = vmul.f32 %v386, %v386
  %v1022 = vmul.f32 %v391, %v391
  %v1023 = vmul.f32 %v394, %v394
  %v1024 = vmul.f32 %v399, %v399
  %v1025 = vmul.f32 %v402, %v402
  %v1026 = vmul.f32 %v407, %v407
  %v1027 = vmul.f32 %v410, %v410
  %v1028 = vmul.f32 %v415, %v415
  %v1029 = vmul.f32 %v418, %v418
  %v1030 = vmul.f32 %v423, %v423
  %v1031 = vmul.f32 %v426, %v426
  %v1032 = vmul.f32 %v431, %v431
  %v1033 = vmul.f32 %v434, %v434
  %v1034 = vmul.f32 %v439, %v439
  %v1035 = vmul.f32 %v442, %v442
  %v1036 = vmul.f32 %v447, %v447
  %v1037 = vmul.f32 %v450, %v450
  %v1038 = vmul.f32 %v455, %v455
  %v1039 = vmul.f32 %v458, %v458
  %v1040 = vmul.f32 %v463, %v463
  %v1041 = vmul.f32 %v466, %v466
  %v1042 = vmul.f32 %v471, %v471
  %v1043 = vmul.f32 %v474, %v474
  %v1044 = vmul.f32 %v479, %v479
  %v1045 = vmul.f32 %v482, %v482
  %v1046 = vmul.f32 %v487, %v487
  %v1047 = vmul.f32 %v490, %v490
  %v1048 = vmul.f32 %v495, %v495
  %v1049 = vmul.f32 %v498, %v498
  %v1050 = vmul.f32 %v503, %v503
  %v1051 = vmul.f32 %v506, %v506
  %v1052 = vmul.f32 %v511, %v511
  %v1053 = vmul.f32 %v514, %v514
  %v1054 = vmul.f32 %v519, %v519
  %v1055 = vmul.f32 %v522, %v522
  %v1056 = vmul.f32 %v527, %v527
  %v1057 = vmul.f32 %v530, %v530
  %v1058 = vmul.f32 %v535, %v535
  %v1059 = vmul.f32 %v538, %v538
  %v1060 = vmul.f32 %v543, %v543
  %v1061 = vmul.f32 %v546, %v546
  %v1062 = vmul.f32 %v551, %v551
  %v1063 = vmul.f32 %v554, %v554
  %v1064 = vmul.f32 %v559, %v559
  %v1065 = vmul.f32 %v562, %v562
  %v1066 = vmul.f32 %v567, %v567
  %v1067 = vmul.f32 %v570, %v570
  %v1068 = vmul.f32 %v575, %v575
  %v1069 = vmul.f32 %v578, %v578
  %v1070 = vmul.f32 %v583, %v583
  %v1071 = vmul.f32 %v586, %v586
  %v1072 = vmul.f32 %v591, %v591
  %v1073 = vmul.f32 %v594, %v594
  %v1074 = vmul.f32 %v599, %v599
  %v1075 = vmul.f32 %v602, %v602
  %v1076 = vmul.f32 %v607, %v607
  %v1077 = vmul.f32 %v610, %v610
  %v1078 = vmul.f32 %v615, %v615
  %v1079 = vmul.f32 %v618, %v618
  %v1080 = vmul.f32 %v623, %v623
  %v1081 = vmul.f32 %v626, %v626
  %v1082 = vadd.f32 %v1018, %v1019
  %v1083 = vadd.f32 %v1082, %v1020
  %v1084 = vadd.f32 %v1083, %v1021
  %v1085 = vadd.f32 %v1084, %v1022
  %v1086 = vadd.f32 %v1085, %v1023
  %v1087 = vadd.f32 %v1086, %v1024
  %v1088 = vadd.f32 %v1087, %v1025
  %v1089 = vadd.f32 %v1088, %v1026
  %v1090 = vadd.f32 %v1089, %v1027
  %v1091 = vadd.f32 %v1090, %v1028
  %v1092 = vadd.f32 %v1091, %v1029
  %v1093 = vadd.f32 %v1092, %v1030
  %v1094 = vadd.f32 %v1093, %v1031
  %v1095 = vadd.f32 %v1094, %v1032
  %v1096 = vadd.f32 %v1095, %v1033
  %v1097 = vadd.f32 %v1096, %v1034
  %v1098 = vadd.f32 %v1097, %v1035
  %v1099 = vadd.f32 %v1098, %v1036
  %v1100 = vadd.f32 %v1099, %v1037
  %v1101 = vadd.f32 %v1100, %v1038
  %v1102 = vadd.f32 %v1101, %v1039
  %v1103 = vadd.f32 %v1102, %v1040
  %v1104 = vadd.f32 %v1103, %v1041
  %v1105 = vadd.f32 %v1104, %v1042
  %v1106 = vadd.f32 %v1105, %v1043
  %v1107 = vadd.f32 %v1106, %v1044
  %v1108 = vadd.f32 %v1107, %v1045
  %v1109 = vadd.f32 %v1108, %v1046
  %v1110 = vadd.f32 %v1109, %v1047
  %v1111 = vadd.f32 %v1110, %v1048
  %v1112 = vadd.f32 %v1111, %v1049
  %v1113 = vadd.f32 %v1112, %v1050
  %v1114 = vadd.f32 %v1113, %v1051
  %v1115 = vadd.f32 %v1114, %v1052
  %v1116 = vadd.f32 %v1115, %v1053
  %v1117 = vadd.f32 %v1116, %v1054
  %v1118 = vadd.f32 %v1117, %v1055
  %v1119 = vadd.f32 %v1118, %v1056
  %v1120 = vadd.f32 %v1119, %v1057
  %v1121 = vadd.f32 %v1120, %v1058
  %v1122 = vadd.f32 %v1121, %v1059
  %v1123 = vadd.f32 %v1122, %v1060
  %v1124 = vadd.f32 %v1123, %v1061
  %v1125 = vadd.f32 %v1124, %v1062
  %v1126 = vadd.f32 %v1125, %v1063
  %v1127 = vadd.f32 %v1126, %v1064
  %v1128 = vadd.f32 %v1127, %v1065
  %v1129 = vadd.f32 %v1128, %v1066
  %v1130 = vadd.f32 %v1129, %v1067
  %v1131 = vadd.f32 %v1130, %v1068
  %v1132 = vadd.f32 %v1131, %v1069
  %v1133 = vadd.f32 %v1132, %v1070
  %v1134 = vadd.f32 %v1133, %v1071
  %v1135 = vadd.f32 %v1134, %v1072
  %v1136 = vadd.f32 %v1135, %v1073
  %v1137 = vadd.f32 %v1136, %v1074
  %v1138 = vadd.f32 %v1137, %v1075
  %v1139 = vadd.f32 %v1138, %v1076
  %v1140 = vadd.f32 %v1139, %v1077
  %v1141 = vadd.f32 %v1140, %v1078
  %v1142 = vadd.f32 %v1141, %v1079
  %v1143 = vadd.f32 %v1142, %v1080
  %v1144 = vadd.f32 %v1143, %v1081
  %v1145 = vrot.slane %v1144, 4
  %v1146 = vadd.f32 %v1144, %v1145
  %v1147 = vrot.slane %v1146, 2
  %v1148 = vadd.f32 %v1146, %v1147
  %v1149 = vrot.slane %v1148, 1
  %v1150 = vadd.f32 %v1148, %v1149
  %vm1151 = vcmask 1040384
  %v1152 = vsel %vm1151, %v1017, %v1150
  %1153 = vst [vmem:[%s3] sm:$0x3] %v1152
  // Predicated region
  $region10: #{spectral_transform_forward.5} parent=0 // pred_check
    _
  $region11: #{spectral_transform_forward.5} parent=0 // pred_check_branch
    %1155 = sbr.rel (0) target = $region13
  $region12: #{spectral_transform_forward.5} parent=0 // pred_region
    _
  $region13: #{spectral_transform_forward.5} parent=0 // pred_fallthru
    _
  // Predicated region
  $region14: #{spectral_transform_forward.5} parent=0 // pred_check
    _
  $region15: #{spectral_transform_forward.5} parent=0 // pred_check_branch
    %1157 = sbr.rel (0) target = $region17
  $region16: #{spectral_transform_forward.5} parent=0 // pred_region
    _
  $region17: #{spectral_transform_forward.5} parent=0 // pred_fallthru
    _
  // Predicated region
  $region18: #{spectral_transform_forward.5} parent=0 // pred_check
    _
  $region19: #{spectral_transform_forward.5} parent=0 // pred_check_branch
    %1159 = sbr.rel (0) target = $region21
  $region20: #{spectral_transform_forward.5} parent=0 // pred_region
    _
  $region21: #{spectral_transform_forward.5} parent=0 // pred_fallthru
    _
  // Predicated region
  $region22: #{spectral_transform_forward.5} parent=0 // pred_check
    _
  $region23: #{spectral_transform_forward.5} parent=0 // pred_check_branch
    %1161 = sbr.rel (0) target = $region25
  $region24: #{spectral_transform_forward.5} parent=0 // pred_region
    _
  $region25: #{spectral_transform_forward.5} parent=0 // pred_fallthru
    _

// kernel: spectral_transform_forward.6
$region0: #{spectral_transform_forward.6}
  #allocation0 [shape = 'u32[]', space=smem, size = 0x4, offset = 0x4, fixed_abs, tag = 'smem constant byte address 0x4 - core index']
  #allocation1 [shape = 'u32[144,128]{1,0:T(1,128)}', space=vmem, size = 0x12000, scoped, tag = 'internal scratch']
  %s0 = inlined_call_operand.vmem [shape: bf16[512,128], index: 0, kind: input, shape index: {}]
  %s1 = inlined_call_operand.vmem [shape: f32[1,128], index: 1, kind: input, shape index: {}]
  %s2 = inlined_call_operand.vmem [shape: f32[1,128], index: 2, kind: input, shape index: {}]
  %s3 = inlined_call_operand.vmem [shape: bf16[512,128], index: 3, kind: output, shape index: {}]
  %s4 = sld [smem:[#allocation0]]
  $region22: #{spectral_transform_forward.6} parent=0
    _
  %s6 = ssub.s32 1, %s4
  %s7 = scalar_select 0, %s6, %s4
  // Predicated region
  $region2: #{spectral_transform_forward.6} parent=0 // pred_check
    _
  $region3: #{spectral_transform_forward.6} parent=0 // pred_check_branch
    %9 = sbr.rel (0) target = $region5
  $region4: #{spectral_transform_forward.6} parent=0 // pred_region
    _
  $region5: #{spectral_transform_forward.6} parent=0 // pred_fallthru
    _
  // Predicated region
  $region6: #{spectral_transform_forward.6} parent=0 // pred_check
    _
  $region7: #{spectral_transform_forward.6} parent=0 // pred_check_branch
    %11 = sbr.rel (0) target = $region9
  $region8: #{spectral_transform_forward.6} parent=0 // pred_region
    _
  $region9: #{spectral_transform_forward.6} parent=0 // pred_fallthru
    _
  // Predicated region
  $region10: #{spectral_transform_forward.6} parent=0 // pred_check
    _
  $region11: #{spectral_transform_forward.6} parent=0 // pred_check_branch
    %13 = sbr.rel (0) target = $region13
  $region12: #{spectral_transform_forward.6} parent=0 // pred_region
    _
  $region13: #{spectral_transform_forward.6} parent=0 // pred_fallthru
    _
  %v14 = vld [vmem:[%s0] sm:$0xf]
  %v15 = vld [vmem:[%s0 + $0x4] sm:$0xf]
  %v16 = vld [vmem:[%s0 + $0x8] sm:$0xf]
  %v17 = vld [vmem:[%s0 + $0xc] sm:$0xf]
  %v18 = vld [vmem:[%s0 + $0x10] sm:$0xf]
  %v19 = vld [vmem:[%s0 + $0x14] sm:$0xf]
  %v20 = vld [vmem:[%s0 + $0x18] sm:$0xf]
  %v21 = vld [vmem:[%s0 + $0x1c] sm:$0xf]
  %v22 = vld [vmem:[%s0 + $0x20] sm:$0xf]
  %v23 = vld [vmem:[%s0 + $0x24] sm:$0xf]
  %v24 = vld [vmem:[%s0 + $0x28] sm:$0xf]
  %v25 = vld [vmem:[%s0 + $0x2c] sm:$0xf]
  %v26 = vld [vmem:[%s0 + $0x30] sm:$0xf]
  %v27 = vld [vmem:[%s0 + $0x34] sm:$0xf]
  %v28 = vld [vmem:[%s0 + $0x38] sm:$0xf]
  %v29 = vld [vmem:[%s0 + $0x3c] sm:$0xf]
  %v30 = vld [vmem:[%s0 + $0x40] sm:$0xf]
  %v31 = vld [vmem:[%s0 + $0x44] sm:$0xf]
  %v32 = vld [vmem:[%s0 + $0x48] sm:$0xf]
  %v33 = vld [vmem:[%s0 + $0x4c] sm:$0xf]
  %v34 = vld [vmem:[%s0 + $0x50] sm:$0xf]
  %v35 = vld [vmem:[%s0 + $0x54] sm:$0xf]
  %v36 = vld [vmem:[%s0 + $0x58] sm:$0xf]
  %v37 = vld [vmem:[%s0 + $0x5c] sm:$0xf]
  %v38 = vld [vmem:[%s0 + $0x60] sm:$0xf]
  %v39 = vld [vmem:[%s0 + $0x64] sm:$0xf]
  %v40 = vld [vmem:[%s0 + $0x68] sm:$0xf]
  %v41 = vld [vmem:[%s0 + $0x6c] sm:$0xf]
  %v42 = vld [vmem:[%s0 + $0x70] sm:$0xf]
  %v43 = vld [vmem:[%s0 + $0x74] sm:$0xf]
  %v44 = vld [vmem:[%s0 + $0x78] sm:$0xf]
  %v45 = vld [vmem:[%s0 + $0x7c] sm:$0xf]
  %v46 = vld [vmem:[%s0 + $0x80] sm:$0xf]
  %v47 = vld [vmem:[%s0 + $0x84] sm:$0xf]
  %v48 = vld [vmem:[%s0 + $0x88] sm:$0xf]
  %v49 = vld [vmem:[%s0 + $0x8c] sm:$0xf]
  %v50 = vld [vmem:[%s0 + $0x90] sm:$0xf]
  %v51 = vld [vmem:[%s0 + $0x94] sm:$0xf]
  %v52 = vld [vmem:[%s0 + $0x98] sm:$0xf]
  %v53 = vld [vmem:[%s0 + $0x9c] sm:$0xf]
  %v54 = vld [vmem:[%s0 + $0xa0] sm:$0xf]
  %v55 = vld [vmem:[%s0 + $0xa4] sm:$0xf]
  %v56 = vld [vmem:[%s0 + $0xa8] sm:$0xf]
  %v57 = vld [vmem:[%s0 + $0xac] sm:$0xf]
  %v58 = vld [vmem:[%s0 + $0xb0] sm:$0xf]
  %v59 = vld [vmem:[%s0 + $0xb4] sm:$0xf]
  %v60 = vld [vmem:[%s0 + $0xb8] sm:$0xf]
  %v61 = vld [vmem:[%s0 + $0xbc] sm:$0xf]
  %v62 = vld [vmem:[%s0 + $0xc0] sm:$0xf]
  %v63 = vld [vmem:[%s0 + $0xc4] sm:$0xf]
  %v64 = vld [vmem:[%s0 + $0xc8] sm:$0xf]
  %v65 = vld [vmem:[%s0 + $0xcc] sm:$0xf]
  %v66 = vld [vmem:[%s0 + $0xd0] sm:$0xf]
  %v67 = vld [vmem:[%s0 + $0xd4] sm:$0xf]
  %v68 = vld [vmem:[%s0 + $0xd8] sm:$0xf]
  %v69 = vld [vmem:[%s0 + $0xdc] sm:$0xf]
  %v70 = vld [vmem:[%s0 + $0xe0] sm:$0xf]
  %v71 = vld [vmem:[%s0 + $0xe4] sm:$0xf]
  %v72 = vld [vmem:[%s0 + $0xe8] sm:$0xf]
  %v73 = vld [vmem:[%s0 + $0xec] sm:$0xf]
  %v74 = vld [vmem:[%s0 + $0xf0] sm:$0xf]
  %v75 = vld [vmem:[%s0 + $0xf4] sm:$0xf]
  %v76 = vld [vmem:[%s0 + $0xf8] sm:$0xf]
  %v77 = vld [vmem:[%s0 + $0xfc] sm:$0xf]
  %v78 = vunpack.c.l.bf16 %v14
  %v79 = vunpack.c.l.bf16 %v15
  %v80 = vunpack.c.l.bf16 %v16
  %v81 = vunpack.c.l.bf16 %v17
  %v82 = vunpack.c.l.bf16 %v18
  %v83 = vunpack.c.l.bf16 %v19
  %v84 = vunpack.c.l.bf16 %v20
  %v85 = vunpack.c.l.bf16 %v21
  %v86 = vunpack.c.l.bf16 %v22
  %v87 = vunpack.c.l.bf16 %v23
  %v88 = vunpack.c.l.bf16 %v24
  %v89 = vunpack.c.l.bf16 %v25
  %v90 = vunpack.c.l.bf16 %v26
  %v91 = vunpack.c.l.bf16 %v27
  %v92 = vunpack.c.l.bf16 %v28
  %v93 = vunpack.c.l.bf16 %v29
  %v94 = vunpack.c.l.bf16 %v30
  %v95 = vunpack.c.l.bf16 %v31
  %v96 = vunpack.c.l.bf16 %v32
  %v97 = vunpack.c.l.bf16 %v33
  %v98 = vunpack.c.l.bf16 %v34
  %v99 = vunpack.c.l.bf16 %v35
  %v100 = vunpack.c.l.bf16 %v36
  %v101 = vunpack.c.l.bf16 %v37
  %v102 = vunpack.c.l.bf16 %v38
  %v103 = vunpack.c.l.bf16 %v39
  %v104 = vunpack.c.l.bf16 %v40
  %v105 = vunpack.c.l.bf16 %v41
  %v106 = vunpack.c.l.bf16 %v42
  %v107 = vunpack.c.l.bf16 %v43
  %v108 = vunpack.c.l.bf16 %v44
  %v109 = vunpack.c.l.bf16 %v45
  %v110 = vunpack.c.l.bf16 %v46
  %v111 = vunpack.c.l.bf16 %v47
  %v112 = vunpack.c.l.bf16 %v48
  %v113 = vunpack.c.l.bf16 %v49
  %v114 = vunpack.c.l.bf16 %v50
  %v115 = vunpack.c.l.bf16 %v51
  %v116 = vunpack.c.l.bf16 %v52
  %v117 = vunpack.c.l.bf16 %v53
  %v118 = vunpack.c.l.bf16 %v54
  %v119 = vunpack.c.l.bf16 %v55
  %v120 = vunpack.c.l.bf16 %v56
  %v121 = vunpack.c.l.bf16 %v57
  %v122 = vunpack.c.l.bf16 %v58
  %v123 = vunpack.c.l.bf16 %v59
  %v124 = vunpack.c.l.bf16 %v60
  %v125 = vunpack.c.l.bf16 %v61
  %v126 = vunpack.c.l.bf16 %v62
  %v127 = vunpack.c.l.bf16 %v63
  %v128 = vunpack.c.l.bf16 %v64
  %v129 = vunpack.c.l.bf16 %v65
  %v130 = vunpack.c.l.bf16 %v66
  %v131 = vunpack.c.l.bf16 %v67
  %v132 = vunpack.c.l.bf16 %v68
  %v133 = vunpack.c.l.bf16 %v69
  %v134 = vunpack.c.l.bf16 %v70
  %v135 = vunpack.c.l.bf16 %v71
  %v136 = vunpack.c.l.bf16 %v72
  %v137 = vunpack.c.l.bf16 %v73
  %v138 = vunpack.c.l.bf16 %v74
  %v139 = vunpack.c.l.bf16 %v75
  %v140 = vunpack.c.l.bf16 %v76
  %v141 = vunpack.c.l.bf16 %v77
  %v142 = vld [vmem:[%s1] sm:$0x1]
  %v144 = vlaneseq
  %v145 = vshrl.u32 %v144, 7
  %v146 = vsub.s32 0, %v145
  %v147 = vrot.slane %v142, %v146
  %v149 = vmul.f32 %v78, %v147
  %v150 = vmul.f32 %v79, %v147
  %v151 = vmul.f32 %v80, %v147
  %v152 = vmul.f32 %v81, %v147
  %v153 = vmul.f32 %v82, %v147
  %v154 = vmul.f32 %v83, %v147
  %v155 = vmul.f32 %v84, %v147
  %v156 = vmul.f32 %v85, %v147
  %v157 = vmul.f32 %v86, %v147
  %v158 = vmul.f32 %v87, %v147
  %v159 = vmul.f32 %v88, %v147
  %v160 = vmul.f32 %v89, %v147
  %v161 = vmul.f32 %v90, %v147
  %v162 = vmul.f32 %v91, %v147
  %v163 = vmul.f32 %v92, %v147
  %v164 = vmul.f32 %v93, %v147
  %v165 = vmul.f32 %v94, %v147
  %v166 = vmul.f32 %v95, %v147
  %v167 = vmul.f32 %v96, %v147
  %v168 = vmul.f32 %v97, %v147
  %v169 = vmul.f32 %v98, %v147
  %v170 = vmul.f32 %v99, %v147
  %v171 = vmul.f32 %v100, %v147
  %v172 = vmul.f32 %v101, %v147
  %v173 = vmul.f32 %v102, %v147
  %v174 = vmul.f32 %v103, %v147
  %v175 = vmul.f32 %v104, %v147
  %v176 = vmul.f32 %v105, %v147
  %v177 = vmul.f32 %v106, %v147
  %v178 = vmul.f32 %v107, %v147
  %v179 = vmul.f32 %v108, %v147
  %v180 = vmul.f32 %v109, %v147
  %v181 = vmul.f32 %v110, %v147
  %v182 = vmul.f32 %v111, %v147
  %v183 = vmul.f32 %v112, %v147
  %v184 = vmul.f32 %v113, %v147
  %v185 = vmul.f32 %v114, %v147
  %v186 = vmul.f32 %v115, %v147
  %v187 = vmul.f32 %v116, %v147
  %v188 = vmul.f32 %v117, %v147
  %v189 = vmul.f32 %v118, %v147
  %v190 = vmul.f32 %v119, %v147
  %v191 = vmul.f32 %v120, %v147
  %v192 = vmul.f32 %v121, %v147
  %v193 = vmul.f32 %v122, %v147
  %v194 = vmul.f32 %v123, %v147
  %v195 = vmul.f32 %v124, %v147
  %v196 = vmul.f32 %v125, %v147
  %v197 = vmul.f32 %v126, %v147
  %v198 = vmul.f32 %v127, %v147
  %v199 = vmul.f32 %v128, %v147
  %v200 = vmul.f32 %v129, %v147
  %v201 = vmul.f32 %v130, %v147
  %v202 = vmul.f32 %v131, %v147
  %v203 = vmul.f32 %v132, %v147
  %v204 = vmul.f32 %v133, %v147
  %v205 = vmul.f32 %v134, %v147
  %v206 = vmul.f32 %v135, %v147
  %v207 = vmul.f32 %v136, %v147
  %v208 = vmul.f32 %v137, %v147
  %v209 = vmul.f32 %v138, %v147
  %v210 = vmul.f32 %v139, %v147
  %v211 = vmul.f32 %v140, %v147
  %v212 = vmul.f32 %v141, %v147
  %v213 = vld [vmem:[%s2] sm:$0x1]
  %v215 = vlaneseq
  %v216 = vshrl.u32 %v215, 7
  %v217 = vsub.s32 0, %v216
  %v218 = vrot.slane %v213, %v217
  %v220 = vadd.f32 %v149, %v218
  %v221 = vadd.f32 %v150, %v218
  %v222 = vadd.f32 %v151, %v218
  %v223 = vadd.f32 %v152, %v218
  %v224 = vadd.f32 %v153, %v218
  %v225 = vadd.f32 %v154, %v218
  %v226 = vadd.f32 %v155, %v218
  %v227 = vadd.f32 %v156, %v218
  %v228 = vadd.f32 %v157, %v218
  %v229 = vadd.f32 %v158, %v218
  %v230 = vadd.f32 %v159, %v218
  %v231 = vadd.f32 %v160, %v218
  %v232 = vadd.f32 %v161, %v218
  %v233 = vadd.f32 %v162, %v218
  %v234 = vadd.f32 %v163, %v218
  %v235 = vadd.f32 %v164, %v218
  %v236 = vadd.f32 %v165, %v218
  %v237 = vadd.f32 %v166, %v218
  %v238 = vadd.f32 %v167, %v218
  %v239 = vadd.f32 %v168, %v218
  %v240 = vadd.f32 %v169, %v218
  %v241 = vadd.f32 %v170, %v218
  %v242 = vadd.f32 %v171, %v218
  %v243 = vadd.f32 %v172, %v218
  %v244 = vadd.f32 %v173, %v218
  %v245 = vadd.f32 %v174, %v218
  %v246 = vadd.f32 %v175, %v218
  %v247 = vadd.f32 %v176, %v218
  %v248 = vadd.f32 %v177, %v218
  %v249 = vadd.f32 %v178, %v218
  %v250 = vadd.f32 %v179, %v218
  %v251 = vadd.f32 %v180, %v218
  %v252 = vadd.f32 %v181, %v218
  %v253 = vadd.f32 %v182, %v218
  %v254 = vadd.f32 %v183, %v218
  %v255 = vadd.f32 %v184, %v218
  %v256 = vadd.f32 %v185, %v218
  %v257 = vadd.f32 %v186, %v218
  %v258 = vadd.f32 %v187, %v218
  %v259 = vadd.f32 %v188, %v218
  %v260 = vadd.f32 %v189, %v218
  %v261 = vadd.f32 %v190, %v218
  %v262 = vadd.f32 %v191, %v218
  %v263 = vadd.f32 %v192, %v218
  %v264 = vadd.f32 %v193, %v218
  %v265 = vadd.f32 %v194, %v218
  %v266 = vadd.f32 %v195, %v218
  %v267 = vadd.f32 %v196, %v218
  %v268 = vadd.f32 %v197, %v218
  %v269 = vadd.f32 %v198, %v218
  %v270 = vadd.f32 %v199, %v218
  %v271 = vadd.f32 %v200, %v218
  %v272 = vadd.f32 %v201, %v218
  %v273 = vadd.f32 %v202, %v218
  %v274 = vadd.f32 %v203, %v218
  %v275 = vadd.f32 %v204, %v218
  %v276 = vadd.f32 %v205, %v218
  %v277 = vadd.f32 %v206, %v218
  %v278 = vadd.f32 %v207, %v218
  %v279 = vadd.f32 %v208, %v218
  %v280 = vadd.f32 %v209, %v218
  %v281 = vadd.f32 %v210, %v218
  %v282 = vadd.f32 %v211, %v218
  %v283 = vadd.f32 %v212, %v218
  %v284 = vmax.f32 %v220, 0.0
  %v285 = vmax.f32 %v221, 0.0
  %v286 = vmax.f32 %v222, 0.0
  %v287 = vmax.f32 %v223, 0.0
  %v288 = vmax.f32 %v224, 0.0
  %v289 = vmax.f32 %v225, 0.0
  %v290 = vmax.f32 %v226, 0.0
  %v291 = vmax.f32 %v227, 0.0
  %v292 = vmax.f32 %v228, 0.0
  %v293 = vmax.f32 %v229, 0.0
  %v294 = vmax.f32 %v230, 0.0
  %v295 = vmax.f32 %v231, 0.0
  %v296 = vmax.f32 %v232, 0.0
  %v297 = vmax.f32 %v233, 0.0
  %v298 = vmax.f32 %v234, 0.0
  %v299 = vmax.f32 %v235, 0.0
  %v300 = vmax.f32 %v236, 0.0
  %v301 = vmax.f32 %v237, 0.0
  %v302 = vmax.f32 %v238, 0.0
  %v303 = vmax.f32 %v239, 0.0
  %v304 = vmax.f32 %v240, 0.0
  %v305 = vmax.f32 %v241, 0.0
  %v306 = vmax.f32 %v242, 0.0
  %v307 = vmax.f32 %v243, 0.0
  %v308 = vmax.f32 %v244, 0.0
  %v309 = vmax.f32 %v245, 0.0
  %v310 = vmax.f32 %v246, 0.0
  %v311 = vmax.f32 %v247, 0.0
  %v312 = vmax.f32 %v248, 0.0
  %v313 = vmax.f32 %v249, 0.0
  %v314 = vmax.f32 %v250, 0.0
  %v315 = vmax.f32 %v251, 0.0
  %v316 = vmax.f32 %v252, 0.0
  %v317 = vmax.f32 %v253, 0.0
  %v318 = vmax.f32 %v254, 0.0
  %v319 = vmax.f32 %v255, 0.0
  %v320 = vmax.f32 %v256, 0.0
  %v321 = vmax.f32 %v257, 0.0
  %v322 = vmax.f32 %v258, 0.0
  %v323 = vmax.f32 %v259, 0.0
  %v324 = vmax.f32 %v260, 0.0
  %v325 = vmax.f32 %v261, 0.0
  %v326 = vmax.f32 %v262, 0.0
  %v327 = vmax.f32 %v263, 0.0
  %v328 = vmax.f32 %v264, 0.0
  %v329 = vmax.f32 %v265, 0.0
  %v330 = vmax.f32 %v266, 0.0
  %v331 = vmax.f32 %v267, 0.0
  %v332 = vmax.f32 %v268, 0.0
  %v333 = vmax.f32 %v269, 0.0
  %v334 = vmax.f32 %v270, 0.0
  %v335 = vmax.f32 %v271, 0.0
  %v336 = vmax.f32 %v272, 0.0
  %v337 = vmax.f32 %v273, 0.0
  %v338 = vmax.f32 %v274, 0.0
  %v339 = vmax.f32 %v275, 0.0
  %v340 = vmax.f32 %v276, 0.0
  %v341 = vmax.f32 %v277, 0.0
  %v342 = vmax.f32 %v278, 0.0
  %v343 = vmax.f32 %v279, 0.0
  %v344 = vmax.f32 %v280, 0.0
  %v345 = vmax.f32 %v281, 0.0
  %v346 = vmax.f32 %v282, 0.0
  %v347 = vmax.f32 %v283, 0.0
  %v348 = vpack.c.bf16 %v285, %v284
  %v349 = vpack.c.bf16 %v287, %v286
  %v350 = vpack.c.bf16 %v289, %v288
  %v351 = vpack.c.bf16 %v291, %v290
  %v352 = vpack.c.bf16 %v293, %v292
  %v353 = vpack.c.bf16 %v295, %v294
  %v354 = vpack.c.bf16 %v297, %v296
  %v355 = vpack.c.bf16 %v299, %v298
  %v356 = vpack.c.bf16 %v301, %v300
  %v357 = vpack.c.bf16 %v303, %v302
  %v358 = vpack.c.bf16 %v305, %v304
  %v359 = vpack.c.bf16 %v307, %v306
  %v360 = vpack.c.bf16 %v309, %v308
  %v361 = vpack.c.bf16 %v311, %v310
  %v362 = vpack.c.bf16 %v313, %v312
  %v363 = vpack.c.bf16 %v315, %v314
  %v364 = vpack.c.bf16 %v317, %v316
  %v365 = vpack.c.bf16 %v319, %v318
  %v366 = vpack.c.bf16 %v321, %v320
  %v367 = vpack.c.bf16 %v323, %v322
  %v368 = vpack.c.bf16 %v325, %v324
  %v369 = vpack.c.bf16 %v327, %v326
  %v370 = vpack.c.bf16 %v329, %v328
  %v371 = vpack.c.bf16 %v331, %v330
  %v372 = vpack.c.bf16 %v333, %v332
  %v373 = vpack.c.bf16 %v335, %v334
  %v374 = vpack.c.bf16 %v337, %v336
  %v375 = vpack.c.bf16 %v339, %v338
  %v376 = vpack.c.bf16 %v341, %v340
  %v377 = vpack.c.bf16 %v343, %v342
  %v378 = vpack.c.bf16 %v345, %v344
  %v379 = vpack.c.bf16 %v347, %v346
  %v412 = vunpack.c.l.b16 %v348
  %v413 = vunpack.c.h.b16 %v348
  %v414 = vunpack.c.l.b16 %v349
  %v415 = vunpack.c.h.b16 %v349
  %v416 = vunpack.c.l.b16 %v350
  %v417 = vunpack.c.h.b16 %v350
  %v418 = vunpack.c.l.b16 %v351
  %v419 = vunpack.c.h.b16 %v351
  %v420 = vunpack.c.l.b16 %v352
  %v421 = vunpack.c.h.b16 %v352
  %v422 = vunpack.c.l.b16 %v353
  %v423 = vunpack.c.h.b16 %v353
  %v424 = vunpack.c.l.b16 %v354
  %v425 = vunpack.c.h.b16 %v354
  %v426 = vunpack.c.l.b16 %v355
  %v427 = vunpack.c.h.b16 %v355
  %v428 = vunpack.c.l.b16 %v356
  %v429 = vunpack.c.h.b16 %v356
  %v430 = vunpack.c.l.b16 %v357
  %v431 = vunpack.c.h.b16 %v357
  %v432 = vunpack.c.l.b16 %v358
  %v433 = vunpack.c.h.b16 %v358
  %v434 = vunpack.c.l.b16 %v359
  %v435 = vunpack.c.h.b16 %v359
  %v436 = vunpack.c.l.b16 %v360
  %v437 = vunpack.c.h.b16 %v360
  %v438 = vunpack.c.l.b16 %v361
  %v439 = vunpack.c.h.b16 %v361
  %v440 = vunpack.c.l.b16 %v362
  %v441 = vunpack.c.h.b16 %v362
  %v442 = vunpack.c.l.b16 %v363
  %v443 = vunpack.c.h.b16 %v363
  %v444 = vunpack.c.l.b16 %v364
  %v445 = vunpack.c.h.b16 %v364
  %v446 = vunpack.c.l.b16 %v365
  %v447 = vunpack.c.h.b16 %v365
  %v448 = vunpack.c.l.b16 %v366
  %v449 = vunpack.c.h.b16 %v366
  %v450 = vunpack.c.l.b16 %v367
  %v451 = vunpack.c.h.b16 %v367
  %v452 = vunpack.c.l.b16 %v368
  %v453 = vunpack.c.h.b16 %v368
  %v454 = vunpack.c.l.b16 %v369
  %v455 = vunpack.c.h.b16 %v369
  %v456 = vunpack.c.l.b16 %v370
  %v457 = vunpack.c.h.b16 %v370
  %v458 = vunpack.c.l.b16 %v371
  %v459 = vunpack.c.h.b16 %v371
  %v460 = vunpack.c.l.b16 %v372
  %v461 = vunpack.c.h.b16 %v372
  %v462 = vunpack.c.l.b16 %v373
  %v463 = vunpack.c.h.b16 %v373
  %v464 = vunpack.c.l.b16 %v374
  %v465 = vunpack.c.h.b16 %v374
  %v466 = vunpack.c.l.b16 %v375
  %v467 = vunpack.c.h.b16 %v375
  %v468 = vunpack.c.l.b16 %v376
  %v469 = vunpack.c.h.b16 %v376
  %v470 = vunpack.c.l.b16 %v377
  %v471 = vunpack.c.h.b16 %v377
  %v472 = vunpack.c.l.b16 %v378
  %v473 = vunpack.c.h.b16 %v378
  %v474 = vunpack.c.l.b16 %v379
  %v475 = vunpack.c.h.b16 %v379
  %v476 = vpack.c.b16 %v412, %v412
  %v477 = vpack.c.b16 %v413, %v413
  %v478 = vpack.c.b16 %v414, %v414
  %v479 = vpack.c.b16 %v415, %v415
  %v480 = vpack.c.b16 %v416, %v416
  %v481 = vpack.c.b16 %v417, %v417
  %v482 = vpack.c.b16 %v418, %v418
  %v483 = vpack.c.b16 %v419, %v419
  %v484 = vpack.c.b16 %v420, %v420
  %v485 = vpack.c.b16 %v421, %v421
  %v486 = vpack.c.b16 %v422, %v422
  %v487 = vpack.c.b16 %v423, %v423
  %v488 = vpack.c.b16 %v424, %v424
  %v489 = vpack.c.b16 %v425, %v425
  %v490 = vpack.c.b16 %v426, %v426
  %v491 = vpack.c.b16 %v427, %v427
  %v492 = vpack.c.b16 %v428, %v428
  %v493 = vpack.c.b16 %v429, %v429
  %v494 = vpack.c.b16 %v430, %v430
  %v495 = vpack.c.b16 %v431, %v431
  %v496 = vpack.c.b16 %v432, %v432
  %v497 = vpack.c.b16 %v433, %v433
  %v498 = vpack.c.b16 %v434, %v434
  %v499 = vpack.c.b16 %v435, %v435
  %v500 = vpack.c.b16 %v436, %v436
  %v501 = vpack.c.b16 %v437, %v437
  %v502 = vpack.c.b16 %v438, %v438
  %v503 = vpack.c.b16 %v439, %v439
  %v504 = vpack.c.b16 %v440, %v440
  %v505 = vpack.c.b16 %v441, %v441
  %v506 = vpack.c.b16 %v442, %v442
  %v507 = vpack.c.b16 %v443, %v443
  %v508 = vpack.c.b16 %v444, %v444
  %v509 = vpack.c.b16 %v445, %v445
  %v510 = vpack.c.b16 %v446, %v446
  %v511 = vpack.c.b16 %v447, %v447
  %v512 = vpack.c.b16 %v448, %v448
  %v513 = vpack.c.b16 %v449, %v449
  %v514 = vpack.c.b16 %v450, %v450
  %v515 = vpack.c.b16 %v451, %v451
  %v516 = vpack.c.b16 %v452, %v452
  %v517 = vpack.c.b16 %v453, %v453
  %v518 = vpack.c.b16 %v454, %v454
  %v519 = vpack.c.b16 %v455, %v455
  %v520 = vpack.c.b16 %v456, %v456
  %v521 = vpack.c.b16 %v457, %v457
  %v522 = vpack.c.b16 %v458, %v458
  %v523 = vpack.c.b16 %v459, %v459
  %v524 = vpack.c.b16 %v460, %v460
  %v525 = vpack.c.b16 %v461, %v461
  %v526 = vpack.c.b16 %v462, %v462
  %v527 = vpack.c.b16 %v463, %v463
  %v528 = vpack.c.b16 %v464, %v464
  %v529 = vpack.c.b16 %v465, %v465
  %v530 = vpack.c.b16 %v466, %v466
  %v531 = vpack.c.b16 %v467, %v467
  %v532 = vpack.c.b16 %v468, %v468
  %v533 = vpack.c.b16 %v469, %v469
  %v534 = vpack.c.b16 %v470, %v470
  %v535 = vpack.c.b16 %v471, %v471
  %v536 = vpack.c.b16 %v472, %v472
  %v537 = vpack.c.b16 %v473, %v473
  %v538 = vpack.c.b16 %v474, %v474
  %v539 = vpack.c.b16 %v475, %v475
  %604 = vst [vmem:[%s3] sm:$0xf] %v476
  %605 = vst [vmem:[%s3 + $0x4] sm:$0xf] %v477
  %606 = vst [vmem:[%s3 + $0x8] sm:$0xf] %v478
  %607 = vst [vmem:[%s3 + $0xc] sm:$0xf] %v479
  %608 = vst [vmem:[%s3 + $0x10] sm:$0xf] %v480
  %609 = vst [vmem:[%s3 + $0x14] sm:$0xf] %v481
  %610 = vst [vmem:[%s3 + $0x18] sm:$0xf] %v482
  %611 = vst [vmem:[%s3 + $0x1c] sm:$0xf] %v483
  %612 = vst [vmem:[%s3 + $0x20] sm:$0xf] %v484
  %613 = vst [vmem:[%s3 + $0x24] sm:$0xf] %v485
  %614 = vst [vmem:[%s3 + $0x28] sm:$0xf] %v486
  %615 = vst [vmem:[%s3 + $0x2c] sm:$0xf] %v487
  %616 = vst [vmem:[%s3 + $0x30] sm:$0xf] %v488
  %617 = vst [vmem:[%s3 + $0x34] sm:$0xf] %v489
  %618 = vst [vmem:[%s3 + $0x38] sm:$0xf] %v490
  %619 = vst [vmem:[%s3 + $0x3c] sm:$0xf] %v491
  %620 = vst [vmem:[%s3 + $0x40] sm:$0xf] %v492
  %621 = vst [vmem:[%s3 + $0x44] sm:$0xf] %v493
  %622 = vst [vmem:[%s3 + $0x48] sm:$0xf] %v494
  %623 = vst [vmem:[%s3 + $0x4c] sm:$0xf] %v495
  %624 = vst [vmem:[%s3 + $0x50] sm:$0xf] %v496
  %625 = vst [vmem:[%s3 + $0x54] sm:$0xf] %v497
  %626 = vst [vmem:[%s3 + $0x58] sm:$0xf] %v498
  %627 = vst [vmem:[%s3 + $0x5c] sm:$0xf] %v499
  %628 = vst [vmem:[%s3 + $0x60] sm:$0xf] %v500
  %629 = vst [vmem:[%s3 + $0x64] sm:$0xf] %v501
  %630 = vst [vmem:[%s3 + $0x68] sm:$0xf] %v502
  %631 = vst [vmem:[%s3 + $0x6c] sm:$0xf] %v503
  %632 = vst [vmem:[%s3 + $0x70] sm:$0xf] %v504
  %633 = vst [vmem:[%s3 + $0x74] sm:$0xf] %v505
  %634 = vst [vmem:[%s3 + $0x78] sm:$0xf] %v506
  %635 = vst [vmem:[%s3 + $0x7c] sm:$0xf] %v507
  %636 = vst [vmem:[%s3 + $0x80] sm:$0xf] %v508
  %637 = vst [vmem:[%s3 + $0x84] sm:$0xf] %v509
  %638 = vst [vmem:[%s3 + $0x88] sm:$0xf] %v510
  %639 = vst [vmem:[%s3 + $0x8c] sm:$0xf] %v511
  %640 = vst [vmem:[%s3 + $0x90] sm:$0xf] %v512
  %641 = vst [vmem:[%s3 + $0x94] sm:$0xf] %v513
  %642 = vst [vmem:[%s3 + $0x98] sm:$0xf] %v514
  %643 = vst [vmem:[%s3 + $0x9c] sm:$0xf] %v515
  %644 = vst [vmem:[%s3 + $0xa0] sm:$0xf] %v516
  %645 = vst [vmem:[%s3 + $0xa4] sm:$0xf] %v517
  %646 = vst [vmem:[%s3 + $0xa8] sm:$0xf] %v518
  %647 = vst [vmem:[%s3 + $0xac] sm:$0xf] %v519
  %648 = vst [vmem:[%s3 + $0xb0] sm:$0xf] %v520
  %649 = vst [vmem:[%s3 + $0xb4] sm:$0xf] %v521
  %650 = vst [vmem:[%s3 + $0xb8] sm:$0xf] %v522
  %651 = vst [vmem:[%s3 + $0xbc] sm:$0xf] %v523
  %652 = vst [vmem:[%s3 + $0xc0] sm:$0xf] %v524
  %653 = vst [vmem:[%s3 + $0xc4] sm:$0xf] %v525
  %654 = vst [vmem:[%s3 + $0xc8] sm:$0xf] %v526
  %655 = vst [vmem:[%s3 + $0xcc] sm:$0xf] %v527
  %656 = vst [vmem:[%s3 + $0xd0] sm:$0xf] %v528
  %657 = vst [vmem:[%s3 + $0xd4] sm:$0xf] %v529
  %658 = vst [vmem:[%s3 + $0xd8] sm:$0xf] %v530
  %659 = vst [vmem:[%s3 + $0xdc] sm:$0xf] %v531
  %660 = vst [vmem:[%s3 + $0xe0] sm:$0xf] %v532
  %661 = vst [vmem:[%s3 + $0xe4] sm:$0xf] %v533
  %662 = vst [vmem:[%s3 + $0xe8] sm:$0xf] %v534
  %663 = vst [vmem:[%s3 + $0xec] sm:$0xf] %v535
  %664 = vst [vmem:[%s3 + $0xf0] sm:$0xf] %v536
  %665 = vst [vmem:[%s3 + $0xf4] sm:$0xf] %v537
  %666 = vst [vmem:[%s3 + $0xf8] sm:$0xf] %v538
  %667 = vst [vmem:[%s3 + $0xfc] sm:$0xf] %v539
  // Predicated region
  $region14: #{spectral_transform_forward.6} parent=0 // pred_check
    _
  $region15: #{spectral_transform_forward.6} parent=0 // pred_check_branch
    %669 = sbr.rel (0) target = $region17
  $region16: #{spectral_transform_forward.6} parent=0 // pred_region
    _
  $region17: #{spectral_transform_forward.6} parent=0 // pred_fallthru
    _
  // Predicated region
  $region18: #{spectral_transform_forward.6} parent=0 // pred_check
    _
  $region19: #{spectral_transform_forward.6} parent=0 // pred_check_branch
    %671 = sbr.rel (0) target = $region21
  $region20: #{spectral_transform_forward.6} parent=0 // pred_region
    _
  $region21: #{spectral_transform_forward.6} parent=0 // pred_fallthru
    _

// kernel: spectral_transform_forward.8
$region0: #{spectral_transform_forward.8}
  #allocation0 [shape = 'u32[]', space=smem, size = 0x4, offset = 0x4, fixed_abs, tag = 'smem constant byte address 0x4 - core index']
  #allocation1 [shape = 'u32[144,128]{1,0:T(1,128)}', space=vmem, size = 0x12000, scoped, tag = 'internal scratch']
  %s0 = inlined_call_operand.vmem [shape: bf16[288,256], index: 0, kind: input, shape index: {}]
  %s1 = inlined_call_operand.vmem [shape: f32[1,256], index: 1, kind: input, shape index: {}]
  %s2 = inlined_call_operand.vmem [shape: f32[1,256], index: 2, kind: input, shape index: {}]
  %s3 = inlined_call_operand.vmem [shape: f32[288,256], index: 3, kind: output, shape index: {}]
  %s4 = sld [smem:[#allocation0]]
  $region22: #{spectral_transform_forward.8} parent=0
    _
  %s6 = ssub.s32 1, %s4
  %s7 = scalar_select 0, %s6, %s4
  // Predicated region
  $region2: #{spectral_transform_forward.8} parent=0 // pred_check
    _
  $region3: #{spectral_transform_forward.8} parent=0 // pred_check_branch
    %9 = sbr.rel (0) target = $region5
  $region4: #{spectral_transform_forward.8} parent=0 // pred_region
    _
  $region5: #{spectral_transform_forward.8} parent=0 // pred_fallthru
    _
  // Predicated region
  $region6: #{spectral_transform_forward.8} parent=0 // pred_check
    _
  $region7: #{spectral_transform_forward.8} parent=0 // pred_check_branch
    %11 = sbr.rel (0) target = $region9
  $region8: #{spectral_transform_forward.8} parent=0 // pred_region
    _
  $region9: #{spectral_transform_forward.8} parent=0 // pred_fallthru
    _
  // Predicated region
  $region10: #{spectral_transform_forward.8} parent=0 // pred_check
    _
  $region11: #{spectral_transform_forward.8} parent=0 // pred_check_branch
    %13 = sbr.rel (0) target = $region13
  $region12: #{spectral_transform_forward.8} parent=0 // pred_region
    _
  $region13: #{spectral_transform_forward.8} parent=0 // pred_fallthru
    _
  %v14 = vld [vmem:[%s0] sm:$0xff]
  %v15 = vld [vmem:[%s0 + $0x8] sm:$0xff]
  %v16 = vld [vmem:[%s0 + $0x10] sm:$0xff]
  %v17 = vld [vmem:[%s0 + $0x18] sm:$0xff]
  %v18 = vld [vmem:[%s0 + $0x20] sm:$0xff]
  %v19 = vld [vmem:[%s0 + $0x28] sm:$0xff]
  %v20 = vld [vmem:[%s0 + $0x30] sm:$0xff]
  %v21 = vld [vmem:[%s0 + $0x38] sm:$0xff]
  %v22 = vld [vmem:[%s0 + $0x40] sm:$0xff]
  %v23 = vld [vmem:[%s0 + $0x48] sm:$0xff]
  %v24 = vld [vmem:[%s0 + $0x50] sm:$0xff]
  %v25 = vld [vmem:[%s0 + $0x58] sm:$0xff]
  %v26 = vld [vmem:[%s0 + $0x60] sm:$0xff]
  %v27 = vld [vmem:[%s0 + $0x68] sm:$0xff]
  %v28 = vld [vmem:[%s0 + $0x70] sm:$0xff]
  %v29 = vld [vmem:[%s0 + $0x78] sm:$0xff]
  %v30 = vld [vmem:[%s0 + $0x80] sm:$0xff]
  %v31 = vld [vmem:[%s0 + $0x88] sm:$0xff]
  %v32 = vld [vmem:[%s0 + $0x90] sm:$0xff]
  %v33 = vld [vmem:[%s0 + $0x98] sm:$0xff]
  %v34 = vld [vmem:[%s0 + $0xa0] sm:$0xff]
  %v35 = vld [vmem:[%s0 + $0xa8] sm:$0xff]
  %v36 = vld [vmem:[%s0 + $0xb0] sm:$0xff]
  %v37 = vld [vmem:[%s0 + $0xb8] sm:$0xff]
  %v38 = vld [vmem:[%s0 + $0xc0] sm:$0xff]
  %v39 = vld [vmem:[%s0 + $0xc8] sm:$0xff]
  %v40 = vld [vmem:[%s0 + $0xd0] sm:$0xff]
  %v41 = vld [vmem:[%s0 + $0xd8] sm:$0xff]
  %v42 = vld [vmem:[%s0 + $0xe0] sm:$0xff]
  %v43 = vld [vmem:[%s0 + $0xe8] sm:$0xff]
  %v44 = vld [vmem:[%s0 + $0xf0] sm:$0xff]
  %v45 = vld [vmem:[%s0 + $0xf8] sm:$0xff]
  %v46 = vld [vmem:[%s0 + $0x100] sm:$0xff]
  %v47 = vld [vmem:[%s0 + $0x108] sm:$0xff]
  %v48 = vld [vmem:[%s0 + $0x110] sm:$0xff]
  %v49 = vld [vmem:[%s0 + $0x118] sm:$0xff]
  %v50 = vunpack.c.l.bf16 %v14
  %v51 = vunpack.c.h.bf16 %v14
  %v52 = vunpack.c.l.bf16 %v15
  %v53 = vunpack.c.h.bf16 %v15
  %v54 = vunpack.c.l.bf16 %v16
  %v55 = vunpack.c.h.bf16 %v16
  %v56 = vunpack.c.l.bf16 %v17
  %v57 = vunpack.c.h.bf16 %v17
  %v58 = vunpack.c.l.bf16 %v18
  %v59 = vunpack.c.h.bf16 %v18
  %v60 = vunpack.c.l.bf16 %v19
  %v61 = vunpack.c.h.bf16 %v19
  %v62 = vunpack.c.l.bf16 %v20
  %v63 = vunpack.c.h.bf16 %v20
  %v64 = vunpack.c.l.bf16 %v21
  %v65 = vunpack.c.h.bf16 %v21
  %v66 = vunpack.c.l.bf16 %v22
  %v67 = vunpack.c.h.bf16 %v22
  %v68 = vunpack.c.l.bf16 %v23
  %v69 = vunpack.c.h.bf16 %v23
  %v70 = vunpack.c.l.bf16 %v24
  %v71 = vunpack.c.h.bf16 %v24
  %v72 = vunpack.c.l.bf16 %v25
  %v73 = vunpack.c.h.bf16 %v25
  %v74 = vunpack.c.l.bf16 %v26
  %v75 = vunpack.c.h.bf16 %v26
  %v76 = vunpack.c.l.bf16 %v27
  %v77 = vunpack.c.h.bf16 %v27
  %v78 = vunpack.c.l.bf16 %v28
  %v79 = vunpack.c.h.bf16 %v28
  %v80 = vunpack.c.l.bf16 %v29
  %v81 = vunpack.c.h.bf16 %v29
  %v82 = vunpack.c.l.bf16 %v30
  %v83 = vunpack.c.h.bf16 %v30
  %v84 = vunpack.c.l.bf16 %v31
  %v85 = vunpack.c.h.bf16 %v31
  %v86 = vunpack.c.l.bf16 %v32
  %v87 = vunpack.c.h.bf16 %v32
  %v88 = vunpack.c.l.bf16 %v33
  %v89 = vunpack.c.h.bf16 %v33
  %v90 = vunpack.c.l.bf16 %v34
  %v91 = vunpack.c.h.bf16 %v34
  %v92 = vunpack.c.l.bf16 %v35
  %v93 = vunpack.c.h.bf16 %v35
  %v94 = vunpack.c.l.bf16 %v36
  %v95 = vunpack.c.h.bf16 %v36
  %v96 = vunpack.c.l.bf16 %v37
  %v97 = vunpack.c.h.bf16 %v37
  %v98 = vunpack.c.l.bf16 %v38
  %v99 = vunpack.c.h.bf16 %v38
  %v100 = vunpack.c.l.bf16 %v39
  %v101 = vunpack.c.h.bf16 %v39
  %v102 = vunpack.c.l.bf16 %v40
  %v103 = vunpack.c.h.bf16 %v40
  %v104 = vunpack.c.l.bf16 %v41
  %v105 = vunpack.c.h.bf16 %v41
  %v106 = vunpack.c.l.bf16 %v42
  %v107 = vunpack.c.h.bf16 %v42
  %v108 = vunpack.c.l.bf16 %v43
  %v109 = vunpack.c.h.bf16 %v43
  %v110 = vunpack.c.l.bf16 %v44
  %v111 = vunpack.c.h.bf16 %v44
  %v112 = vunpack.c.l.bf16 %v45
  %v113 = vunpack.c.h.bf16 %v45
  %v114 = vunpack.c.l.bf16 %v46
  %v115 = vunpack.c.h.bf16 %v46
  %v116 = vunpack.c.l.bf16 %v47
  %v117 = vunpack.c.h.bf16 %v47
  %v118 = vunpack.c.l.bf16 %v48
  %v119 = vunpack.c.h.bf16 %v48
  %v120 = vunpack.c.l.bf16 %v49
  %v121 = vunpack.c.h.bf16 %v49
  %v122 = vld [vmem:[%s1] sm:$0x3]
  %v124 = vlaneseq
  %v125 = vshrl.u32 %v124, 7
  %v126 = vsub.s32 0, %v125
  %v127 = vrot.slane %v122, %v126
  %v128 = vlaneseq
  %v129 = vshrl.u32 %v128, 7
  %v130 = vsub.s32 1, %v129
  %v131 = vrot.slane %v122, %v130
  %v134 = vmul.f32 %v50, %v127
  %v135 = vmul.f32 %v51, %v131
  %v136 = vmul.f32 %v52, %v127
  %v137 = vmul.f32 %v53, %v131
  %v138 = vmul.f32 %v54, %v127
  %v139 = vmul.f32 %v55, %v131
  %v140 = vmul.f32 %v56, %v127
  %v141 = vmul.f32 %v57, %v131
  %v142 = vmul.f32 %v58, %v127
  %v143 = vmul.f32 %v59, %v131
  %v144 = vmul.f32 %v60, %v127
  %v145 = vmul.f32 %v61, %v131
  %v146 = vmul.f32 %v62, %v127
  %v147 = vmul.f32 %v63, %v131
  %v148 = vmul.f32 %v64, %v127
  %v149 = vmul.f32 %v65, %v131
  %v150 = vmul.f32 %v66, %v127
  %v151 = vmul.f32 %v67, %v131
  %v152 = vmul.f32 %v68, %v127
  %v153 = vmul.f32 %v69, %v131
  %v154 = vmul.f32 %v70, %v127
  %v155 = vmul.f32 %v71, %v131
  %v156 = vmul.f32 %v72, %v127
  %v157 = vmul.f32 %v73, %v131
  %v158 = vmul.f32 %v74, %v127
  %v159 = vmul.f32 %v75, %v131
  %v160 = vmul.f32 %v76, %v127
  %v161 = vmul.f32 %v77, %v131
  %v162 = vmul.f32 %v78, %v127
  %v163 = vmul.f32 %v79, %v131
  %v164 = vmul.f32 %v80, %v127
  %v165 = vmul.f32 %v81, %v131
  %v166 = vmul.f32 %v82, %v127
  %v167 = vmul.f32 %v83, %v131
  %v168 = vmul.f32 %v84, %v127
  %v169 = vmul.f32 %v85, %v131
  %v170 = vmul.f32 %v86, %v127
  %v171 = vmul.f32 %v87, %v131
  %v172 = vmul.f32 %v88, %v127
  %v173 = vmul.f32 %v89, %v131
  %v174 = vmul.f32 %v90, %v127
  %v175 = vmul.f32 %v91, %v131
  %v176 = vmul.f32 %v92, %v127
  %v177 = vmul.f32 %v93, %v131
  %v178 = vmul.f32 %v94, %v127
  %v179 = vmul.f32 %v95, %v131
  %v180 = vmul.f32 %v96, %v127
  %v181 = vmul.f32 %v97, %v131
  %v182 = vmul.f32 %v98, %v127
  %v183 = vmul.f32 %v99, %v131
  %v184 = vmul.f32 %v100, %v127
  %v185 = vmul.f32 %v101, %v131
  %v186 = vmul.f32 %v102, %v127
  %v187 = vmul.f32 %v103, %v131
  %v188 = vmul.f32 %v104, %v127
  %v189 = vmul.f32 %v105, %v131
  %v190 = vmul.f32 %v106, %v127
  %v191 = vmul.f32 %v107, %v131
  %v192 = vmul.f32 %v108, %v127
  %v193 = vmul.f32 %v109, %v131
  %v194 = vmul.f32 %v110, %v127
  %v195 = vmul.f32 %v111, %v131
  %v196 = vmul.f32 %v112, %v127
  %v197 = vmul.f32 %v113, %v131
  %v198 = vmul.f32 %v114, %v127
  %v199 = vmul.f32 %v115, %v131
  %v200 = vmul.f32 %v116, %v127
  %v201 = vmul.f32 %v117, %v131
  %v202 = vmul.f32 %v118, %v127
  %v203 = vmul.f32 %v119, %v131
  %v204 = vmul.f32 %v120, %v127
  %v205 = vmul.f32 %v121, %v131
  %v206 = vld [vmem:[%s2] sm:$0x3]
  %v208 = vlaneseq
  %v209 = vshrl.u32 %v208, 7
  %v210 = vsub.s32 0, %v209
  %v211 = vrot.slane %v206, %v210
  %v212 = vlaneseq
  %v213 = vshrl.u32 %v212, 7
  %v214 = vsub.s32 1, %v213
  %v215 = vrot.slane %v206, %v214
  %v218 = vadd.f32 %v134, %v211
  %v219 = vadd.f32 %v135, %v215
  %v220 = vadd.f32 %v136, %v211
  %v221 = vadd.f32 %v137, %v215
  %v222 = vadd.f32 %v138, %v211
  %v223 = vadd.f32 %v139, %v215
  %v224 = vadd.f32 %v140, %v211
  %v225 = vadd.f32 %v141, %v215
  %v226 = vadd.f32 %v142, %v211
  %v227 = vadd.f32 %v143, %v215
  %v228 = vadd.f32 %v144, %v211
  %v229 = vadd.f32 %v145, %v215
  %v230 = vadd.f32 %v146, %v211
  %v231 = vadd.f32 %v147, %v215
  %v232 = vadd.f32 %v148, %v211
  %v233 = vadd.f32 %v149, %v215
  %v234 = vadd.f32 %v150, %v211
  %v235 = vadd.f32 %v151, %v215
  %v236 = vadd.f32 %v152, %v211
  %v237 = vadd.f32 %v153, %v215
  %v238 = vadd.f32 %v154, %v211
  %v239 = vadd.f32 %v155, %v215
  %v240 = vadd.f32 %v156, %v211
  %v241 = vadd.f32 %v157, %v215
  %v242 = vadd.f32 %v158, %v211
  %v243 = vadd.f32 %v159, %v215
  %v244 = vadd.f32 %v160, %v211
  %v245 = vadd.f32 %v161, %v215
  %v246 = vadd.f32 %v162, %v211
  %v247 = vadd.f32 %v163, %v215
  %v248 = vadd.f32 %v164, %v211
  %v249 = vadd.f32 %v165, %v215
  %v250 = vadd.f32 %v166, %v211
  %v251 = vadd.f32 %v167, %v215
  %v252 = vadd.f32 %v168, %v211
  %v253 = vadd.f32 %v169, %v215
  %v254 = vadd.f32 %v170, %v211
  %v255 = vadd.f32 %v171, %v215
  %v256 = vadd.f32 %v172, %v211
  %v257 = vadd.f32 %v173, %v215
  %v258 = vadd.f32 %v174, %v211
  %v259 = vadd.f32 %v175, %v215
  %v260 = vadd.f32 %v176, %v211
  %v261 = vadd.f32 %v177, %v215
  %v262 = vadd.f32 %v178, %v211
  %v263 = vadd.f32 %v179, %v215
  %v264 = vadd.f32 %v180, %v211
  %v265 = vadd.f32 %v181, %v215
  %v266 = vadd.f32 %v182, %v211
  %v267 = vadd.f32 %v183, %v215
  %v268 = vadd.f32 %v184, %v211
  %v269 = vadd.f32 %v185, %v215
  %v270 = vadd.f32 %v186, %v211
  %v271 = vadd.f32 %v187, %v215
  %v272 = vadd.f32 %v188, %v211
  %v273 = vadd.f32 %v189, %v215
  %v274 = vadd.f32 %v190, %v211
  %v275 = vadd.f32 %v191, %v215
  %v276 = vadd.f32 %v192, %v211
  %v277 = vadd.f32 %v193, %v215
  %v278 = vadd.f32 %v194, %v211
  %v279 = vadd.f32 %v195, %v215
  %v280 = vadd.f32 %v196, %v211
  %v281 = vadd.f32 %v197, %v215
  %v282 = vadd.f32 %v198, %v211
  %v283 = vadd.f32 %v199, %v215
  %v284 = vadd.f32 %v200, %v211
  %v285 = vadd.f32 %v201, %v215
  %v286 = vadd.f32 %v202, %v211
  %v287 = vadd.f32 %v203, %v215
  %v288 = vadd.f32 %v204, %v211
  %v289 = vadd.f32 %v205, %v215
  %v290 = vmax.f32 %v218, 0.0
  %v291 = vmax.f32 %v219, 0.0
  %v292 = vmax.f32 %v220, 0.0
  %v293 = vmax.f32 %v221, 0.0
  %v294 = vmax.f32 %v222, 0.0
  %v295 = vmax.f32 %v223, 0.0
  %v296 = vmax.f32 %v224, 0.0
  %v297 = vmax.f32 %v225, 0.0
  %v298 = vmax.f32 %v226, 0.0
  %v299 = vmax.f32 %v227, 0.0
  %v300 = vmax.f32 %v228, 0.0
  %v301 = vmax.f32 %v229, 0.0
  %v302 = vmax.f32 %v230, 0.0
  %v303 = vmax.f32 %v231, 0.0
  %v304 = vmax.f32 %v232, 0.0
  %v305 = vmax.f32 %v233, 0.0
  %v306 = vmax.f32 %v234, 0.0
  %v307 = vmax.f32 %v235, 0.0
  %v308 = vmax.f32 %v236, 0.0
  %v309 = vmax.f32 %v237, 0.0
  %v310 = vmax.f32 %v238, 0.0
  %v311 = vmax.f32 %v239, 0.0
  %v312 = vmax.f32 %v240, 0.0
  %v313 = vmax.f32 %v241, 0.0
  %v314 = vmax.f32 %v242, 0.0
  %v315 = vmax.f32 %v243, 0.0
  %v316 = vmax.f32 %v244, 0.0
  %v317 = vmax.f32 %v245, 0.0
  %v318 = vmax.f32 %v246, 0.0
  %v319 = vmax.f32 %v247, 0.0
  %v320 = vmax.f32 %v248, 0.0
  %v321 = vmax.f32 %v249, 0.0
  %v322 = vmax.f32 %v250, 0.0
  %v323 = vmax.f32 %v251, 0.0
  %v324 = vmax.f32 %v252, 0.0
  %v325 = vmax.f32 %v253, 0.0
  %v326 = vmax.f32 %v254, 0.0
  %v327 = vmax.f32 %v255, 0.0
  %v328 = vmax.f32 %v256, 0.0
  %v329 = vmax.f32 %v257, 0.0
  %v330 = vmax.f32 %v258, 0.0
  %v331 = vmax.f32 %v259, 0.0
  %v332 = vmax.f32 %v260, 0.0
  %v333 = vmax.f32 %v261, 0.0
  %v334 = vmax.f32 %v262, 0.0
  %v335 = vmax.f32 %v263, 0.0
  %v336 = vmax.f32 %v264, 0.0
  %v337 = vmax.f32 %v265, 0.0
  %v338 = vmax.f32 %v266, 0.0
  %v339 = vmax.f32 %v267, 0.0
  %v340 = vmax.f32 %v268, 0.0
  %v341 = vmax.f32 %v269, 0.0
  %v342 = vmax.f32 %v270, 0.0
  %v343 = vmax.f32 %v271, 0.0
  %v344 = vmax.f32 %v272, 0.0
  %v345 = vmax.f32 %v273, 0.0
  %v346 = vmax.f32 %v274, 0.0
  %v347 = vmax.f32 %v275, 0.0
  %v348 = vmax.f32 %v276, 0.0
  %v349 = vmax.f32 %v277, 0.0
  %v350 = vmax.f32 %v278, 0.0
  %v351 = vmax.f32 %v279, 0.0
  %v352 = vmax.f32 %v280, 0.0
  %v353 = vmax.f32 %v281, 0.0
  %v354 = vmax.f32 %v282, 0.0
  %v355 = vmax.f32 %v283, 0.0
  %v356 = vmax.f32 %v284, 0.0
  %v357 = vmax.f32 %v285, 0.0
  %v358 = vmax.f32 %v286, 0.0
  %v359 = vmax.f32 %v287, 0.0
  %v360 = vmax.f32 %v288, 0.0
  %v361 = vmax.f32 %v289, 0.0
  %362 = vst [vmem:[%s3] sm:$0xff] %v290
  %363 = vst [vmem:[%s3 + $0x8] sm:$0xff] %v291
  %364 = vst [vmem:[%s3 + $0x10] sm:$0xff] %v292
  %365 = vst [vmem:[%s3 + $0x18] sm:$0xff] %v293
  %366 = vst [vmem:[%s3 + $0x20] sm:$0xff] %v294
  %367 = vst [vmem:[%s3 + $0x28] sm:$0xff] %v295
  %368 = vst [vmem:[%s3 + $0x30] sm:$0xff] %v296
  %369 = vst [vmem:[%s3 + $0x38] sm:$0xff] %v297
  %370 = vst [vmem:[%s3 + $0x40] sm:$0xff] %v298
  %371 = vst [vmem:[%s3 + $0x48] sm:$0xff] %v299
  %372 = vst [vmem:[%s3 + $0x50] sm:$0xff] %v300
  %373 = vst [vmem:[%s3 + $0x58] sm:$0xff] %v301
  %374 = vst [vmem:[%s3 + $0x60] sm:$0xff] %v302
  %375 = vst [vmem:[%s3 + $0x68] sm:$0xff] %v303
  %376 = vst [vmem:[%s3 + $0x70] sm:$0xff] %v304
  %377 = vst [vmem:[%s3 + $0x78] sm:$0xff] %v305
  %378 = vst [vmem:[%s3 + $0x80] sm:$0xff] %v306
  %379 = vst [vmem:[%s3 + $0x88] sm:$0xff] %v307
  %380 = vst [vmem:[%s3 + $0x90] sm:$0xff] %v308
  %381 = vst [vmem:[%s3 + $0x98] sm:$0xff] %v309
  %382 = vst [vmem:[%s3 + $0xa0] sm:$0xff] %v310
  %383 = vst [vmem:[%s3 + $0xa8] sm:$0xff] %v311
  %384 = vst [vmem:[%s3 + $0xb0] sm:$0xff] %v312
  %385 = vst [vmem:[%s3 + $0xb8] sm:$0xff] %v313
  %386 = vst [vmem:[%s3 + $0xc0] sm:$0xff] %v314
  %387 = vst [vmem:[%s3 + $0xc8] sm:$0xff] %v315
  %388 = vst [vmem:[%s3 + $0xd0] sm:$0xff] %v316
  %389 = vst [vmem:[%s3 + $0xd8] sm:$0xff] %v317
  %390 = vst [vmem:[%s3 + $0xe0] sm:$0xff] %v318
  %391 = vst [vmem:[%s3 + $0xe8] sm:$0xff] %v319
  %392 = vst [vmem:[%s3 + $0xf0] sm:$0xff] %v320
  %393 = vst [vmem:[%s3 + $0xf8] sm:$0xff] %v321
  %394 = vst [vmem:[%s3 + $0x100] sm:$0xff] %v322
  %395 = vst [vmem:[%s3 + $0x108] sm:$0xff] %v323
  %396 = vst [vmem:[%s3 + $0x110] sm:$0xff] %v324
  %397 = vst [vmem:[%s3 + $0x118] sm:$0xff] %v325
  %398 = vst [vmem:[%s3 + $0x120] sm:$0xff] %v326
  %399 = vst [vmem:[%s3 + $0x128] sm:$0xff] %v327
  %400 = vst [vmem:[%s3 + $0x130] sm:$0xff] %v328
  %401 = vst [vmem:[%s3 + $0x138] sm:$0xff] %v329
  %402 = vst [vmem:[%s3 + $0x140] sm:$0xff] %v330
  %403 = vst [vmem:[%s3 + $0x148] sm:$0xff] %v331
  %404 = vst [vmem:[%s3 + $0x150] sm:$0xff] %v332
  %405 = vst [vmem:[%s3 + $0x158] sm:$0xff] %v333
  %406 = vst [vmem:[%s3 + $0x160] sm:$0xff] %v334
  %407 = vst [vmem:[%s3 + $0x168] sm:$0xff] %v335
  %408 = vst [vmem:[%s3 + $0x170] sm:$0xff] %v336
  %409 = vst [vmem:[%s3 + $0x178] sm:$0xff] %v337
  %410 = vst [vmem:[%s3 + $0x180] sm:$0xff] %v338
  %411 = vst [vmem:[%s3 + $0x188] sm:$0xff] %v339
  %412 = vst [vmem:[%s3 + $0x190] sm:$0xff] %v340
  %413 = vst [vmem:[%s3 + $0x198] sm:$0xff] %v341
  %414 = vst [vmem:[%s3 + $0x1a0] sm:$0xff] %v342
  %415 = vst [vmem:[%s3 + $0x1a8] sm:$0xff] %v343
  %416 = vst [vmem:[%s3 + $0x1b0] sm:$0xff] %v344
  %417 = vst [vmem:[%s3 + $0x1b8] sm:$0xff] %v345
  %418 = vst [vmem:[%s3 + $0x1c0] sm:$0xff] %v346
  %419 = vst [vmem:[%s3 + $0x1c8] sm:$0xff] %v347
  %420 = vst [vmem:[%s3 + $0x1d0] sm:$0xff] %v348
  %421 = vst [vmem:[%s3 + $0x1d8] sm:$0xff] %v349
  %422 = vst [vmem:[%s3 + $0x1e0] sm:$0xff] %v350
  %423 = vst [vmem:[%s3 + $0x1e8] sm:$0xff] %v351
  %424 = vst [vmem:[%s3 + $0x1f0] sm:$0xff] %v352
  %425 = vst [vmem:[%s3 + $0x1f8] sm:$0xff] %v353
  %426 = vst [vmem:[%s3 + $0x200] sm:$0xff] %v354
  %427 = vst [vmem:[%s3 + $0x208] sm:$0xff] %v355
  %428 = vst [vmem:[%s3 + $0x210] sm:$0xff] %v356
  %429 = vst [vmem:[%s3 + $0x218] sm:$0xff] %v357
  %430 = vst [vmem:[%s3 + $0x220] sm:$0xff] %v358
  %431 = vst [vmem:[%s3 + $0x228] sm:$0xff] %v359
  %432 = vst [vmem:[%s3 + $0x230] sm:$0xff] %v360
  %433 = vst [vmem:[%s3 + $0x238] sm:$0xff] %v361
  // Predicated region
  $region14: #{spectral_transform_forward.8} parent=0 // pred_check
    _
  $region15: #{spectral_transform_forward.8} parent=0 // pred_check_branch
    %435 = sbr.rel (0) target = $region17
  $region16: #{spectral_transform_forward.8} parent=0 // pred_region
    _
  $region17: #{spectral_transform_forward.8} parent=0 // pred_fallthru
    _
  // Predicated region
  $region18: #{spectral_transform_forward.8} parent=0 // pred_check
    _
  $region19: #{spectral_transform_forward.8} parent=0 // pred_check_branch
    %437 = sbr.rel (0) target = $region21
  $region20: #{spectral_transform_forward.8} parent=0 // pred_region
    _
  $region21: #{spectral_transform_forward.8} parent=0 // pred_fallthru
    _

// kernel: spectral_transform_forward.7
$region0: #{spectral_transform_forward.7}
  #allocation0 [shape = 'u32[]', space=smem, size = 0x4, offset = 0x4, fixed_abs, tag = 'smem constant byte address 0x4 - core index']
  #allocation1 [shape = 'u32[144,128]{1,0:T(1,128)}', space=vmem, size = 0x12000, scoped, tag = 'internal scratch']
  %s0 = inlined_call_operand.vmem [shape: bf16[288,256], index: 0, kind: input, shape index: {}]
  %s1 = inlined_call_operand.vmem [shape: bf16[256,256], index: 1, kind: input, shape index: {}]
  %s2 = inlined_call_operand.vmem [shape: bf16[288,256], index: 2, kind: output, shape index: {0}]
  %s3 = inlined_call_operand.vmem [shape: f32[1,2,256], index: 3, kind: output, shape index: {1}]
  %4 = xla_tuple %s2, %s3
  %s5 = sld [smem:[#allocation0]]
  $region26: #{spectral_transform_forward.7} parent=0
    _
  %s7 = ssub.s32 1, %s5
  %s8 = scalar_select 0, %s7, %s5
  // Predicated region
  $region2: #{spectral_transform_forward.7} parent=0 // pred_check
    _
  $region3: #{spectral_transform_forward.7} parent=0 // pred_check_branch
    %10 = sbr.rel (0) target = $region5
  $region4: #{spectral_transform_forward.7} parent=0 // pred_region
    _
  $region5: #{spectral_transform_forward.7} parent=0 // pred_fallthru
    _
  // Predicated region
  $region6: #{spectral_transform_forward.7} parent=0 // pred_check
    _
  $region7: #{spectral_transform_forward.7} parent=0 // pred_check_branch
    %12 = sbr.rel (0) target = $region9
  $region8: #{spectral_transform_forward.7} parent=0 // pred_region
    _
  $region9: #{spectral_transform_forward.7} parent=0 // pred_fallthru
    _
  %v13 = vld [vmem:[%s0] sm:$0xff]
  %v14 = vld [vmem:[%s0 + $0x8] sm:$0xff]
  %v15 = vld [vmem:[%s0 + $0x10] sm:$0xff]
  %v16 = vld [vmem:[%s0 + $0x18] sm:$0xff]
  %v17 = vld [vmem:[%s0 + $0x20] sm:$0xff]
  %v18 = vld [vmem:[%s0 + $0x28] sm:$0xff]
  %v19 = vld [vmem:[%s0 + $0x30] sm:$0xff]
  %v20 = vld [vmem:[%s0 + $0x38] sm:$0xff]
  %v21 = vld [vmem:[%s0 + $0x40] sm:$0xff]
  %v22 = vld [vmem:[%s0 + $0x48] sm:$0xff]
  %v23 = vld [vmem:[%s0 + $0x50] sm:$0xff]
  %v24 = vld [vmem:[%s0 + $0x58] sm:$0xff]
  %v25 = vld [vmem:[%s0 + $0x60] sm:$0xff]
  %v26 = vld [vmem:[%s0 + $0x68] sm:$0xff]
  %v27 = vld [vmem:[%s0 + $0x70] sm:$0xff]
  %v28 = vld [vmem:[%s0 + $0x78] sm:$0xff]
  %v29 = vld [vmem:[%s0 + $0x80] sm:$0xff]
  %v30 = vld [vmem:[%s0 + $0x88] sm:$0xff]
  %v31 = vld [vmem:[%s0 + $0x90] sm:$0xff]
  %v32 = vld [vmem:[%s0 + $0x98] sm:$0xff]
  %v33 = vld [vmem:[%s0 + $0xa0] sm:$0xff]
  %v34 = vld [vmem:[%s0 + $0xa8] sm:$0xff]
  %v35 = vld [vmem:[%s0 + $0xb0] sm:$0xff]
  %v36 = vld [vmem:[%s0 + $0xb8] sm:$0xff]
  %v37 = vld [vmem:[%s0 + $0xc0] sm:$0xff]
  %v38 = vld [vmem:[%s0 + $0xc8] sm:$0xff]
  %v39 = vld [vmem:[%s0 + $0xd0] sm:$0xff]
  %v40 = vld [vmem:[%s0 + $0xd8] sm:$0xff]
  %v41 = vld [vmem:[%s0 + $0xe0] sm:$0xff]
  %v42 = vld [vmem:[%s0 + $0xe8] sm:$0xff]
  %v43 = vld [vmem:[%s0 + $0xf0] sm:$0xff]
  %v44 = vld [vmem:[%s0 + $0xf8] sm:$0xff]
  %v45 = vld [vmem:[%s0 + $0x100] sm:$0xff]
  %v46 = vld [vmem:[%s0 + $0x108] sm:$0xff]
  %v47 = vld [vmem:[%s0 + $0x110] sm:$0xff]
  %v48 = vld [vmem:[%s0 + $0x118] sm:$0xff]
  %v49 = vld [vmem:[%s1] sm:$0xff]
  %v50 = vld [vmem:[%s1 + $0x8] sm:$0xff]
  %v51 = vld [vmem:[%s1 + $0x10] sm:$0xff]
  %v52 = vld [vmem:[%s1 + $0x18] sm:$0xff]
  %v53 = vld [vmem:[%s1 + $0x20] sm:$0xff]
  %v54 = vld [vmem:[%s1 + $0x28] sm:$0xff]
  %v55 = vld [vmem:[%s1 + $0x30] sm:$0xff]
  %v56 = vld [vmem:[%s1 + $0x38] sm:$0xff]
  %v57 = vld [vmem:[%s1 + $0x40] sm:$0xff]
  %v58 = vld [vmem:[%s1 + $0x48] sm:$0xff]
  %v59 = vld [vmem:[%s1 + $0x50] sm:$0xff]
  %v60 = vld [vmem:[%s1 + $0x58] sm:$0xff]
  %v61 = vld [vmem:[%s1 + $0x60] sm:$0xff]
  %v62 = vld [vmem:[%s1 + $0x68] sm:$0xff]
  %v63 = vld [vmem:[%s1 + $0x70] sm:$0xff]
  %v64 = vld [vmem:[%s1 + $0x78] sm:$0xff]
  %v65 = vld [vmem:[%s1 + $0x80] sm:$0xff]
  %v66 = vld [vmem:[%s1 + $0x88] sm:$0xff]
  %v67 = vld [vmem:[%s1 + $0x90] sm:$0xff]
  %v68 = vld [vmem:[%s1 + $0x98] sm:$0xff]
  %v69 = vld [vmem:[%s1 + $0xa0] sm:$0xff]
  %v70 = vld [vmem:[%s1 + $0xa8] sm:$0xff]
  %v71 = vld [vmem:[%s1 + $0xb0] sm:$0xff]
  %v72 = vld [vmem:[%s1 + $0xb8] sm:$0xff]
  %v73 = vld [vmem:[%s1 + $0xc0] sm:$0xff]
  %v74 = vld [vmem:[%s1 + $0xc8] sm:$0xff]
  %v75 = vld [vmem:[%s1 + $0xd0] sm:$0xff]
  %v76 = vld [vmem:[%s1 + $0xd8] sm:$0xff]
  %v77 = vld [vmem:[%s1 + $0xe0] sm:$0xff]
  %v78 = vld [vmem:[%s1 + $0xe8] sm:$0xff]
  %v79 = vld [vmem:[%s1 + $0xf0] sm:$0xff]
  %v80 = vld [vmem:[%s1 + $0xf8] sm:$0xff]
  %v117 = vunpack.c.l.b16 %v13
  %v118 = vunpack.c.h.b16 %v13
  %v119 = vunpack.c.l.b16 %v14
  %v120 = vunpack.c.h.b16 %v14
  %v121 = vunpack.c.l.b16 %v15
  %v122 = vunpack.c.h.b16 %v15
  %v123 = vunpack.c.l.b16 %v16
  %v124 = vunpack.c.h.b16 %v16
  %v125 = vunpack.c.l.b16 %v17
  %v126 = vunpack.c.h.b16 %v17
  %v127 = vunpack.c.l.b16 %v18
  %v128 = vunpack.c.h.b16 %v18
  %v129 = vunpack.c.l.b16 %v19
  %v130 = vunpack.c.h.b16 %v19
  %v131 = vunpack.c.l.b16 %v20
  %v132 = vunpack.c.h.b16 %v20
  %v133 = vunpack.c.l.b16 %v21
  %v134 = vunpack.c.h.b16 %v21
  %v135 = vunpack.c.l.b16 %v22
  %v136 = vunpack.c.h.b16 %v22
  %v137 = vunpack.c.l.b16 %v23
  %v138 = vunpack.c.h.b16 %v23
  %v139 = vunpack.c.l.b16 %v24
  %v140 = vunpack.c.h.b16 %v24
  %v141 = vunpack.c.l.b16 %v25
  %v142 = vunpack.c.h.b16 %v25
  %v143 = vunpack.c.l.b16 %v26
  %v144 = vunpack.c.h.b16 %v26
  %v145 = vunpack.c.l.b16 %v27
  %v146 = vunpack.c.h.b16 %v27
  %v147 = vunpack.c.l.b16 %v28
  %v148 = vunpack.c.h.b16 %v28
  %v149 = vunpack.c.l.b16 %v29
  %v150 = vunpack.c.h.b16 %v29
  %v151 = vunpack.c.l.b16 %v30
  %v152 = vunpack.c.h.b16 %v30
  %v153 = vunpack.c.l.b16 %v31
  %v154 = vunpack.c.h.b16 %v31
  %v155 = vunpack.c.l.b16 %v32
  %v156 = vunpack.c.h.b16 %v32
  %v157 = vunpack.c.l.b16 %v33
  %v158 = vunpack.c.h.b16 %v33
  %v159 = vunpack.c.l.b16 %v34
  %v160 = vunpack.c.h.b16 %v34
  %v161 = vunpack.c.l.b16 %v35
  %v162 = vunpack.c.h.b16 %v35
  %v163 = vunpack.c.l.b16 %v36
  %v164 = vunpack.c.h.b16 %v36
  %v165 = vunpack.c.l.b16 %v37
  %v166 = vunpack.c.h.b16 %v37
  %v167 = vunpack.c.l.b16 %v38
  %v168 = vunpack.c.h.b16 %v38
  %v169 = vunpack.c.l.b16 %v39
  %v170 = vunpack.c.h.b16 %v39
  %v171 = vunpack.c.l.b16 %v40
  %v172 = vunpack.c.h.b16 %v40
  %v173 = vunpack.c.l.b16 %v41
  %v174 = vunpack.c.h.b16 %v41
  %v175 = vunpack.c.l.b16 %v42
  %v176 = vunpack.c.h.b16 %v42
  %v177 = vunpack.c.l.b16 %v43
  %v178 = vunpack.c.h.b16 %v43
  %v179 = vunpack.c.l.b16 %v44
  %v180 = vunpack.c.h.b16 %v44
  %v181 = vunpack.c.l.b16 %v45
  %v182 = vunpack.c.h.b16 %v45
  %v183 = vunpack.c.l.b16 %v46
  %v184 = vunpack.c.h.b16 %v46
  %v185 = vunpack.c.l.b16 %v47
  %v186 = vunpack.c.h.b16 %v47
  %v187 = vunpack.c.l.b16 %v48
  %v188 = vunpack.c.h.b16 %v48
  %v189 = vpack.c.b16 %v119, %v117
  %v190 = vpack.c.b16 %v120, %v118
  %v191 = vpack.c.b16 %v123, %v121
  %v192 = vpack.c.b16 %v124, %v122
  %v193 = vpack.c.b16 %v127, %v125
  %v194 = vpack.c.b16 %v128, %v126
  %v195 = vpack.c.b16 %v131, %v129
  %v196 = vpack.c.b16 %v132, %v130
  %v197 = vpack.c.b16 %v135, %v133
  %v198 = vpack.c.b16 %v136, %v134
  %v199 = vpack.c.b16 %v139, %v137
  %v200 = vpack.c.b16 %v140, %v138
  %v201 = vpack.c.b16 %v143, %v141
  %v202 = vpack.c.b16 %v144, %v142
  %v203 = vpack.c.b16 %v147, %v145
  %v204 = vpack.c.b16 %v148, %v146
  %v205 = vpack.c.b16 %v151, %v149
  %v206 = vpack.c.b16 %v152, %v150
  %v207 = vpack.c.b16 %v155, %v153
  %v208 = vpack.c.b16 %v156, %v154
  %v209 = vpack.c.b16 %v159, %v157
  %v210 = vpack.c.b16 %v160, %v158
  %v211 = vpack.c.b16 %v163, %v161
  %v212 = vpack.c.b16 %v164, %v162
  %v213 = vpack.c.b16 %v167, %v165
  %v214 = vpack.c.b16 %v168, %v166
  %v215 = vpack.c.b16 %v171, %v169
  %v216 = vpack.c.b16 %v172, %v170
  %v217 = vpack.c.b16 %v175, %v173
  %v218 = vpack.c.b16 %v176, %v174
  %v219 = vpack.c.b16 %v179, %v177
  %v220 = vpack.c.b16 %v180, %v178
  %v221 = vpack.c.b16 %v183, %v181
  %v222 = vpack.c.b16 %v184, %v182
  %v223 = vpack.c.b16 %v187, %v185
  %v224 = vpack.c.b16 %v188, %v186
  %v293 = vunpack.c.l.b16 %v49
  %v294 = vunpack.c.h.b16 %v49
  %v295 = vunpack.c.l.b16 %v50
  %v296 = vunpack.c.h.b16 %v50
  %v297 = vunpack.c.l.b16 %v51
  %v298 = vunpack.c.h.b16 %v51
  %v299 = vunpack.c.l.b16 %v52
  %v300 = vunpack.c.h.b16 %v52
  %v301 = vunpack.c.l.b16 %v53
  %v302 = vunpack.c.h.b16 %v53
  %v303 = vunpack.c.l.b16 %v54
  %v304 = vunpack.c.h.b16 %v54
  %v305 = vunpack.c.l.b16 %v55
  %v306 = vunpack.c.h.b16 %v55
  %v307 = vunpack.c.l.b16 %v56
  %v308 = vunpack.c.h.b16 %v56
  %v309 = vunpack.c.l.b16 %v57
  %v310 = vunpack.c.h.b16 %v57
  %v311 = vunpack.c.l.b16 %v58
  %v312 = vunpack.c.h.b16 %v58
  %v313 = vunpack.c.l.b16 %v59
  %v314 = vunpack.c.h.b16 %v59
  %v315 = vunpack.c.l.b16 %v60
  %v316 = vunpack.c.h.b16 %v60
  %v317 = vunpack.c.l.b16 %v61
  %v318 = vunpack.c.h.b16 %v61
  %v319 = vunpack.c.l.b16 %v62
  %v320 = vunpack.c.h.b16 %v62
  %v321 = vunpack.c.l.b16 %v63
  %v322 = vunpack.c.h.b16 %v63
  %v323 = vunpack.c.l.b16 %v64
  %v324 = vunpack.c.h.b16 %v64
  %v325 = vunpack.c.l.b16 %v65
  %v326 = vunpack.c.h.b16 %v65
  %v327 = vunpack.c.l.b16 %v66
  %v328 = vunpack.c.h.b16 %v66
  %v329 = vunpack.c.l.b16 %v67
  %v330 = vunpack.c.h.b16 %v67
  %v331 = vunpack.c.l.b16 %v68
  %v332 = vunpack.c.h.b16 %v68
  %v333 = vunpack.c.l.b16 %v69
  %v334 = vunpack.c.h.b16 %v69
  %v335 = vunpack.c.l.b16 %v70
  %v336 = vunpack.c.h.b16 %v70
  %v337 = vunpack.c.l.b16 %v71
  %v338 = vunpack.c.h.b16 %v71
  %v339 = vunpack.c.l.b16 %v72
  %v340 = vunpack.c.h.b16 %v72
  %v341 = vunpack.c.l.b16 %v73
  %v342 = vunpack.c.h.b16 %v73
  %v343 = vunpack.c.l.b16 %v74
  %v344 = vunpack.c.h.b16 %v74
  %v345 = vunpack.c.l.b16 %v75
  %v346 = vunpack.c.h.b16 %v75
  %v347 = vunpack.c.l.b16 %v76
  %v348 = vunpack.c.h.b16 %v76
  %v349 = vunpack.c.l.b16 %v77
  %v350 = vunpack.c.h.b16 %v77
  %v351 = vunpack.c.l.b16 %v78
  %v352 = vunpack.c.h.b16 %v78
  %v353 = vunpack.c.l.b16 %v79
  %v354 = vunpack.c.h.b16 %v79
  %v355 = vunpack.c.l.b16 %v80
  %v356 = vunpack.c.h.b16 %v80
  %v357 = vpack.c.b16 %v295, %v293
  %v358 = vpack.c.b16 %v296, %v294
  %v359 = vpack.c.b16 %v299, %v297
  %v360 = vpack.c.b16 %v300, %v298
  %v361 = vpack.c.b16 %v303, %v301
  %v362 = vpack.c.b16 %v304, %v302
  %v363 = vpack.c.b16 %v307, %v305
  %v364 = vpack.c.b16 %v308, %v306
  %v365 = vpack.c.b16 %v311, %v309
  %v366 = vpack.c.b16 %v312, %v310
  %v367 = vpack.c.b16 %v315, %v313
  %v368 = vpack.c.b16 %v316, %v314
  %v369 = vpack.c.b16 %v319, %v317
  %v370 = vpack.c.b16 %v320, %v318
  %v371 = vpack.c.b16 %v323, %v321
  %v372 = vpack.c.b16 %v324, %v322
  %v373 = vpack.c.b16 %v327, %v325
  %v374 = vpack.c.b16 %v328, %v326
  %v375 = vpack.c.b16 %v331, %v329
  %v376 = vpack.c.b16 %v332, %v330
  %v377 = vpack.c.b16 %v335, %v333
  %v378 = vpack.c.b16 %v336, %v334
  %v379 = vpack.c.b16 %v339, %v337
  %v380 = vpack.c.b16 %v340, %v338
  %v381 = vpack.c.b16 %v343, %v341
  %v382 = vpack.c.b16 %v344, %v342
  %v383 = vpack.c.b16 %v347, %v345
  %v384 = vpack.c.b16 %v348, %v346
  %v385 = vpack.c.b16 %v351, %v349
  %v386 = vpack.c.b16 %v352, %v350
  %v387 = vpack.c.b16 %v355, %v353
  %v388 = vpack.c.b16 %v356, %v354
  %421 = vmatprep.subr.bf16.mxu0 %v358
  %422 = vmatpush1.bf16.msra.mxu0 %v357
  %423 = vmatprep.subr.bf16.mxu0 %v360
  %424 = vmatpush1.bf16.msra.mxu0 %v359
  %425 = vmatprep.subr.bf16.mxu0 %v362
  %426 = vmatpush1.bf16.msra.mxu0 %v361
  %427 = vmatprep.subr.bf16.mxu0 %v364
  %428 = vmatpush1.bf16.msra.mxu0 %v363
  %429 = vmatprep.subr.bf16.mxu0 %v366
  %430 = vmatpush1.bf16.msra.mxu0 %v365
  %431 = vmatprep.subr.bf16.mxu0 %v368
  %432 = vmatpush1.bf16.msra.mxu0 %v367
  %433 = vmatprep.subr.bf16.mxu0 %v370
  %434 = vmatpush1.bf16.msra.mxu0 %v369
  %435 = vmatprep.subr.bf16.mxu0 %v372
  %436 = vmatpush1.bf16.msra.mxu0 %v371
  %437 = vmatprep.subr.bf16.mxu0 %v374
  %438 = vmatpush1.bf16.msra.mxu0 %v373
  %439 = vmatprep.subr.bf16.mxu0 %v376
  %440 = vmatpush1.bf16.msra.mxu0 %v375
  %441 = vmatprep.subr.bf16.mxu0 %v378
  %442 = vmatpush1.bf16.msra.mxu0 %v377
  %443 = vmatprep.subr.bf16.mxu0 %v380
  %444 = vmatpush1.bf16.msra.mxu0 %v379
  %445 = vmatprep.subr.bf16.mxu0 %v382
  %446 = vmatpush1.bf16.msra.mxu0 %v381
  %447 = vmatprep.subr.bf16.mxu0 %v384
  %448 = vmatpush1.bf16.msra.mxu0 %v383
  %449 = vmatprep.subr.bf16.mxu0 %v386
  %450 = vmatpush1.bf16.msra.mxu0 %v385
  %451 = vmatprep.subr.bf16.mxu0 %v388
  %452 = vmatpush1.bf16.msra.mxu0 %v387
  %453 = vmatprep.mubr.bf16.mxu0 %v190
  %454 = vmatmul.mubr.bf16.gmra.mrb[0].mxu0 %v189
  %v455 = vpop.f32.mrb[0].mxu0
  %v456 = vadd.f32 0.0, %v455
  %v457 = vpop.f32.mrb[0].mxu0
  %v458 = vadd.f32 0.0, %v457
  %v459 = vpop.f32.mrb[0].mxu0
  %v460 = vadd.f32 0.0, %v459
  %v461 = vpop.f32.mrb[0].mxu0
  %v462 = vadd.f32 0.0, %v461
  %463 = vmatprep.mubr.bf16.mxu0 %v192
  %464 = vmatmul.mubr.bf16.gmra.mrb[0].mxu0 %v191
  %v465 = vpop.f32.mrb[0].mxu0
  %v466 = vadd.f32 0.0, %v465
  %v467 = vpop.f32.mrb[0].mxu0
  %v468 = vadd.f32 0.0, %v467
  %v469 = vpop.f32.mrb[0].mxu0
  %v470 = vadd.f32 0.0, %v469
  %v471 = vpop.f32.mrb[0].mxu0
  %v472 = vadd.f32 0.0, %v471
  %473 = vmatprep.mubr.bf16.mxu0 %v194
  %474 = vmatmul.mubr.bf16.gmra.mrb[0].mxu0 %v193
  %v475 = vpop.f32.mrb[0].mxu0
  %v476 = vadd.f32 0.0, %v475
  %v477 = vpop.f32.mrb[0].mxu0
  %v478 = vadd.f32 0.0, %v477
  %v479 = vpop.f32.mrb[0].mxu0
  %v480 = vadd.f32 0.0, %v479
  %v481 = vpop.f32.mrb[0].mxu0
  %v482 = vadd.f32 0.0, %v481
  %483 = vmatprep.mubr.bf16.mxu0 %v196
  %484 = vmatmul.mubr.bf16.gmra.mrb[0].mxu0 %v195
  %v485 = vpop.f32.mrb[0].mxu0
  %v486 = vadd.f32 0.0, %v485
  %v487 = vpop.f32.mrb[0].mxu0
  %v488 = vadd.f32 0.0, %v487
  %v489 = vpop.f32.mrb[0].mxu0
  %v490 = vadd.f32 0.0, %v489
  %v491 = vpop.f32.mrb[0].mxu0
  %v492 = vadd.f32 0.0, %v491
  %493 = vmatprep.mubr.bf16.mxu0 %v198
  %494 = vmatmul.mubr.bf16.gmra.mrb[0].mxu0 %v197
  %v495 = vpop.f32.mrb[0].mxu0
  %v496 = vadd.f32 0.0, %v495
  %v497 = vpop.f32.mrb[0].mxu0
  %v498 = vadd.f32 0.0, %v497
  %v499 = vpop.f32.mrb[0].mxu0
  %v500 = vadd.f32 0.0, %v499
  %v501 = vpop.f32.mrb[0].mxu0
  %v502 = vadd.f32 0.0, %v501
  %503 = vmatprep.mubr.bf16.mxu0 %v200
  %504 = vmatmul.mubr.bf16.gmra.mrb[0].mxu0 %v199
  %v505 = vpop.f32.mrb[0].mxu0
  %v506 = vadd.f32 0.0, %v505
  %v507 = vpop.f32.mrb[0].mxu0
  %v508 = vadd.f32 0.0, %v507
  %v509 = vpop.f32.mrb[0].mxu0
  %v510 = vadd.f32 0.0, %v509
  %v511 = vpop.f32.mrb[0].mxu0
  %v512 = vadd.f32 0.0, %v511
  %513 = vmatprep.mubr.bf16.mxu0 %v202
  %514 = vmatmul.mubr.bf16.gmra.mrb[0].mxu0 %v201
  %v515 = vpop.f32.mrb[0].mxu0
  %v516 = vadd.f32 0.0, %v515
  %v517 = vpop.f32.mrb[0].mxu0
  %v518 = vadd.f32 0.0, %v517
  %v519 = vpop.f32.mrb[0].mxu0
  %v520 = vadd.f32 0.0, %v519
  %v521 = vpop.f32.mrb[0].mxu0
  %v522 = vadd.f32 0.0, %v521
  %523 = vmatprep.mubr.bf16.mxu0 %v204
  %524 = vmatmul.mubr.bf16.gmra.mrb[0].mxu0 %v203
  %v525 = vpop.f32.mrb[0].mxu0
  %v526 = vadd.f32 0.0, %v525
  %v527 = vpop.f32.mrb[0].mxu0
  %v528 = vadd.f32 0.0, %v527
  %v529 = vpop.f32.mrb[0].mxu0
  %v530 = vadd.f32 0.0, %v529
  %v531 = vpop.f32.mrb[0].mxu0
  %v532 = vadd.f32 0.0, %v531
  %533 = vmatprep.mubr.bf16.mxu0 %v206
  %534 = vmatmul.mubr.bf16.gmra.mrb[0].mxu0 %v205
  %v535 = vpop.f32.mrb[0].mxu0
  %v536 = vadd.f32 0.0, %v535
  %v537 = vpop.f32.mrb[0].mxu0
  %v538 = vadd.f32 0.0, %v537
  %v539 = vpop.f32.mrb[0].mxu0
  %v540 = vadd.f32 0.0, %v539
  %v541 = vpop.f32.mrb[0].mxu0
  %v542 = vadd.f32 0.0, %v541
  %543 = vmatprep.mubr.bf16.mxu0 %v208
  %544 = vmatmul.mubr.bf16.gmra.mrb[0].mxu0 %v207
  %v545 = vpop.f32.mrb[0].mxu0
  %v546 = vadd.f32 0.0, %v545
  %v547 = vpop.f32.mrb[0].mxu0
  %v548 = vadd.f32 0.0, %v547
  %v549 = vpop.f32.mrb[0].mxu0
  %v550 = vadd.f32 0.0, %v549
  %v551 = vpop.f32.mrb[0].mxu0
  %v552 = vadd.f32 0.0, %v551
  %553 = vmatprep.mubr.bf16.mxu0 %v210
  %554 = vmatmul.mubr.bf16.gmra.mrb[0].mxu0 %v209
  %v555 = vpop.f32.mrb[0].mxu0
  %v556 = vadd.f32 0.0, %v555
  %v557 = vpop.f32.mrb[0].mxu0
  %v558 = vadd.f32 0.0, %v557
  %v559 = vpop.f32.mrb[0].mxu0
  %v560 = vadd.f32 0.0, %v559
  %v561 = vpop.f32.mrb[0].mxu0
  %v562 = vadd.f32 0.0, %v561
  %563 = vmatprep.mubr.bf16.mxu0 %v212
  %564 = vmatmul.mubr.bf16.gmra.mrb[0].mxu0 %v211
  %v565 = vpop.f32.mrb[0].mxu0
  %v566 = vadd.f32 0.0, %v565
  %v567 = vpop.f32.mrb[0].mxu0
  %v568 = vadd.f32 0.0, %v567
  %v569 = vpop.f32.mrb[0].mxu0
  %v570 = vadd.f32 0.0, %v569
  %v571 = vpop.f32.mrb[0].mxu0
  %v572 = vadd.f32 0.0, %v571
  %573 = vmatprep.mubr.bf16.mxu0 %v214
  %574 = vmatmul.mubr.bf16.gmra.mrb[0].mxu0 %v213
  %v575 = vpop.f32.mrb[0].mxu0
  %v576 = vadd.f32 0.0, %v575
  %v577 = vpop.f32.mrb[0].mxu0
  %v578 = vadd.f32 0.0, %v577
  %v579 = vpop.f32.mrb[0].mxu0
  %v580 = vadd.f32 0.0, %v579
  %v581 = vpop.f32.mrb[0].mxu0
  %v582 = vadd.f32 0.0, %v581
  %583 = vmatprep.mubr.bf16.mxu0 %v216
  %584 = vmatmul.mubr.bf16.gmra.mrb[0].mxu0 %v215
  %v585 = vpop.f32.mrb[0].mxu0
  %v586 = vadd.f32 0.0, %v585
  %v587 = vpop.f32.mrb[0].mxu0
  %v588 = vadd.f32 0.0, %v587
  %v589 = vpop.f32.mrb[0].mxu0
  %v590 = vadd.f32 0.0, %v589
  %v591 = vpop.f32.mrb[0].mxu0
  %v592 = vadd.f32 0.0, %v591
  %593 = vmatprep.mubr.bf16.mxu0 %v218
  %594 = vmatmul.mubr.bf16.gmra.mrb[0].mxu0 %v217
  %v595 = vpop.f32.mrb[0].mxu0
  %v596 = vadd.f32 0.0, %v595
  %v597 = vpop.f32.mrb[0].mxu0
  %v598 = vadd.f32 0.0, %v597
  %v599 = vpop.f32.mrb[0].mxu0
  %v600 = vadd.f32 0.0, %v599
  %v601 = vpop.f32.mrb[0].mxu0
  %v602 = vadd.f32 0.0, %v601
  %603 = vmatprep.mubr.bf16.mxu0 %v220
  %604 = vmatmul.mubr.bf16.gmra.mrb[0].mxu0 %v219
  %v605 = vpop.f32.mrb[0].mxu0
  %v606 = vadd.f32 0.0, %v605
  %v607 = vpop.f32.mrb[0].mxu0
  %v608 = vadd.f32 0.0, %v607
  %v609 = vpop.f32.mrb[0].mxu0
  %v610 = vadd.f32 0.0, %v609
  %v611 = vpop.f32.mrb[0].mxu0
  %v612 = vadd.f32 0.0, %v611
  %613 = vmatprep.mubr.bf16.mxu0 %v222
  %614 = vmatmul.mubr.bf16.gmra.mrb[0].mxu0 %v221
  %v615 = vpop.f32.mrb[0].mxu0
  %v616 = vadd.f32 0.0, %v615
  %v617 = vpop.f32.mrb[0].mxu0
  %v618 = vadd.f32 0.0, %v617
  %v619 = vpop.f32.mrb[0].mxu0
  %v620 = vadd.f32 0.0, %v619
  %v621 = vpop.f32.mrb[0].mxu0
  %v622 = vadd.f32 0.0, %v621
  %623 = vmatprep.mubr.bf16.mxu0 %v224
  %624 = vmatmul.mubr.bf16.gmra.mrb[0].mxu0 %v223
  %v625 = vpop.f32.mrb[0].mxu0
  %v626 = vadd.f32 0.0, %v625
  %v627 = vpop.f32.mrb[0].mxu0
  %v628 = vadd.f32 0.0, %v627
  %v629 = vpop.f32.mrb[0].mxu0
  %v630 = vadd.f32 0.0, %v629
  %v631 = vpop.f32.mrb[0].mxu0
  %v632 = vadd.f32 0.0, %v631
  %633 = vdwg.mxu0
  %v634 = vpack.c.bf16 %v460, %v456
  %v635 = vpack.c.bf16 %v462, %v458
  %v636 = vpack.c.bf16 %v470, %v466
  %v637 = vpack.c.bf16 %v472, %v468
  %v638 = vpack.c.bf16 %v480, %v476
  %v639 = vpack.c.bf16 %v482, %v478
  %v640 = vpack.c.bf16 %v490, %v486
  %v641 = vpack.c.bf16 %v492, %v488
  %v642 = vpack.c.bf16 %v500, %v496
  %v643 = vpack.c.bf16 %v502, %v498
  %v644 = vpack.c.bf16 %v510, %v506
  %v645 = vpack.c.bf16 %v512, %v508
  %v646 = vpack.c.bf16 %v520, %v516
  %v647 = vpack.c.bf16 %v522, %v518
  %v648 = vpack.c.bf16 %v530, %v526
  %v649 = vpack.c.bf16 %v532, %v528
  %v650 = vpack.c.bf16 %v540, %v536
  %v651 = vpack.c.bf16 %v542, %v538
  %v652 = vpack.c.bf16 %v550, %v546
  %v653 = vpack.c.bf16 %v552, %v548
  %v654 = vpack.c.bf16 %v560, %v556
  %v655 = vpack.c.bf16 %v562, %v558
  %v656 = vpack.c.bf16 %v570, %v566
  %v657 = vpack.c.bf16 %v572, %v568
  %v658 = vpack.c.bf16 %v580, %v576
  %v659 = vpack.c.bf16 %v582, %v578
  %v660 = vpack.c.bf16 %v590, %v586
  %v661 = vpack.c.bf16 %v592, %v588
  %v662 = vpack.c.bf16 %v600, %v596
  %v663 = vpack.c.bf16 %v602, %v598
  %v664 = vpack.c.bf16 %v610, %v606
  %v665 = vpack.c.bf16 %v612, %v608
  %v666 = vpack.c.bf16 %v620, %v616
  %v667 = vpack.c.bf16 %v622, %v618
  %v668 = vpack.c.bf16 %v630, %v626
  %v669 = vpack.c.bf16 %v632, %v628
  %v706 = vunpack.c.l.b16 %v634
  %v707 = vunpack.c.l.b16 %v635
  %v708 = vunpack.c.h.b16 %v634
  %v709 = vunpack.c.h.b16 %v635
  %v710 = vunpack.c.l.b16 %v636
  %v711 = vunpack.c.l.b16 %v637
  %v712 = vunpack.c.h.b16 %v636
  %v713 = vunpack.c.h.b16 %v637
  %v714 = vunpack.c.l.b16 %v638
  %v715 = vunpack.c.l.b16 %v639
  %v716 = vunpack.c.h.b16 %v638
  %v717 = vunpack.c.h.b16 %v639
  %v718 = vunpack.c.l.b16 %v640
  %v719 = vunpack.c.l.b16 %v641
  %v720 = vunpack.c.h.b16 %v640
  %v721 = vunpack.c.h.b16 %v641
  %v722 = vunpack.c.l.b16 %v642
  %v723 = vunpack.c.l.b16 %v643
  %v724 = vunpack.c.h.b16 %v642
  %v725 = vunpack.c.h.b16 %v643
  %v726 = vunpack.c.l.b16 %v644
  %v727 = vunpack.c.l.b16 %v645
  %v728 = vunpack.c.h.b16 %v644
  %v729 = vunpack.c.h.b16 %v645
  %v730 = vunpack.c.l.b16 %v646
  %v731 = vunpack.c.l.b16 %v647
  %v732 = vunpack.c.h.b16 %v646
  %v733 = vunpack.c.h.b16 %v647
  %v734 = vunpack.c.l.b16 %v648
  %v735 = vunpack.c.l.b16 %v649
  %v736 = vunpack.c.h.b16 %v648
  %v737 = vunpack.c.h.b16 %v649
  %v738 = vunpack.c.l.b16 %v650
  %v739 = vunpack.c.l.b16 %v651
  %v740 = vunpack.c.h.b16 %v650
  %v741 = vunpack.c.h.b16 %v651
  %v742 = vunpack.c.l.b16 %v652
  %v743 = vunpack.c.l.b16 %v653
  %v744 = vunpack.c.h.b16 %v652
  %v745 = vunpack.c.h.b16 %v653
  %v746 = vunpack.c.l.b16 %v654
  %v747 = vunpack.c.l.b16 %v655
  %v748 = vunpack.c.h.b16 %v654
  %v749 = vunpack.c.h.b16 %v655
  %v750 = vunpack.c.l.b16 %v656
  %v751 = vunpack.c.l.b16 %v657
  %v752 = vunpack.c.h.b16 %v656
  %v753 = vunpack.c.h.b16 %v657
  %v754 = vunpack.c.l.b16 %v658
  %v755 = vunpack.c.l.b16 %v659
  %v756 = vunpack.c.h.b16 %v658
  %v757 = vunpack.c.h.b16 %v659
  %v758 = vunpack.c.l.b16 %v660
  %v759 = vunpack.c.l.b16 %v661
  %v760 = vunpack.c.h.b16 %v660
  %v761 = vunpack.c.h.b16 %v661
  %v762 = vunpack.c.l.b16 %v662
  %v763 = vunpack.c.l.b16 %v663
  %v764 = vunpack.c.h.b16 %v662
  %v765 = vunpack.c.h.b16 %v663
  %v766 = vunpack.c.l.b16 %v664
  %v767 = vunpack.c.l.b16 %v665
  %v768 = vunpack.c.h.b16 %v664
  %v769 = vunpack.c.h.b16 %v665
  %v770 = vunpack.c.l.b16 %v666
  %v771 = vunpack.c.l.b16 %v667
  %v772 = vunpack.c.h.b16 %v666
  %v773 = vunpack.c.h.b16 %v667
  %v774 = vunpack.c.l.b16 %v668
  %v775 = vunpack.c.l.b16 %v669
  %v776 = vunpack.c.h.b16 %v668
  %v777 = vunpack.c.h.b16 %v669
  %v778 = vpack.c.b16 %v707, %v706
  %v779 = vpack.c.b16 %v709, %v708
  %v780 = vpack.c.b16 %v711, %v710
  %v781 = vpack.c.b16 %v713, %v712
  %v782 = vpack.c.b16 %v715, %v714
  %v783 = vpack.c.b16 %v717, %v716
  %v784 = vpack.c.b16 %v719, %v718
  %v785 = vpack.c.b16 %v721, %v720
  %v786 = vpack.c.b16 %v723, %v722
  %v787 = vpack.c.b16 %v725, %v724
  %v788 = vpack.c.b16 %v727, %v726
  %v789 = vpack.c.b16 %v729, %v728
  %v790 = vpack.c.b16 %v731, %v730
  %v791 = vpack.c.b16 %v733, %v732
  %v792 = vpack.c.b16 %v735, %v734
  %v793 = vpack.c.b16 %v737, %v736
  %v794 = vpack.c.b16 %v739, %v738
  %v795 = vpack.c.b16 %v741, %v740
  %v796 = vpack.c.b16 %v743, %v742
  %v797 = vpack.c.b16 %v745, %v744
  %v798 = vpack.c.b16 %v747, %v746
  %v799 = vpack.c.b16 %v749, %v748
  %v800 = vpack.c.b16 %v751, %v750
  %v801 = vpack.c.b16 %v753, %v752
  %v802 = vpack.c.b16 %v755, %v754
  %v803 = vpack.c.b16 %v757, %v756
  %v804 = vpack.c.b16 %v759, %v758
  %v805 = vpack.c.b16 %v761, %v760
  %v806 = vpack.c.b16 %v763, %v762
  %v807 = vpack.c.b16 %v765, %v764
  %v808 = vpack.c.b16 %v767, %v766
  %v809 = vpack.c.b16 %v769, %v768
  %v810 = vpack.c.b16 %v771, %v770
  %v811 = vpack.c.b16 %v773, %v772
  %v812 = vpack.c.b16 %v775, %v774
  %v813 = vpack.c.b16 %v777, %v776
  %850 = vst [vmem:[%s2] sm:$0xff] %v778
  %851 = vst [vmem:[%s2 + $0x8] sm:$0xff] %v779
  %852 = vst [vmem:[%s2 + $0x10] sm:$0xff] %v780
  %853 = vst [vmem:[%s2 + $0x18] sm:$0xff] %v781
  %854 = vst [vmem:[%s2 + $0x20] sm:$0xff] %v782
  %855 = vst [vmem:[%s2 + $0x28] sm:$0xff] %v783
  %856 = vst [vmem:[%s2 + $0x30] sm:$0xff] %v784
  %857 = vst [vmem:[%s2 + $0x38] sm:$0xff] %v785
  %858 = vst [vmem:[%s2 + $0x40] sm:$0xff] %v786
  %859 = vst [vmem:[%s2 + $0x48] sm:$0xff] %v787
  %860 = vst [vmem:[%s2 + $0x50] sm:$0xff] %v788
  %861 = vst [vmem:[%s2 + $0x58] sm:$0xff] %v789
  %862 = vst [vmem:[%s2 + $0x60] sm:$0xff] %v790
  %863 = vst [vmem:[%s2 + $0x68] sm:$0xff] %v791
  %864 = vst [vmem:[%s2 + $0x70] sm:$0xff] %v792
  %865 = vst [vmem:[%s2 + $0x78] sm:$0xff] %v793
  %866 = vst [vmem:[%s2 + $0x80] sm:$0xff] %v794
  %867 = vst [vmem:[%s2 + $0x88] sm:$0xff] %v795
  %868 = vst [vmem:[%s2 + $0x90] sm:$0xff] %v796
  %869 = vst [vmem:[%s2 + $0x98] sm:$0xff] %v797
  %870 = vst [vmem:[%s2 + $0xa0] sm:$0xff] %v798
  %871 = vst [vmem:[%s2 + $0xa8] sm:$0xff] %v799
  %872 = vst [vmem:[%s2 + $0xb0] sm:$0xff] %v800
  %873 = vst [vmem:[%s2 + $0xb8] sm:$0xff] %v801
  %874 = vst [vmem:[%s2 + $0xc0] sm:$0xff] %v802
  %875 = vst [vmem:[%s2 + $0xc8] sm:$0xff] %v803
  %876 = vst [vmem:[%s2 + $0xd0] sm:$0xff] %v804
  %877 = vst [vmem:[%s2 + $0xd8] sm:$0xff] %v805
  %878 = vst [vmem:[%s2 + $0xe0] sm:$0xff] %v806
  %879 = vst [vmem:[%s2 + $0xe8] sm:$0xff] %v807
  %880 = vst [vmem:[%s2 + $0xf0] sm:$0xff] %v808
  %881 = vst [vmem:[%s2 + $0xf8] sm:$0xff] %v809
  %882 = vst [vmem:[%s2 + $0x100] sm:$0xff] %v810
  %883 = vst [vmem:[%s2 + $0x108] sm:$0xff] %v811
  %884 = vst [vmem:[%s2 + $0x110] sm:$0xff] %v812
  %885 = vst [vmem:[%s2 + $0x118] sm:$0xff] %v813
  %v886 = vadd.f32 %v456, %v460
  %v887 = vadd.f32 %v886, %v466
  %v888 = vadd.f32 %v887, %v470
  %v889 = vadd.f32 %v888, %v476
  %v890 = vadd.f32 %v889, %v480
  %v891 = vadd.f32 %v890, %v486
  %v892 = vadd.f32 %v891, %v490
  %v893 = vadd.f32 %v892, %v496
  %v894 = vadd.f32 %v893, %v500
  %v895 = vadd.f32 %v894, %v506
  %v896 = vadd.f32 %v895, %v510
  %v897 = vadd.f32 %v896, %v516
  %v898 = vadd.f32 %v897, %v520
  %v899 = vadd.f32 %v898, %v526
  %v900 = vadd.f32 %v899, %v530
  %v901 = vadd.f32 %v900, %v536
  %v902 = vadd.f32 %v901, %v540
  %v903 = vadd.f32 %v902, %v546
  %v904 = vadd.f32 %v903, %v550
  %v905 = vadd.f32 %v904, %v556
  %v906 = vadd.f32 %v905, %v560
  %v907 = vadd.f32 %v906, %v566
  %v908 = vadd.f32 %v907, %v570
  %v909 = vadd.f32 %v908, %v576
  %v910 = vadd.f32 %v909, %v580
  %v911 = vadd.f32 %v910, %v586
  %v912 = vadd.f32 %v911, %v590
  %v913 = vadd.f32 %v912, %v596
  %v914 = vadd.f32 %v913, %v600
  %v915 = vadd.f32 %v914, %v606
  %v916 = vadd.f32 %v915, %v610
  %v917 = vadd.f32 %v916, %v616
  %v918 = vadd.f32 %v917, %v620
  %v919 = vadd.f32 %v918, %v626
  %v920 = vadd.f32 %v919, %v630
  %v921 = vrot.slane %v920, 4
  %v922 = vadd.f32 %v920, %v921
  %v923 = vrot.slane %v922, 2
  %v924 = vadd.f32 %v922, %v923
  %v925 = vrot.slane %v924, 1
  %v926 = vadd.f32 %v924, %v925
  %v927 = vadd.f32 %v458, %v462
  %v928 = vadd.f32 %v927, %v468
  %v929 = vadd.f32 %v928, %v472
  %v930 = vadd.f32 %v929, %v478
  %v931 = vadd.f32 %v930, %v482
  %v932 = vadd.f32 %v931, %v488
  %v933 = vadd.f32 %v932, %v492
  %v934 = vadd.f32 %v933, %v498
  %v935 = vadd.f32 %v934, %v502
  %v936 = vadd.f32 %v935, %v508
  %v937 = vadd.f32 %v936, %v512
  %v938 = vadd.f32 %v937, %v518
  %v939 = vadd.f32 %v938, %v522
  %v940 = vadd.f32 %v939, %v528
  %v941 = vadd.f32 %v940, %v532
  %v942 = vadd.f32 %v941, %v538
  %v943 = vadd.f32 %v942, %v542
  %v944 = vadd.f32 %v943, %v548
  %v945 = vadd.f32 %v944, %v552
  %v946 = vadd.f32 %v945, %v558
  %v947 = vadd.f32 %v946, %v562
  %v948 = vadd.f32 %v947, %v568
  %v949 = vadd.f32 %v948, %v572
  %v950 = vadd.f32 %v949, %v578
  %v951 = vadd.f32 %v950, %v582
  %v952 = vadd.f32 %v951, %v588
  %v953 = vadd.f32 %v952, %v592
  %v954 = vadd.f32 %v953, %v598
  %v955 = vadd.f32 %v954, %v602
  %v956 = vadd.f32 %v955, %v608
  %v957 = vadd.f32 %v956, %v612
  %v958 = vadd.f32 %v957, %v618
  %v959 = vadd.f32 %v958, %v622
  %v960 = vadd.f32 %v959, %v628
  %v961 = vadd.f32 %v960, %v632
  %v962 = vrot.slane %v961, 4
  %v963 = vadd.f32 %v961, %v962
  %v964 = vrot.slane %v963, 2
  %v965 = vadd.f32 %v963, %v964
  %v966 = vrot.slane %v965, 1
  %v967 = vadd.f32 %v965, %v966
  %v968 = vmul.f32 %v456, %v456
  %v969 = vmul.f32 %v458, %v458
  %v970 = vmul.f32 %v460, %v460
  %v971 = vmul.f32 %v462, %v462
  %v972 = vmul.f32 %v466, %v466
  %v973 = vmul.f32 %v468, %v468
  %v974 = vmul.f32 %v470, %v470
  %v975 = vmul.f32 %v472, %v472
  %v976 = vmul.f32 %v476, %v476
  %v977 = vmul.f32 %v478, %v478
  %v978 = vmul.f32 %v480, %v480
  %v979 = vmul.f32 %v482, %v482
  %v980 = vmul.f32 %v486, %v486
  %v981 = vmul.f32 %v488, %v488
  %v982 = vmul.f32 %v490, %v490
  %v983 = vmul.f32 %v492, %v492
  %v984 = vmul.f32 %v496, %v496
  %v985 = vmul.f32 %v498, %v498
  %v986 = vmul.f32 %v500, %v500
  %v987 = vmul.f32 %v502, %v502
  %v988 = vmul.f32 %v506, %v506
  %v989 = vmul.f32 %v508, %v508
  %v990 = vmul.f32 %v510, %v510
  %v991 = vmul.f32 %v512, %v512
  %v992 = vmul.f32 %v516, %v516
  %v993 = vmul.f32 %v518, %v518
  %v994 = vmul.f32 %v520, %v520
  %v995 = vmul.f32 %v522, %v522
  %v996 = vmul.f32 %v526, %v526
  %v997 = vmul.f32 %v528, %v528
  %v998 = vmul.f32 %v530, %v530
  %v999 = vmul.f32 %v532, %v532
  %v1000 = vmul.f32 %v536, %v536
  %v1001 = vmul.f32 %v538, %v538
  %v1002 = vmul.f32 %v540, %v540
  %v1003 = vmul.f32 %v542, %v542
  %v1004 = vmul.f32 %v546, %v546
  %v1005 = vmul.f32 %v548, %v548
  %v1006 = vmul.f32 %v550, %v550
  %v1007 = vmul.f32 %v552, %v552
  %v1008 = vmul.f32 %v556, %v556
  %v1009 = vmul.f32 %v558, %v558
  %v1010 = vmul.f32 %v560, %v560
  %v1011 = vmul.f32 %v562, %v562
  %v1012 = vmul.f32 %v566, %v566
  %v1013 = vmul.f32 %v568, %v568
  %v1014 = vmul.f32 %v570, %v570
  %v1015 = vmul.f32 %v572, %v572
  %v1016 = vmul.f32 %v576, %v576
  %v1017 = vmul.f32 %v578, %v578
  %v1018 = vmul.f32 %v580, %v580
  %v1019 = vmul.f32 %v582, %v582
  %v1020 = vmul.f32 %v586, %v586
  %v1021 = vmul.f32 %v588, %v588
  %v1022 = vmul.f32 %v590, %v590
  %v1023 = vmul.f32 %v592, %v592
  %v1024 = vmul.f32 %v596, %v596
  %v1025 = vmul.f32 %v598, %v598
  %v1026 = vmul.f32 %v600, %v600
  %v1027 = vmul.f32 %v602, %v602
  %v1028 = vmul.f32 %v606, %v606
  %v1029 = vmul.f32 %v608, %v608
  %v1030 = vmul.f32 %v610, %v610
  %v1031 = vmul.f32 %v612, %v612
  %v1032 = vmul.f32 %v616, %v616
  %v1033 = vmul.f32 %v618, %v618
  %v1034 = vmul.f32 %v620, %v620
  %v1035 = vmul.f32 %v622, %v622
  %v1036 = vmul.f32 %v626, %v626
  %v1037 = vmul.f32 %v628, %v628
  %v1038 = vmul.f32 %v630, %v630
  %v1039 = vmul.f32 %v632, %v632
  %v1040 = vadd.f32 %v968, %v970
  %v1041 = vadd.f32 %v1040, %v972
  %v1042 = vadd.f32 %v1041, %v974
  %v1043 = vadd.f32 %v1042, %v976
  %v1044 = vadd.f32 %v1043, %v978
  %v1045 = vadd.f32 %v1044, %v980
  %v1046 = vadd.f32 %v1045, %v982
  %v1047 = vadd.f32 %v1046, %v984
  %v1048 = vadd.f32 %v1047, %v986
  %v1049 = vadd.f32 %v1048, %v988
  %v1050 = vadd.f32 %v1049, %v990
  %v1051 = vadd.f32 %v1050, %v992
  %v1052 = vadd.f32 %v1051, %v994
  %v1053 = vadd.f32 %v1052, %v996
  %v1054 = vadd.f32 %v1053, %v998
  %v1055 = vadd.f32 %v1054, %v1000
  %v1056 = vadd.f32 %v1055, %v1002
  %v1057 = vadd.f32 %v1056, %v1004
  %v1058 = vadd.f32 %v1057, %v1006
  %v1059 = vadd.f32 %v1058, %v1008
  %v1060 = vadd.f32 %v1059, %v1010
  %v1061 = vadd.f32 %v1060, %v1012
  %v1062 = vadd.f32 %v1061, %v1014
  %v1063 = vadd.f32 %v1062, %v1016
  %v1064 = vadd.f32 %v1063, %v1018
  %v1065 = vadd.f32 %v1064, %v1020
  %v1066 = vadd.f32 %v1065, %v1022
  %v1067 = vadd.f32 %v1066, %v1024
  %v1068 = vadd.f32 %v1067, %v1026
  %v1069 = vadd.f32 %v1068, %v1028
  %v1070 = vadd.f32 %v1069, %v1030
  %v1071 = vadd.f32 %v1070, %v1032
  %v1072 = vadd.f32 %v1071, %v1034
  %v1073 = vadd.f32 %v1072, %v1036
  %v1074 = vadd.f32 %v1073, %v1038
  %v1075 = vrot.slane %v1074, 4
  %v1076 = vadd.f32 %v1074, %v1075
  %v1077 = vrot.slane %v1076, 2
  %v1078 = vadd.f32 %v1076, %v1077
  %v1079 = vrot.slane %v1078, 1
  %v1080 = vadd.f32 %v1078, %v1079
  %v1081 = vadd.f32 %v969, %v971
  %v1082 = vadd.f32 %v1081, %v973
  %v1083 = vadd.f32 %v1082, %v975
  %v1084 = vadd.f32 %v1083, %v977
  %v1085 = vadd.f32 %v1084, %v979
  %v1086 = vadd.f32 %v1085, %v981
  %v1087 = vadd.f32 %v1086, %v983
  %v1088 = vadd.f32 %v1087, %v985
  %v1089 = vadd.f32 %v1088, %v987
  %v1090 = vadd.f32 %v1089, %v989
  %v1091 = vadd.f32 %v1090, %v991
  %v1092 = vadd.f32 %v1091, %v993
  %v1093 = vadd.f32 %v1092, %v995
  %v1094 = vadd.f32 %v1093, %v997
  %v1095 = vadd.f32 %v1094, %v999
  %v1096 = vadd.f32 %v1095, %v1001
  %v1097 = vadd.f32 %v1096, %v1003
  %v1098 = vadd.f32 %v1097, %v1005
  %v1099 = vadd.f32 %v1098, %v1007
  %v1100 = vadd.f32 %v1099, %v1009
  %v1101 = vadd.f32 %v1100, %v1011
  %v1102 = vadd.f32 %v1101, %v1013
  %v1103 = vadd.f32 %v1102, %v1015
  %v1104 = vadd.f32 %v1103, %v1017
  %v1105 = vadd.f32 %v1104, %v1019
  %v1106 = vadd.f32 %v1105, %v1021
  %v1107 = vadd.f32 %v1106, %v1023
  %v1108 = vadd.f32 %v1107, %v1025
  %v1109 = vadd.f32 %v1108, %v1027
  %v1110 = vadd.f32 %v1109, %v1029
  %v1111 = vadd.f32 %v1110, %v1031
  %v1112 = vadd.f32 %v1111, %v1033
  %v1113 = vadd.f32 %v1112, %v1035
  %v1114 = vadd.f32 %v1113, %v1037
  %v1115 = vadd.f32 %v1114, %v1039
  %v1116 = vrot.slane %v1115, 4
  %v1117 = vadd.f32 %v1115, %v1116
  %v1118 = vrot.slane %v1117, 2
  %v1119 = vadd.f32 %v1117, %v1118
  %v1120 = vrot.slane %v1119, 1
  %v1121 = vadd.f32 %v1119, %v1120
  %vm1122 = vcmask 1040384
  %v1123 = vsel %vm1122, %v926, %v1080
  %v1124 = vsel %vm1122, %v967, %v1121
  %v1127 = vcombine.low %v1123, %v1124
  %v1129 = vunpack.c.l.s4 1983009808
  %v1130 = vunpack.c.0.s8 %v1129
  %v1131 = vlaneseq
  %v1132 = vshrl.u32 %v1131, 7
  %v1133 = vsub.s32 %v1130, %v1132
  %v1134 = vrot.slane %v1127, %v1133
  %1136 = vst [vmem:[%s3] sm:$0xf] %v1134
  // Predicated region
  $region10: #{spectral_transform_forward.7} parent=0 // pred_check
    _
  $region11: #{spectral_transform_forward.7} parent=0 // pred_check_branch
    %1138 = sbr.rel (0) target = $region13
  $region12: #{spectral_transform_forward.7} parent=0 // pred_region
    _
  $region13: #{spectral_transform_forward.7} parent=0 // pred_fallthru
    _
  // Predicated region
  $region14: #{spectral_transform_forward.7} parent=0 // pred_check
    _
  $region15: #{spectral_transform_forward.7} parent=0 // pred_check_branch
    %1140 = sbr.rel (0) target = $region17
  $region16: #{spectral_transform_forward.7} parent=0 // pred_region
    _
  $region17: #{spectral_transform_forward.7} parent=0 // pred_fallthru
    _
  // Predicated region
  $region18: #{spectral_transform_forward.7} parent=0 // pred_check
    _
  $region19: #{spectral_transform_forward.7} parent=0 // pred_check_branch
    %1142 = sbr.rel (0) target = $region21
  $region20: #{spectral_transform_forward.7} parent=0 // pred_region
    _
  $region21: #{spectral_transform_forward.7} parent=0 // pred_fallthru
    _
  // Predicated region
  $region22: #{spectral_transform_forward.7} parent=0 // pred_check
    _
  $region23: #{spectral_transform_forward.7} parent=0 // pred_check_branch
    %1144 = sbr.rel (0) target = $region25
  $region24: #{spectral_transform_forward.7} parent=0 // pred_region
    _
  $region25: #{spectral_transform_forward.7} parent=0 // pred_fallthru
    _

// kernel: reverse.1
$region0: #{reverse.1}
  #allocation0 [shape = 's32[1]{0}', space=sflag, size = 0x4, scoped, tag = 'scoped memory for reverse.1']
  %s0 = inlined_call_operand.vmem [shape: f32[2,128,16,7], index: 0, kind: input, shape index: {}]
  %s1 = inlined_call_operand.vmem [shape: f32[2,128,16,7], index: 1, kind: output, shape index: {}]
  %s2 = scalar_lea.vmem %s0, 96
  %v3 = vld [vmem:[%s2] sm:$0xff]
  %4 = vst [vmem:[%s1] sm:$0xff] %v3
  %s5 = scalar_lea.vmem %s0, 208
  %v6 = vld [vmem:[%s5] sm:$0xff]
  %s7 = scalar_lea.vmem %s1, 112
  %8 = vst [vmem:[%s7] sm:$0xff] %v6
  %s9 = scalar_lea.vmem %s0, 80
  %v10 = vld [vmem:[%s9] sm:$0xff]
  %s11 = scalar_lea.vmem %s1, 16
  %12 = vst [vmem:[%s11] sm:$0xff] %v10
  %s13 = scalar_lea.vmem %s0, 192
  %v14 = vld [vmem:[%s13] sm:$0xff]
  %s15 = scalar_lea.vmem %s1, 128
  %16 = vst [vmem:[%s15] sm:$0xff] %v14
  %s17 = scalar_lea.vmem %s0, 64
  %v18 = vld [vmem:[%s17] sm:$0xff]
  %s19 = scalar_lea.vmem %s1, 32
  %20 = vst [vmem:[%s19] sm:$0xff] %v18
  %s21 = scalar_lea.vmem %s0, 176
  %v22 = vld [vmem:[%s21] sm:$0xff]
  %s23 = scalar_lea.vmem %s1, 144
  %24 = vst [vmem:[%s23] sm:$0xff] %v22
  %s25 = scalar_lea.vmem %s0, 48
  %v26 = vld [vmem:[%s25] sm:$0xff]
  %s27 = scalar_lea.vmem %s1, 48
  %28 = vst [vmem:[%s27] sm:$0xff] %v26
  %s29 = scalar_lea.vmem %s0, 160
  %v30 = vld [vmem:[%s29] sm:$0xff]
  %s31 = scalar_lea.vmem %s1, 160
  %32 = vst [vmem:[%s31] sm:$0xff] %v30
  %s33 = scalar_lea.vmem %s0, 32
  %v34 = vld [vmem:[%s33] sm:$0xff]
  %s35 = scalar_lea.vmem %s1, 64
  %36 = vst [vmem:[%s35] sm:$0xff] %v34
  %s37 = scalar_lea.vmem %s0, 144
  %v38 = vld [vmem:[%s37] sm:$0xff]
  %s39 = scalar_lea.vmem %s1, 176
  %40 = vst [vmem:[%s39] sm:$0xff] %v38
  %s41 = scalar_lea.vmem %s0, 16
  %v42 = vld [vmem:[%s41] sm:$0xff]
  %s43 = scalar_lea.vmem %s1, 80
  %44 = vst [vmem:[%s43] sm:$0xff] %v42
  %s45 = scalar_lea.vmem %s0, 128
  %v46 = vld [vmem:[%s45] sm:$0xff]
  %s47 = scalar_lea.vmem %s1, 192
  %48 = vst [vmem:[%s47] sm:$0xff] %v46
  %v49 = vld [vmem:[%s0] sm:$0xff]
  %s50 = scalar_lea.vmem %s1, 96
  %51 = vst [vmem:[%s50] sm:$0xff] %v49
  %s52 = scalar_lea.vmem %s0, 112
  %v53 = vld [vmem:[%s52] sm:$0xff]
  %s54 = scalar_lea.vmem %s1, 208
  %55 = vst [vmem:[%s54] sm:$0xff] %v53
  %s56 = scalar_lea.vmem %s0, 104
  %v57 = vld [vmem:[%s56] sm:$0xff]
  %s58 = scalar_lea.vmem %s1, 8
  %59 = vst [vmem:[%s58] sm:$0xff] %v57
  %s60 = scalar_lea.vmem %s0, 216
  %v61 = vld [vmem:[%s60] sm:$0xff]
  %s62 = scalar_lea.vmem %s1, 120
  %63 = vst [vmem:[%s62] sm:$0xff] %v61
  %s64 = scalar_lea.vmem %s0, 88
  %v65 = vld [vmem:[%s64] sm:$0xff]
  %s66 = scalar_lea.vmem %s1, 24
  %67 = vst [vmem:[%s66] sm:$0xff] %v65
  %s68 = scalar_lea.vmem %s0, 200
  %v69 = vld [vmem:[%s68] sm:$0xff]
  %s70 = scalar_lea.vmem %s1, 136
  %71 = vst [vmem:[%s70] sm:$0xff] %v69
  %s72 = scalar_lea.vmem %s0, 72
  %v73 = vld [vmem:[%s72] sm:$0xff]
  %s74 = scalar_lea.vmem %s1, 40
  %75 = vst [vmem:[%s74] sm:$0xff] %v73
  %s76 = scalar_lea.vmem %s0, 184
  %v77 = vld [vmem:[%s76] sm:$0xff]
  %s78 = scalar_lea.vmem %s1, 152
  %79 = vst [vmem:[%s78] sm:$0xff] %v77
  %s80 = scalar_lea.vmem %s0, 56
  %v81 = vld [vmem:[%s80] sm:$0xff]
  %s82 = scalar_lea.vmem %s1, 56
  %83 = vst [vmem:[%s82] sm:$0xff] %v81
  %s84 = scalar_lea.vmem %s0, 168
  %v85 = vld [vmem:[%s84] sm:$0xff]
  %s86 = scalar_lea.vmem %s1, 168
  %87 = vst [vmem:[%s86] sm:$0xff] %v85
  %s88 = scalar_lea.vmem %s0, 40
  %v89 = vld [vmem:[%s88] sm:$0xff]
  %s90 = scalar_lea.vmem %s1, 72
  %91 = vst [vmem:[%s90] sm:$0xff] %v89
  %s92 = scalar_lea.vmem %s0, 152
  %v93 = vld [vmem:[%s92] sm:$0xff]
  %s94 = scalar_lea.vmem %s1, 184
  %95 = vst [vmem:[%s94] sm:$0xff] %v93
  %s96 = scalar_lea.vmem %s0, 24
  %v97 = vld [vmem:[%s96] sm:$0xff]
  %s98 = scalar_lea.vmem %s1, 88
  %99 = vst [vmem:[%s98] sm:$0xff] %v97
  %s100 = scalar_lea.vmem %s0, 136
  %v101 = vld [vmem:[%s100] sm:$0xff]
  %s102 = scalar_lea.vmem %s1, 200
  %103 = vst [vmem:[%s102] sm:$0xff] %v101
  %s104 = scalar_lea.vmem %s0, 8
  %v105 = vld [vmem:[%s104] sm:$0xff]
  %s106 = scalar_lea.vmem %s1, 104
  %107 = vst [vmem:[%s106] sm:$0xff] %v105
  %s108 = scalar_lea.vmem %s0, 120
  %v109 = vld [vmem:[%s108] sm:$0xff]
  %s110 = scalar_lea.vmem %s1, 216
  %111 = vst [vmem:[%s110] sm:$0xff] %v109

// kernel: spectral_transform_forward.9
$region0: #{spectral_transform_forward.9}
  #allocation0 [shape = 'u32[]', space=smem, size = 0x4, offset = 0x4, fixed_abs, tag = 'smem constant byte address 0x4 - core index']
  #allocation1 [shape = 'u32[144,128]{1,0:T(1,128)}', space=vmem, size = 0x12000, scoped, tag = 'internal scratch']
  %s0 = inlined_call_operand.vmem [shape: bf16[512,128], index: 0, kind: input, shape index: {}]
  %s1 = inlined_call_operand.vmem [shape: bf16[512,128], index: 1, kind: input, shape index: {}]
  %s2 = inlined_call_operand.vmem [shape: bf16[128,128], index: 2, kind: input, shape index: {}]
  %s3 = inlined_call_operand.vmem [shape: f32[512,128], index: 3, kind: output, shape index: {}]
  %s4 = sld [smem:[#allocation0]]
  $region22: #{spectral_transform_forward.9} parent=0
    _
  %s6 = ssub.s32 1, %s4
  %s7 = scalar_select 0, %s6, %s4
  // Predicated region
  $region2: #{spectral_transform_forward.9} parent=0 // pred_check
    _
  $region3: #{spectral_transform_forward.9} parent=0 // pred_check_branch
    %9 = sbr.rel (0) target = $region5
  $region4: #{spectral_transform_forward.9} parent=0 // pred_region
    _
  $region5: #{spectral_transform_forward.9} parent=0 // pred_fallthru
    _
  // Predicated region
  $region6: #{spectral_transform_forward.9} parent=0 // pred_check
    _
  $region7: #{spectral_transform_forward.9} parent=0 // pred_check_branch
    %11 = sbr.rel (0) target = $region9
  $region8: #{spectral_transform_forward.9} parent=0 // pred_region
    _
  $region9: #{spectral_transform_forward.9} parent=0 // pred_fallthru
    _
  // Predicated region
  $region10: #{spectral_transform_forward.9} parent=0 // pred_check
    _
  $region11: #{spectral_transform_forward.9} parent=0 // pred_check_branch
    %13 = sbr.rel (0) target = $region13
  $region12: #{spectral_transform_forward.9} parent=0 // pred_region
    _
  $region13: #{spectral_transform_forward.9} parent=0 // pred_fallthru
    _
  %v15 = vld [vmem:[%s0] sm:$0xf]
  %v16 = vld [vmem:[%s0 + $0x4] sm:$0xf]
  %v17 = vld [vmem:[%s0 + $0x8] sm:$0xf]
  %v18 = vld [vmem:[%s0 + $0xc] sm:$0xf]
  %v19 = vld [vmem:[%s0 + $0x10] sm:$0xf]
  %v20 = vld [vmem:[%s0 + $0x14] sm:$0xf]
  %v21 = vld [vmem:[%s0 + $0x18] sm:$0xf]
  %v22 = vld [vmem:[%s0 + $0x1c] sm:$0xf]
  %v23 = vld [vmem:[%s0 + $0x20] sm:$0xf]
  %v24 = vld [vmem:[%s0 + $0x24] sm:$0xf]
  %v25 = vld [vmem:[%s0 + $0x28] sm:$0xf]
  %v26 = vld [vmem:[%s0 + $0x2c] sm:$0xf]
  %v27 = vld [vmem:[%s0 + $0x30] sm:$0xf]
  %v28 = vld [vmem:[%s0 + $0x34] sm:$0xf]
  %v29 = vld [vmem:[%s0 + $0x38] sm:$0xf]
  %v30 = vld [vmem:[%s0 + $0x3c] sm:$0xf]
  %v31 = vld [vmem:[%s0 + $0x40] sm:$0xf]
  %v32 = vld [vmem:[%s0 + $0x44] sm:$0xf]
  %v33 = vld [vmem:[%s0 + $0x48] sm:$0xf]
  %v34 = vld [vmem:[%s0 + $0x4c] sm:$0xf]
  %v35 = vld [vmem:[%s0 + $0x50] sm:$0xf]
  %v36 = vld [vmem:[%s0 + $0x54] sm:$0xf]
  %v37 = vld [vmem:[%s0 + $0x58] sm:$0xf]
  %v38 = vld [vmem:[%s0 + $0x5c] sm:$0xf]
  %v39 = vld [vmem:[%s0 + $0x60] sm:$0xf]
  %v40 = vld [vmem:[%s0 + $0x64] sm:$0xf]
  %v41 = vld [vmem:[%s0 + $0x68] sm:$0xf]
  %v42 = vld [vmem:[%s0 + $0x6c] sm:$0xf]
  %v43 = vld [vmem:[%s0 + $0x70] sm:$0xf]
  %v44 = vld [vmem:[%s0 + $0x74] sm:$0xf]
  %v45 = vld [vmem:[%s0 + $0x78] sm:$0xf]
  %v46 = vld [vmem:[%s0 + $0x7c] sm:$0xf]
  %v47 = vld [vmem:[%s0 + $0x80] sm:$0xf]
  %v48 = vld [vmem:[%s0 + $0x84] sm:$0xf]
  %v49 = vld [vmem:[%s0 + $0x88] sm:$0xf]
  %v50 = vld [vmem:[%s0 + $0x8c] sm:$0xf]
  %v51 = vld [vmem:[%s0 + $0x90] sm:$0xf]
  %v52 = vld [vmem:[%s0 + $0x94] sm:$0xf]
  %v53 = vld [vmem:[%s0 + $0x98] sm:$0xf]
  %v54 = vld [vmem:[%s0 + $0x9c] sm:$0xf]
  %v55 = vld [vmem:[%s0 + $0xa0] sm:$0xf]
  %v56 = vld [vmem:[%s0 + $0xa4] sm:$0xf]
  %v57 = vld [vmem:[%s0 + $0xa8] sm:$0xf]
  %v58 = vld [vmem:[%s0 + $0xac] sm:$0xf]
  %v59 = vld [vmem:[%s0 + $0xb0] sm:$0xf]
  %v60 = vld [vmem:[%s0 + $0xb4] sm:$0xf]
  %v61 = vld [vmem:[%s0 + $0xb8] sm:$0xf]
  %v62 = vld [vmem:[%s0 + $0xbc] sm:$0xf]
  %v63 = vld [vmem:[%s0 + $0xc0] sm:$0xf]
  %v64 = vld [vmem:[%s0 + $0xc4] sm:$0xf]
  %v65 = vld [vmem:[%s0 + $0xc8] sm:$0xf]
  %v66 = vld [vmem:[%s0 + $0xcc] sm:$0xf]
  %v67 = vld [vmem:[%s0 + $0xd0] sm:$0xf]
  %v68 = vld [vmem:[%s0 + $0xd4] sm:$0xf]
  %v69 = vld [vmem:[%s0 + $0xd8] sm:$0xf]
  %v70 = vld [vmem:[%s0 + $0xdc] sm:$0xf]
  %v71 = vld [vmem:[%s0 + $0xe0] sm:$0xf]
  %v72 = vld [vmem:[%s0 + $0xe4] sm:$0xf]
  %v73 = vld [vmem:[%s0 + $0xe8] sm:$0xf]
  %v74 = vld [vmem:[%s0 + $0xec] sm:$0xf]
  %v75 = vld [vmem:[%s0 + $0xf0] sm:$0xf]
  %v76 = vld [vmem:[%s0 + $0xf4] sm:$0xf]
  %v77 = vld [vmem:[%s0 + $0xf8] sm:$0xf]
  %v78 = vld [vmem:[%s0 + $0xfc] sm:$0xf]
  %v79 = vunpack.c.l.bf16 %v15
  %v80 = vunpack.c.l.bf16 %v16
  %v81 = vunpack.c.l.bf16 %v17
  %v82 = vunpack.c.l.bf16 %v18
  %v83 = vunpack.c.l.bf16 %v19
  %v84 = vunpack.c.l.bf16 %v20
  %v85 = vunpack.c.l.bf16 %v21
  %v86 = vunpack.c.l.bf16 %v22
  %v87 = vunpack.c.l.bf16 %v23
  %v88 = vunpack.c.l.bf16 %v24
  %v89 = vunpack.c.l.bf16 %v25
  %v90 = vunpack.c.l.bf16 %v26
  %v91 = vunpack.c.l.bf16 %v27
  %v92 = vunpack.c.l.bf16 %v28
  %v93 = vunpack.c.l.bf16 %v29
  %v94 = vunpack.c.l.bf16 %v30
  %v95 = vunpack.c.l.bf16 %v31
  %v96 = vunpack.c.l.bf16 %v32
  %v97 = vunpack.c.l.bf16 %v33
  %v98 = vunpack.c.l.bf16 %v34
  %v99 = vunpack.c.l.bf16 %v35
  %v100 = vunpack.c.l.bf16 %v36
  %v101 = vunpack.c.l.bf16 %v37
  %v102 = vunpack.c.l.bf16 %v38
  %v103 = vunpack.c.l.bf16 %v39
  %v104 = vunpack.c.l.bf16 %v40
  %v105 = vunpack.c.l.bf16 %v41
  %v106 = vunpack.c.l.bf16 %v42
  %v107 = vunpack.c.l.bf16 %v43
  %v108 = vunpack.c.l.bf16 %v44
  %v109 = vunpack.c.l.bf16 %v45
  %v110 = vunpack.c.l.bf16 %v46
  %v111 = vunpack.c.l.bf16 %v47
  %v112 = vunpack.c.l.bf16 %v48
  %v113 = vunpack.c.l.bf16 %v49
  %v114 = vunpack.c.l.bf16 %v50
  %v115 = vunpack.c.l.bf16 %v51
  %v116 = vunpack.c.l.bf16 %v52
  %v117 = vunpack.c.l.bf16 %v53
  %v118 = vunpack.c.l.bf16 %v54
  %v119 = vunpack.c.l.bf16 %v55
  %v120 = vunpack.c.l.bf16 %v56
  %v121 = vunpack.c.l.bf16 %v57
  %v122 = vunpack.c.l.bf16 %v58
  %v123 = vunpack.c.l.bf16 %v59
  %v124 = vunpack.c.l.bf16 %v60
  %v125 = vunpack.c.l.bf16 %v61
  %v126 = vunpack.c.l.bf16 %v62
  %v127 = vunpack.c.l.bf16 %v63
  %v128 = vunpack.c.l.bf16 %v64
  %v129 = vunpack.c.l.bf16 %v65
  %v130 = vunpack.c.l.bf16 %v66
  %v131 = vunpack.c.l.bf16 %v67
  %v132 = vunpack.c.l.bf16 %v68
  %v133 = vunpack.c.l.bf16 %v69
  %v134 = vunpack.c.l.bf16 %v70
  %v135 = vunpack.c.l.bf16 %v71
  %v136 = vunpack.c.l.bf16 %v72
  %v137 = vunpack.c.l.bf16 %v73
  %v138 = vunpack.c.l.bf16 %v74
  %v139 = vunpack.c.l.bf16 %v75
  %v140 = vunpack.c.l.bf16 %v76
  %v141 = vunpack.c.l.bf16 %v77
  %v142 = vunpack.c.l.bf16 %v78
  %v143 = vld [vmem:[%s1] sm:$0xf]
  %v144 = vld [vmem:[%s1 + $0x4] sm:$0xf]
  %v145 = vld [vmem:[%s1 + $0x8] sm:$0xf]
  %v146 = vld [vmem:[%s1 + $0xc] sm:$0xf]
  %v147 = vld [vmem:[%s1 + $0x10] sm:$0xf]
  %v148 = vld [vmem:[%s1 + $0x14] sm:$0xf]
  %v149 = vld [vmem:[%s1 + $0x18] sm:$0xf]
  %v150 = vld [vmem:[%s1 + $0x1c] sm:$0xf]
  %v151 = vld [vmem:[%s1 + $0x20] sm:$0xf]
  %v152 = vld [vmem:[%s1 + $0x24] sm:$0xf]
  %v153 = vld [vmem:[%s1 + $0x28] sm:$0xf]
  %v154 = vld [vmem:[%s1 + $0x2c] sm:$0xf]
  %v155 = vld [vmem:[%s1 + $0x30] sm:$0xf]
  %v156 = vld [vmem:[%s1 + $0x34] sm:$0xf]
  %v157 = vld [vmem:[%s1 + $0x38] sm:$0xf]
  %v158 = vld [vmem:[%s1 + $0x3c] sm:$0xf]
  %v159 = vld [vmem:[%s1 + $0x40] sm:$0xf]
  %v160 = vld [vmem:[%s1 + $0x44] sm:$0xf]
  %v161 = vld [vmem:[%s1 + $0x48] sm:$0xf]
  %v162 = vld [vmem:[%s1 + $0x4c] sm:$0xf]
  %v163 = vld [vmem:[%s1 + $0x50] sm:$0xf]
  %v164 = vld [vmem:[%s1 + $0x54] sm:$0xf]
  %v165 = vld [vmem:[%s1 + $0x58] sm:$0xf]
  %v166 = vld [vmem:[%s1 + $0x5c] sm:$0xf]
  %v167 = vld [vmem:[%s1 + $0x60] sm:$0xf]
  %v168 = vld [vmem:[%s1 + $0x64] sm:$0xf]
  %v169 = vld [vmem:[%s1 + $0x68] sm:$0xf]
  %v170 = vld [vmem:[%s1 + $0x6c] sm:$0xf]
  %v171 = vld [vmem:[%s1 + $0x70] sm:$0xf]
  %v172 = vld [vmem:[%s1 + $0x74] sm:$0xf]
  %v173 = vld [vmem:[%s1 + $0x78] sm:$0xf]
  %v174 = vld [vmem:[%s1 + $0x7c] sm:$0xf]
  %v175 = vld [vmem:[%s1 + $0x80] sm:$0xf]
  %v176 = vld [vmem:[%s1 + $0x84] sm:$0xf]
  %v177 = vld [vmem:[%s1 + $0x88] sm:$0xf]
  %v178 = vld [vmem:[%s1 + $0x8c] sm:$0xf]
  %v179 = vld [vmem:[%s1 + $0x90] sm:$0xf]
  %v180 = vld [vmem:[%s1 + $0x94] sm:$0xf]
  %v181 = vld [vmem:[%s1 + $0x98] sm:$0xf]
  %v182 = vld [vmem:[%s1 + $0x9c] sm:$0xf]
  %v183 = vld [vmem:[%s1 + $0xa0] sm:$0xf]
  %v184 = vld [vmem:[%s1 + $0xa4] sm:$0xf]
  %v185 = vld [vmem:[%s1 + $0xa8] sm:$0xf]
  %v186 = vld [vmem:[%s1 + $0xac] sm:$0xf]
  %v187 = vld [vmem:[%s1 + $0xb0] sm:$0xf]
  %v188 = vld [vmem:[%s1 + $0xb4] sm:$0xf]
  %v189 = vld [vmem:[%s1 + $0xb8] sm:$0xf]
  %v190 = vld [vmem:[%s1 + $0xbc] sm:$0xf]
  %v191 = vld [vmem:[%s1 + $0xc0] sm:$0xf]
  %v192 = vld [vmem:[%s1 + $0xc4] sm:$0xf]
  %v193 = vld [vmem:[%s1 + $0xc8] sm:$0xf]
  %v194 = vld [vmem:[%s1 + $0xcc] sm:$0xf]
  %v195 = vld [vmem:[%s1 + $0xd0] sm:$0xf]
  %v196 = vld [vmem:[%s1 + $0xd4] sm:$0xf]
  %v197 = vld [vmem:[%s1 + $0xd8] sm:$0xf]
  %v198 = vld [vmem:[%s1 + $0xdc] sm:$0xf]
  %v199 = vld [vmem:[%s1 + $0xe0] sm:$0xf]
  %v200 = vld [vmem:[%s1 + $0xe4] sm:$0xf]
  %v201 = vld [vmem:[%s1 + $0xe8] sm:$0xf]
  %v202 = vld [vmem:[%s1 + $0xec] sm:$0xf]
  %v203 = vld [vmem:[%s1 + $0xf0] sm:$0xf]
  %v204 = vld [vmem:[%s1 + $0xf4] sm:$0xf]
  %v205 = vld [vmem:[%s1 + $0xf8] sm:$0xf]
  %v206 = vld [vmem:[%s1 + $0xfc] sm:$0xf]
  %v207 = vunpack.c.l.bf16 %v143
  %v208 = vunpack.c.l.bf16 %v144
  %v209 = vunpack.c.l.bf16 %v145
  %v210 = vunpack.c.l.bf16 %v146
  %v211 = vunpack.c.l.bf16 %v147
  %v212 = vunpack.c.l.bf16 %v148
  %v213 = vunpack.c.l.bf16 %v149
  %v214 = vunpack.c.l.bf16 %v150
  %v215 = vunpack.c.l.bf16 %v151
  %v216 = vunpack.c.l.bf16 %v152
  %v217 = vunpack.c.l.bf16 %v153
  %v218 = vunpack.c.l.bf16 %v154
  %v219 = vunpack.c.l.bf16 %v155
  %v220 = vunpack.c.l.bf16 %v156
  %v221 = vunpack.c.l.bf16 %v157
  %v222 = vunpack.c.l.bf16 %v158
  %v223 = vunpack.c.l.bf16 %v159
  %v224 = vunpack.c.l.bf16 %v160
  %v225 = vunpack.c.l.bf16 %v161
  %v226 = vunpack.c.l.bf16 %v162
  %v227 = vunpack.c.l.bf16 %v163
  %v228 = vunpack.c.l.bf16 %v164
  %v229 = vunpack.c.l.bf16 %v165
  %v230 = vunpack.c.l.bf16 %v166
  %v231 = vunpack.c.l.bf16 %v167
  %v232 = vunpack.c.l.bf16 %v168
  %v233 = vunpack.c.l.bf16 %v169
  %v234 = vunpack.c.l.bf16 %v170
  %v235 = vunpack.c.l.bf16 %v171
  %v236 = vunpack.c.l.bf16 %v172
  %v237 = vunpack.c.l.bf16 %v173
  %v238 = vunpack.c.l.bf16 %v174
  %v239 = vunpack.c.l.bf16 %v175
  %v240 = vunpack.c.l.bf16 %v176
  %v241 = vunpack.c.l.bf16 %v177
  %v242 = vunpack.c.l.bf16 %v178
  %v243 = vunpack.c.l.bf16 %v179
  %v244 = vunpack.c.l.bf16 %v180
  %v245 = vunpack.c.l.bf16 %v181
  %v246 = vunpack.c.l.bf16 %v182
  %v247 = vunpack.c.l.bf16 %v183
  %v248 = vunpack.c.l.bf16 %v184
  %v249 = vunpack.c.l.bf16 %v185
  %v250 = vunpack.c.l.bf16 %v186
  %v251 = vunpack.c.l.bf16 %v187
  %v252 = vunpack.c.l.bf16 %v188
  %v253 = vunpack.c.l.bf16 %v189
  %v254 = vunpack.c.l.bf16 %v190
  %v255 = vunpack.c.l.bf16 %v191
  %v256 = vunpack.c.l.bf16 %v192
  %v257 = vunpack.c.l.bf16 %v193
  %v258 = vunpack.c.l.bf16 %v194
  %v259 = vunpack.c.l.bf16 %v195
  %v260 = vunpack.c.l.bf16 %v196
  %v261 = vunpack.c.l.bf16 %v197
  %v262 = vunpack.c.l.bf16 %v198
  %v263 = vunpack.c.l.bf16 %v199
  %v264 = vunpack.c.l.bf16 %v200
  %v265 = vunpack.c.l.bf16 %v201
  %v266 = vunpack.c.l.bf16 %v202
  %v267 = vunpack.c.l.bf16 %v203
  %v268 = vunpack.c.l.bf16 %v204
  %v269 = vunpack.c.l.bf16 %v205
  %v270 = vunpack.c.l.bf16 %v206
  %v271 = vadd.f32 %v79, %v207
  %v272 = vadd.f32 %v80, %v208
  %v273 = vadd.f32 %v81, %v209
  %v274 = vadd.f32 %v82, %v210
  %v275 = vadd.f32 %v83, %v211
  %v276 = vadd.f32 %v84, %v212
  %v277 = vadd.f32 %v85, %v213
  %v278 = vadd.f32 %v86, %v214
  %v279 = vadd.f32 %v87, %v215
  %v280 = vadd.f32 %v88, %v216
  %v281 = vadd.f32 %v89, %v217
  %v282 = vadd.f32 %v90, %v218
  %v283 = vadd.f32 %v91, %v219
  %v284 = vadd.f32 %v92, %v220
  %v285 = vadd.f32 %v93, %v221
  %v286 = vadd.f32 %v94, %v222
  %v287 = vadd.f32 %v95, %v223
  %v288 = vadd.f32 %v96, %v224
  %v289 = vadd.f32 %v97, %v225
  %v290 = vadd.f32 %v98, %v226
  %v291 = vadd.f32 %v99, %v227
  %v292 = vadd.f32 %v100, %v228
  %v293 = vadd.f32 %v101, %v229
  %v294 = vadd.f32 %v102, %v230
  %v295 = vadd.f32 %v103, %v231
  %v296 = vadd.f32 %v104, %v232
  %v297 = vadd.f32 %v105, %v233
  %v298 = vadd.f32 %v106, %v234
  %v299 = vadd.f32 %v107, %v235
  %v300 = vadd.f32 %v108, %v236
  %v301 = vadd.f32 %v109, %v237
  %v302 = vadd.f32 %v110, %v238
  %v303 = vadd.f32 %v111, %v239
  %v304 = vadd.f32 %v112, %v240
  %v305 = vadd.f32 %v113, %v241
  %v306 = vadd.f32 %v114, %v242
  %v307 = vadd.f32 %v115, %v243
  %v308 = vadd.f32 %v116, %v244
  %v309 = vadd.f32 %v117, %v245
  %v310 = vadd.f32 %v118, %v246
  %v311 = vadd.f32 %v119, %v247
  %v312 = vadd.f32 %v120, %v248
  %v313 = vadd.f32 %v121, %v249
  %v314 = vadd.f32 %v122, %v250
  %v315 = vadd.f32 %v123, %v251
  %v316 = vadd.f32 %v124, %v252
  %v317 = vadd.f32 %v125, %v253
  %v318 = vadd.f32 %v126, %v254
  %v319 = vadd.f32 %v127, %v255
  %v320 = vadd.f32 %v128, %v256
  %v321 = vadd.f32 %v129, %v257
  %v322 = vadd.f32 %v130, %v258
  %v323 = vadd.f32 %v131, %v259
  %v324 = vadd.f32 %v132, %v260
  %v325 = vadd.f32 %v133, %v261
  %v326 = vadd.f32 %v134, %v262
  %v327 = vadd.f32 %v135, %v263
  %v328 = vadd.f32 %v136, %v264
  %v329 = vadd.f32 %v137, %v265
  %v330 = vadd.f32 %v138, %v266
  %v331 = vadd.f32 %v139, %v267
  %v332 = vadd.f32 %v140, %v268
  %v333 = vadd.f32 %v141, %v269
  %v334 = vadd.f32 %v142, %v270
  %v335 = vpack.c.bf16 %v272, %v271
  %v336 = vpack.c.bf16 %v274, %v273
  %v337 = vpack.c.bf16 %v276, %v275
  %v338 = vpack.c.bf16 %v278, %v277
  %v339 = vpack.c.bf16 %v280, %v279
  %v340 = vpack.c.bf16 %v282, %v281
  %v341 = vpack.c.bf16 %v284, %v283
  %v342 = vpack.c.bf16 %v286, %v285
  %v343 = vpack.c.bf16 %v288, %v287
  %v344 = vpack.c.bf16 %v290, %v289
  %v345 = vpack.c.bf16 %v292, %v291
  %v346 = vpack.c.bf16 %v294, %v293
  %v347 = vpack.c.bf16 %v296, %v295
  %v348 = vpack.c.bf16 %v298, %v297
  %v349 = vpack.c.bf16 %v300, %v299
  %v350 = vpack.c.bf16 %v302, %v301
  %v351 = vpack.c.bf16 %v304, %v303
  %v352 = vpack.c.bf16 %v306, %v305
  %v353 = vpack.c.bf16 %v308, %v307
  %v354 = vpack.c.bf16 %v310, %v309
  %v355 = vpack.c.bf16 %v312, %v311
  %v356 = vpack.c.bf16 %v314, %v313
  %v357 = vpack.c.bf16 %v316, %v315
  %v358 = vpack.c.bf16 %v318, %v317
  %v359 = vpack.c.bf16 %v320, %v319
  %v360 = vpack.c.bf16 %v322, %v321
  %v361 = vpack.c.bf16 %v324, %v323
  %v362 = vpack.c.bf16 %v326, %v325
  %v363 = vpack.c.bf16 %v328, %v327
  %v364 = vpack.c.bf16 %v330, %v329
  %v365 = vpack.c.bf16 %v332, %v331
  %v366 = vpack.c.bf16 %v334, %v333
  %v367 = vld [vmem:[%s2] sm:$0xf]
  %v368 = vld [vmem:[%s2 + $0x4] sm:$0xf]
  %v369 = vld [vmem:[%s2 + $0x8] sm:$0xf]
  %v370 = vld [vmem:[%s2 + $0xc] sm:$0xf]
  %v371 = vld [vmem:[%s2 + $0x10] sm:$0xf]
  %v372 = vld [vmem:[%s2 + $0x14] sm:$0xf]
  %v373 = vld [vmem:[%s2 + $0x18] sm:$0xf]
  %v374 = vld [vmem:[%s2 + $0x1c] sm:$0xf]
  %v375 = vld [vmem:[%s2 + $0x20] sm:$0xf]
  %v376 = vld [vmem:[%s2 + $0x24] sm:$0xf]
  %v377 = vld [vmem:[%s2 + $0x28] sm:$0xf]
  %v378 = vld [vmem:[%s2 + $0x2c] sm:$0xf]
  %v379 = vld [vmem:[%s2 + $0x30] sm:$0xf]
  %v380 = vld [vmem:[%s2 + $0x34] sm:$0xf]
  %v381 = vld [vmem:[%s2 + $0x38] sm:$0xf]
  %v382 = vld [vmem:[%s2 + $0x3c] sm:$0xf]
  %v399 = vunpack.c.l.b16 %v367
  %v400 = vunpack.c.l.b16 %v368
  %v401 = vunpack.c.l.b16 %v369
  %v402 = vunpack.c.l.b16 %v370
  %v403 = vunpack.c.l.b16 %v371
  %v404 = vunpack.c.l.b16 %v372
  %v405 = vunpack.c.l.b16 %v373
  %v406 = vunpack.c.l.b16 %v374
  %v407 = vunpack.c.l.b16 %v375
  %v408 = vunpack.c.l.b16 %v376
  %v409 = vunpack.c.l.b16 %v377
  %v410 = vunpack.c.l.b16 %v378
  %v411 = vunpack.c.l.b16 %v379
  %v412 = vunpack.c.l.b16 %v380
  %v413 = vunpack.c.l.b16 %v381
  %v414 = vunpack.c.l.b16 %v382
  %v415 = vpack.c.b16 %v400, %v399
  %v416 = vpack.c.b16 %v402, %v401
  %v417 = vpack.c.b16 %v404, %v403
  %v418 = vpack.c.b16 %v406, %v405
  %v419 = vpack.c.b16 %v408, %v407
  %v420 = vpack.c.b16 %v410, %v409
  %v421 = vpack.c.b16 %v412, %v411
  %v422 = vpack.c.b16 %v414, %v413
  %431 = vmatprep.subr.bf16.mxu0 0
  %432 = vmatpush1.bf16.msra.mxu0 %v415
  %433 = vmatprep.subr.bf16.mxu0 0
  %434 = vmatpush1.bf16.msra.mxu0 %v416
  %435 = vmatprep.subr.bf16.mxu0 0
  %436 = vmatpush1.bf16.msra.mxu0 %v417
  %437 = vmatprep.subr.bf16.mxu0 0
  %438 = vmatpush1.bf16.msra.mxu0 %v418
  %439 = vmatprep.subr.bf16.mxu0 0
  %440 = vmatpush1.bf16.msra.mxu0 %v419
  %441 = vmatprep.subr.bf16.mxu0 0
  %442 = vmatpush1.bf16.msra.mxu0 %v420
  %443 = vmatprep.subr.bf16.mxu0 0
  %444 = vmatpush1.bf16.msra.mxu0 %v421
  %445 = vmatprep.subr.bf16.mxu0 0
  %446 = vmatpush1.bf16.msra.mxu0 %v422
  %447 = vmatprep.subr.bf16.mxu0 0
  %448 = vmatpush1.bf16.msra.mxu0 0
  %449 = vmatprep.subr.bf16.mxu0 0
  %450 = vmatpush1.bf16.msra.mxu0 0
  %451 = vmatprep.subr.bf16.mxu0 0
  %452 = vmatpush1.bf16.msra.mxu0 0
  %453 = vmatprep.subr.bf16.mxu0 0
  %454 = vmatpush1.bf16.msra.mxu0 0
  %455 = vmatprep.subr.bf16.mxu0 0
  %456 = vmatpush1.bf16.msra.mxu0 0
  %457 = vmatprep.subr.bf16.mxu0 0
  %458 = vmatpush1.bf16.msra.mxu0 0
  %459 = vmatprep.subr.bf16.mxu0 0
  %460 = vmatpush1.bf16.msra.mxu0 0
  %461 = vmatprep.subr.bf16.mxu0 0
  %462 = vmatpush1.bf16.msra.mxu0 0
  %463 = vmatprep.mubr.bf16.mxu0 0
  %464 = vmatmul.mubr.bf16.gmra.mrb[0].mxu0 %v335
  %v465 = vpop.f32.mrb[0].mxu0
  %v466 = vadd.f32 0.0, %v465
  %v467 = vpop.f32.mrb[0].mxu0
  %v468 = vpop.f32.mrb[0].mxu0
  %v469 = vadd.f32 0.0, %v468
  %v470 = vpop.f32.mrb[0].mxu0
  %471 = vmatprep.mubr.bf16.mxu0 0
  %472 = vmatmul.mubr.bf16.gmra.mrb[0].mxu0 %v336
  %v473 = vpop.f32.mrb[0].mxu0
  %v474 = vadd.f32 0.0, %v473
  %v475 = vpop.f32.mrb[0].mxu0
  %v476 = vpop.f32.mrb[0].mxu0
  %v477 = vadd.f32 0.0, %v476
  %v478 = vpop.f32.mrb[0].mxu0
  %479 = vmatprep.mubr.bf16.mxu0 0
  %480 = vmatmul.mubr.bf16.gmra.mrb[0].mxu0 %v337
  %v481 = vpop.f32.mrb[0].mxu0
  %v482 = vadd.f32 0.0, %v481
  %v483 = vpop.f32.mrb[0].mxu0
  %v484 = vpop.f32.mrb[0].mxu0
  %v485 = vadd.f32 0.0, %v484
  %v486 = vpop.f32.mrb[0].mxu0
  %487 = vmatprep.mubr.bf16.mxu0 0
  %488 = vmatmul.mubr.bf16.gmra.mrb[0].mxu0 %v338
  %v489 = vpop.f32.mrb[0].mxu0
  %v490 = vadd.f32 0.0, %v489
  %v491 = vpop.f32.mrb[0].mxu0
  %v492 = vpop.f32.mrb[0].mxu0
  %v493 = vadd.f32 0.0, %v492
  %v494 = vpop.f32.mrb[0].mxu0
  %495 = vmatprep.mubr.bf16.mxu0 0
  %496 = vmatmul.mubr.bf16.gmra.mrb[0].mxu0 %v339
  %v497 = vpop.f32.mrb[0].mxu0
  %v498 = vadd.f32 0.0, %v497
  %v499 = vpop.f32.mrb[0].mxu0
  %v500 = vpop.f32.mrb[0].mxu0
  %v501 = vadd.f32 0.0, %v500
  %v502 = vpop.f32.mrb[0].mxu0
  %503 = vmatprep.mubr.bf16.mxu0 0
  %504 = vmatmul.mubr.bf16.gmra.mrb[0].mxu0 %v340
  %v505 = vpop.f32.mrb[0].mxu0
  %v506 = vadd.f32 0.0, %v505
  %v507 = vpop.f32.mrb[0].mxu0
  %v508 = vpop.f32.mrb[0].mxu0
  %v509 = vadd.f32 0.0, %v508
  %v510 = vpop.f32.mrb[0].mxu0
  %511 = vmatprep.mubr.bf16.mxu0 0
  %512 = vmatmul.mubr.bf16.gmra.mrb[0].mxu0 %v341
  %v513 = vpop.f32.mrb[0].mxu0
  %v514 = vadd.f32 0.0, %v513
  %v515 = vpop.f32.mrb[0].mxu0
  %v516 = vpop.f32.mrb[0].mxu0
  %v517 = vadd.f32 0.0, %v516
  %v518 = vpop.f32.mrb[0].mxu0
  %519 = vmatprep.mubr.bf16.mxu0 0
  %520 = vmatmul.mubr.bf16.gmra.mrb[0].mxu0 %v342
  %v521 = vpop.f32.mrb[0].mxu0
  %v522 = vadd.f32 0.0, %v521
  %v523 = vpop.f32.mrb[0].mxu0
  %v524 = vpop.f32.mrb[0].mxu0
  %v525 = vadd.f32 0.0, %v524
  %v526 = vpop.f32.mrb[0].mxu0
  %527 = vmatprep.mubr.bf16.mxu0 0
  %528 = vmatmul.mubr.bf16.gmra.mrb[0].mxu0 %v343
  %v529 = vpop.f32.mrb[0].mxu0
  %v530 = vadd.f32 0.0, %v529
  %v531 = vpop.f32.mrb[0].mxu0
  %v532 = vpop.f32.mrb[0].mxu0
  %v533 = vadd.f32 0.0, %v532
  %v534 = vpop.f32.mrb[0].mxu0
  %535 = vmatprep.mubr.bf16.mxu0 0
  %536 = vmatmul.mubr.bf16.gmra.mrb[0].mxu0 %v344
  %v537 = vpop.f32.mrb[0].mxu0
  %v538 = vadd.f32 0.0, %v537
  %v539 = vpop.f32.mrb[0].mxu0
  %v540 = vpop.f32.mrb[0].mxu0
  %v541 = vadd.f32 0.0, %v540
  %v542 = vpop.f32.mrb[0].mxu0
  %543 = vmatprep.mubr.bf16.mxu0 0
  %544 = vmatmul.mubr.bf16.gmra.mrb[0].mxu0 %v345
  %v545 = vpop.f32.mrb[0].mxu0
  %v546 = vadd.f32 0.0, %v545
  %v547 = vpop.f32.mrb[0].mxu0
  %v548 = vpop.f32.mrb[0].mxu0
  %v549 = vadd.f32 0.0, %v548
  %v550 = vpop.f32.mrb[0].mxu0
  %551 = vmatprep.mubr.bf16.mxu0 0
  %552 = vmatmul.mubr.bf16.gmra.mrb[0].mxu0 %v346
  %v553 = vpop.f32.mrb[0].mxu0
  %v554 = vadd.f32 0.0, %v553
  %v555 = vpop.f32.mrb[0].mxu0
  %v556 = vpop.f32.mrb[0].mxu0
  %v557 = vadd.f32 0.0, %v556
  %v558 = vpop.f32.mrb[0].mxu0
  %559 = vmatprep.mubr.bf16.mxu0 0
  %560 = vmatmul.mubr.bf16.gmra.mrb[0].mxu0 %v347
  %v561 = vpop.f32.mrb[0].mxu0
  %v562 = vadd.f32 0.0, %v561
  %v563 = vpop.f32.mrb[0].mxu0
  %v564 = vpop.f32.mrb[0].mxu0
  %v565 = vadd.f32 0.0, %v564
  %v566 = vpop.f32.mrb[0].mxu0
  %567 = vmatprep.mubr.bf16.mxu0 0
  %568 = vmatmul.mubr.bf16.gmra.mrb[0].mxu0 %v348
  %v569 = vpop.f32.mrb[0].mxu0
  %v570 = vadd.f32 0.0, %v569
  %v571 = vpop.f32.mrb[0].mxu0
  %v572 = vpop.f32.mrb[0].mxu0
  %v573 = vadd.f32 0.0, %v572
  %v574 = vpop.f32.mrb[0].mxu0
  %575 = vmatprep.mubr.bf16.mxu0 0
  %576 = vmatmul.mubr.bf16.gmra.mrb[0].mxu0 %v349
  %v577 = vpop.f32.mrb[0].mxu0
  %v578 = vadd.f32 0.0, %v577
  %v579 = vpop.f32.mrb[0].mxu0
  %v580 = vpop.f32.mrb[0].mxu0
  %v581 = vadd.f32 0.0, %v580
  %v582 = vpop.f32.mrb[0].mxu0
  %583 = vmatprep.mubr.bf16.mxu0 0
  %584 = vmatmul.mubr.bf16.gmra.mrb[0].mxu0 %v350
  %v585 = vpop.f32.mrb[0].mxu0
  %v586 = vadd.f32 0.0, %v585
  %v587 = vpop.f32.mrb[0].mxu0
  %v588 = vpop.f32.mrb[0].mxu0
  %v589 = vadd.f32 0.0, %v588
  %v590 = vpop.f32.mrb[0].mxu0
  %591 = vmatprep.mubr.bf16.mxu0 0
  %592 = vmatmul.mubr.bf16.gmra.mrb[0].mxu0 %v351
  %v593 = vpop.f32.mrb[0].mxu0
  %v594 = vadd.f32 0.0, %v593
  %v595 = vpop.f32.mrb[0].mxu0
  %v596 = vpop.f32.mrb[0].mxu0
  %v597 = vadd.f32 0.0, %v596
  %v598 = vpop.f32.mrb[0].mxu0
  %599 = vmatprep.mubr.bf16.mxu0 0
  %600 = vmatmul.mubr.bf16.gmra.mrb[0].mxu0 %v352
  %v601 = vpop.f32.mrb[0].mxu0
  %v602 = vadd.f32 0.0, %v601
  %v603 = vpop.f32.mrb[0].mxu0
  %v604 = vpop.f32.mrb[0].mxu0
  %v605 = vadd.f32 0.0, %v604
  %v606 = vpop.f32.mrb[0].mxu0
  %607 = vmatprep.mubr.bf16.mxu0 0
  %608 = vmatmul.mubr.bf16.gmra.mrb[0].mxu0 %v353
  %v609 = vpop.f32.mrb[0].mxu0
  %v610 = vadd.f32 0.0, %v609
  %v611 = vpop.f32.mrb[0].mxu0
  %v612 = vpop.f32.mrb[0].mxu0
  %v613 = vadd.f32 0.0, %v612
  %v614 = vpop.f32.mrb[0].mxu0
  %615 = vmatprep.mubr.bf16.mxu0 0
  %616 = vmatmul.mubr.bf16.gmra.mrb[0].mxu0 %v354
  %v617 = vpop.f32.mrb[0].mxu0
  %v618 = vadd.f32 0.0, %v617
  %v619 = vpop.f32.mrb[0].mxu0
  %v620 = vpop.f32.mrb[0].mxu0
  %v621 = vadd.f32 0.0, %v620
  %v622 = vpop.f32.mrb[0].mxu0
  %623 = vmatprep.mubr.bf16.mxu0 0
  %624 = vmatmul.mubr.bf16.gmra.mrb[0].mxu0 %v355
  %v625 = vpop.f32.mrb[0].mxu0
  %v626 = vadd.f32 0.0, %v625
  %v627 = vpop.f32.mrb[0].mxu0
  %v628 = vpop.f32.mrb[0].mxu0
  %v629 = vadd.f32 0.0, %v628
  %v630 = vpop.f32.mrb[0].mxu0
  %631 = vmatprep.mubr.bf16.mxu0 0
  %632 = vmatmul.mubr.bf16.gmra.mrb[0].mxu0 %v356
  %v633 = vpop.f32.mrb[0].mxu0
  %v634 = vadd.f32 0.0, %v633
  %v635 = vpop.f32.mrb[0].mxu0
  %v636 = vpop.f32.mrb[0].mxu0
  %v637 = vadd.f32 0.0, %v636
  %v638 = vpop.f32.mrb[0].mxu0
  %639 = vmatprep.mubr.bf16.mxu0 0
  %640 = vmatmul.mubr.bf16.gmra.mrb[0].mxu0 %v357
  %v641 = vpop.f32.mrb[0].mxu0
  %v642 = vadd.f32 0.0, %v641
  %v643 = vpop.f32.mrb[0].mxu0
  %v644 = vpop.f32.mrb[0].mxu0
  %v645 = vadd.f32 0.0, %v644
  %v646 = vpop.f32.mrb[0].mxu0
  %647 = vmatprep.mubr.bf16.mxu0 0
  %648 = vmatmul.mubr.bf16.gmra.mrb[0].mxu0 %v358
  %v649 = vpop.f32.mrb[0].mxu0
  %v650 = vadd.f32 0.0, %v649
  %v651 = vpop.f32.mrb[0].mxu0
  %v652 = vpop.f32.mrb[0].mxu0
  %v653 = vadd.f32 0.0, %v652
  %v654 = vpop.f32.mrb[0].mxu0
  %655 = vmatprep.mubr.bf16.mxu0 0
  %656 = vmatmul.mubr.bf16.gmra.mrb[0].mxu0 %v359
  %v657 = vpop.f32.mrb[0].mxu0
  %v658 = vadd.f32 0.0, %v657
  %v659 = vpop.f32.mrb[0].mxu0
  %v660 = vpop.f32.mrb[0].mxu0
  %v661 = vadd.f32 0.0, %v660
  %v662 = vpop.f32.mrb[0].mxu0
  %663 = vmatprep.mubr.bf16.mxu0 0
  %664 = vmatmul.mubr.bf16.gmra.mrb[0].mxu0 %v360
  %v665 = vpop.f32.mrb[0].mxu0
  %v666 = vadd.f32 0.0, %v665
  %v667 = vpop.f32.mrb[0].mxu0
  %v668 = vpop.f32.mrb[0].mxu0
  %v669 = vadd.f32 0.0, %v668
  %v670 = vpop.f32.mrb[0].mxu0
  %671 = vmatprep.mubr.bf16.mxu0 0
  %672 = vmatmul.mubr.bf16.gmra.mrb[0].mxu0 %v361
  %v673 = vpop.f32.mrb[0].mxu0
  %v674 = vadd.f32 0.0, %v673
  %v675 = vpop.f32.mrb[0].mxu0
  %v676 = vpop.f32.mrb[0].mxu0
  %v677 = vadd.f32 0.0, %v676
  %v678 = vpop.f32.mrb[0].mxu0
  %679 = vmatprep.mubr.bf16.mxu0 0
  %680 = vmatmul.mubr.bf16.gmra.mrb[0].mxu0 %v362
  %v681 = vpop.f32.mrb[0].mxu0
  %v682 = vadd.f32 0.0, %v681
  %v683 = vpop.f32.mrb[0].mxu0
  %v684 = vpop.f32.mrb[0].mxu0
  %v685 = vadd.f32 0.0, %v684
  %v686 = vpop.f32.mrb[0].mxu0
  %687 = vmatprep.mubr.bf16.mxu0 0
  %688 = vmatmul.mubr.bf16.gmra.mrb[0].mxu0 %v363
  %v689 = vpop.f32.mrb[0].mxu0
  %v690 = vadd.f32 0.0, %v689
  %v691 = vpop.f32.mrb[0].mxu0
  %v692 = vpop.f32.mrb[0].mxu0
  %v693 = vadd.f32 0.0, %v692
  %v694 = vpop.f32.mrb[0].mxu0
  %695 = vmatprep.mubr.bf16.mxu0 0
  %696 = vmatmul.mubr.bf16.gmra.mrb[0].mxu0 %v364
  %v697 = vpop.f32.mrb[0].mxu0
  %v698 = vadd.f32 0.0, %v697
  %v699 = vpop.f32.mrb[0].mxu0
  %v700 = vpop.f32.mrb[0].mxu0
  %v701 = vadd.f32 0.0, %v700
  %v702 = vpop.f32.mrb[0].mxu0
  %703 = vmatprep.mubr.bf16.mxu0 0
  %704 = vmatmul.mubr.bf16.gmra.mrb[0].mxu0 %v365
  %v705 = vpop.f32.mrb[0].mxu0
  %v706 = vadd.f32 0.0, %v705
  %v707 = vpop.f32.mrb[0].mxu0
  %v708 = vpop.f32.mrb[0].mxu0
  %v709 = vadd.f32 0.0, %v708
  %v710 = vpop.f32.mrb[0].mxu0
  %711 = vmatprep.mubr.bf16.mxu0 0
  %712 = vmatmul.mubr.bf16.gmra.mrb[0].mxu0 %v366
  %v713 = vpop.f32.mrb[0].mxu0
  %v714 = vadd.f32 0.0, %v713
  %v715 = vpop.f32.mrb[0].mxu0
  %v716 = vpop.f32.mrb[0].mxu0
  %v717 = vadd.f32 0.0, %v716
  %v718 = vpop.f32.mrb[0].mxu0
  %719 = vdwg.mxu0
  %720 = vst [vmem:[%s3] sm:$0xff] %v466
  %721 = vst [vmem:[%s3 + $0x8] sm:$0xff] %v469
  %722 = vst [vmem:[%s3 + $0x10] sm:$0xff] %v474
  %723 = vst [vmem:[%s3 + $0x18] sm:$0xff] %v477
  %724 = vst [vmem:[%s3 + $0x20] sm:$0xff] %v482
  %725 = vst [vmem:[%s3 + $0x28] sm:$0xff] %v485
  %726 = vst [vmem:[%s3 + $0x30] sm:$0xff] %v490
  %727 = vst [vmem:[%s3 + $0x38] sm:$0xff] %v493
  %728 = vst [vmem:[%s3 + $0x40] sm:$0xff] %v498
  %729 = vst [vmem:[%s3 + $0x48] sm:$0xff] %v501
  %730 = vst [vmem:[%s3 + $0x50] sm:$0xff] %v506
  %731 = vst [vmem:[%s3 + $0x58] sm:$0xff] %v509
  %732 = vst [vmem:[%s3 + $0x60] sm:$0xff] %v514
  %733 = vst [vmem:[%s3 + $0x68] sm:$0xff] %v517
  %734 = vst [vmem:[%s3 + $0x70] sm:$0xff] %v522
  %735 = vst [vmem:[%s3 + $0x78] sm:$0xff] %v525
  %736 = vst [vmem:[%s3 + $0x80] sm:$0xff] %v530
  %737 = vst [vmem:[%s3 + $0x88] sm:$0xff] %v533
  %738 = vst [vmem:[%s3 + $0x90] sm:$0xff] %v538
  %739 = vst [vmem:[%s3 + $0x98] sm:$0xff] %v541
  %740 = vst [vmem:[%s3 + $0xa0] sm:$0xff] %v546
  %741 = vst [vmem:[%s3 + $0xa8] sm:$0xff] %v549
  %742 = vst [vmem:[%s3 + $0xb0] sm:$0xff] %v554
  %743 = vst [vmem:[%s3 + $0xb8] sm:$0xff] %v557
  %744 = vst [vmem:[%s3 + $0xc0] sm:$0xff] %v562
  %745 = vst [vmem:[%s3 + $0xc8] sm:$0xff] %v565
  %746 = vst [vmem:[%s3 + $0xd0] sm:$0xff] %v570
  %747 = vst [vmem:[%s3 + $0xd8] sm:$0xff] %v573
  %748 = vst [vmem:[%s3 + $0xe0] sm:$0xff] %v578
  %749 = vst [vmem:[%s3 + $0xe8] sm:$0xff] %v581
  %750 = vst [vmem:[%s3 + $0xf0] sm:$0xff] %v586
  %751 = vst [vmem:[%s3 + $0xf8] sm:$0xff] %v589
  %752 = vst [vmem:[%s3 + $0x100] sm:$0xff] %v594
  %753 = vst [vmem:[%s3 + $0x108] sm:$0xff] %v597
  %754 = vst [vmem:[%s3 + $0x110] sm:$0xff] %v602
  %755 = vst [vmem:[%s3 + $0x118] sm:$0xff] %v605
  %756 = vst [vmem:[%s3 + $0x120] sm:$0xff] %v610
  %757 = vst [vmem:[%s3 + $0x128] sm:$0xff] %v613
  %758 = vst [vmem:[%s3 + $0x130] sm:$0xff] %v618
  %759 = vst [vmem:[%s3 + $0x138] sm:$0xff] %v621
  %760 = vst [vmem:[%s3 + $0x140] sm:$0xff] %v626
  %761 = vst [vmem:[%s3 + $0x148] sm:$0xff] %v629
  %762 = vst [vmem:[%s3 + $0x150] sm:$0xff] %v634
  %763 = vst [vmem:[%s3 + $0x158] sm:$0xff] %v637
  %764 = vst [vmem:[%s3 + $0x160] sm:$0xff] %v642
  %765 = vst [vmem:[%s3 + $0x168] sm:$0xff] %v645
  %766 = vst [vmem:[%s3 + $0x170] sm:$0xff] %v650
  %767 = vst [vmem:[%s3 + $0x178] sm:$0xff] %v653
  %768 = vst [vmem:[%s3 + $0x180] sm:$0xff] %v658
  %769 = vst [vmem:[%s3 + $0x188] sm:$0xff] %v661
  %770 = vst [vmem:[%s3 + $0x190] sm:$0xff] %v666
  %771 = vst [vmem:[%s3 + $0x198] sm:$0xff] %v669
  %772 = vst [vmem:[%s3 + $0x1a0] sm:$0xff] %v674
  %773 = vst [vmem:[%s3 + $0x1a8] sm:$0xff] %v677
  %774 = vst [vmem:[%s3 + $0x1b0] sm:$0xff] %v682
  %775 = vst [vmem:[%s3 + $0x1b8] sm:$0xff] %v685
  %776 = vst [vmem:[%s3 + $0x1c0] sm:$0xff] %v690
  %777 = vst [vmem:[%s3 + $0x1c8] sm:$0xff] %v693
  %778 = vst [vmem:[%s3 + $0x1d0] sm:$0xff] %v698
  %779 = vst [vmem:[%s3 + $0x1d8] sm:$0xff] %v701
  %780 = vst [vmem:[%s3 + $0x1e0] sm:$0xff] %v706
  %781 = vst [vmem:[%s3 + $0x1e8] sm:$0xff] %v709
  %782 = vst [vmem:[%s3 + $0x1f0] sm:$0xff] %v714
  %783 = vst [vmem:[%s3 + $0x1f8] sm:$0xff] %v717
  // Predicated region
  $region14: #{spectral_transform_forward.9} parent=0 // pred_check
    _
  $region15: #{spectral_transform_forward.9} parent=0 // pred_check_branch
    %785 = sbr.rel (0) target = $region17
  $region16: #{spectral_transform_forward.9} parent=0 // pred_region
    _
  $region17: #{spectral_transform_forward.9} parent=0 // pred_fallthru
    _
  // Predicated region
  $region18: #{spectral_transform_forward.9} parent=0 // pred_check
    _
  $region19: #{spectral_transform_forward.9} parent=0 // pred_check_branch
    %787 = sbr.rel (0) target = $region21
  $region20: #{spectral_transform_forward.9} parent=0 // pred_region
    _
  $region21: #{spectral_transform_forward.9} parent=0 // pred_fallthru
    _

</llo_original>
